<compile_context>
chip_gen: v7x
topology: tpu7x:2x2x1
jax: 0.10.0
libtpu: 0.0.40
codegen_flags: <defaults>
</compile_context>

<pallas_src>
import functools
import math

import jax
import jax.numpy as jnp
from jax import lax
from jax.experimental import pallas as pl
from jax.experimental.pallas import tpu as pltpu

_EPS = 1e-5  # PyTorch nn.LayerNorm default eps


def _layer_norm(v, w, b):
    mu = jnp.mean(v, axis=-1, keepdims=True)
    var = jnp.mean(jnp.square(v - mu), axis=-1, keepdims=True)
    return (v - mu) * lax.rsqrt(var + _EPS) * w + b


def _gelu(v):
    # TODO(synk): PyTorch nn.GELU() defaults to exact erf-GELU; tanh
    # approximation used (~1e-3 max error) since erf lowering is not
    # guaranteed in Mosaic.
    c = math.sqrt(2.0 / math.pi)
    return 0.5 * v * (1.0 + jnp.tanh(c * (v + 0.044715 * v * v * v)))


def _encoder_layer_kernel(
    x_ref, mask_ref,
    ln0_w_ref, ln0_b_ref,
    w_q_ref, b_q_ref,
    w_kv_ref, b_kv_ref,
    w_out_ref, b_out_ref,
    ln1_w_ref, ln1_b_ref,
    w_ff1_ref, b_ff1_ref,
    w_ff2_ref, b_ff2_ref,
    ln2_w_ref, ln2_b_ref,
    o_ref,
    k_scr, v_scr,
    *, num_heads, d_model, q_tile,
):
    f32 = jnp.float32
    bf16 = jnp.bfloat16
    head_dim = d_model // num_heads
    scale = 1.0 / math.sqrt(head_dim)
    t = pl.program_id(1)

    ln0_w = ln0_w_ref[...]
    ln0_b = ln0_b_ref[...]

    # ---- K / V of the full sequence: computed once per batch element ----
    @pl.when(t == 0)
    def _():
        x_full = x_ref[...]                                  # (S, D) f32
        x_pre_full = _layer_norm(x_full, ln0_w, ln0_b)
        kv = jnp.dot(x_pre_full.astype(bf16), w_kv_ref[...],
                     preferred_element_type=f32) + b_kv_ref[...]
        k_scr[...] = kv[:, :d_model].astype(bf16)
        v_scr[...] = kv[:, d_model:].astype(bf16)

    # ---- query tile ----
    start = pl.multiple_of(t * q_tile, q_tile)
    x_t = x_ref[pl.ds(start, q_tile), :]                     # (TQ, D)
    x_pre = _layer_norm(x_t, ln0_w, ln0_b)                   # f32

    q = jnp.dot(x_pre.astype(bf16), w_q_ref[...],
                preferred_element_type=f32) + b_q_ref[...]
    q = q * scale                                            # scale once, not per head

    # key_padding_mask: 1.0 -> key is padding -> excluded from softmax.
    # TODO(synk): rows whose keys are ALL padded get uniform weights here,
    # whereas PyTorch produces NaNs for fully-masked rows.
    neg = jnp.where(mask_ref[...] > 0.5, -1e30, 0.0)         # (1, S) f32

    attn = jnp.zeros((q_tile, d_model), f32)
    for h in range(num_heads):        # static unroll; per-head temporaries die
        lo, hi = h * head_dim, (h + 1) * head_dim
        qh = q[:, lo:hi].astype(bf16)                        # (TQ, dh)
        kh = k_scr[:, lo:hi]                                 # (S, dh) bf16
        # (TQ, dh) . (S, dh)^T -> (TQ, S) without materializing kh.T
        s = lax.dot_general(qh, kh, (((1,), (1,)), ((), ())),
                            preferred_element_type=f32)
        s = s + neg
        s = s - jnp.max(s, axis=-1, keepdims=True)
        p = jnp.exp(s)
        p = p * pl.reciprocal(jnp.sum(p, axis=-1, keepdims=True), approx=True)
        ctx = jnp.dot(p.astype(bf16), v_scr[:, lo:hi],
                      preferred_element_type=f32)            # (TQ, dh) f32
        # fold this head's context straight into the output projection
        attn = attn + jnp.dot(ctx.astype(bf16), w_out_ref[lo:hi, :],
                              preferred_element_type=f32)    # (TQ, D)
    attn = attn + b_out_ref[...]

    # ---- residual + norm1 (dropout = identity at inference) ----
    x_post = _layer_norm(x_pre + attn, ln1_w_ref[...], ln1_b_ref[...])

    # ---- feed-forward (elementwise math kept in f32, bf16 only at MXU) ----
    h1 = jnp.dot(x_post.astype(bf16), w_ff1_ref[...],
                 preferred_element_type=f32) + b_ff1_ref[...]
    h1 = _gelu(h1)
    ff = jnp.dot(h1.astype(bf16), w_ff2_ref[...],
                 preferred_element_type=f32) + b_ff2_ref[...]

    # ---- residual + norm2 ----
    out = _layer_norm(x_post + ff, ln2_w_ref[...], ln2_b_ref[...])
    o_ref[...] = out.astype(o_ref.dtype)


def _pick_q_tile(S):
    for cand in (512, 256, 128):
        if S > cand and S % cand == 0:
            return cand
    return S


def encoder_layer(x, pad_mask, params, *, num_heads):
    """x: (B, S, D) f32, pad_mask: (B, S) bool (True = padded). Returns (out, pad_mask)."""
    B, S, D = x.shape
    assert D % num_heads == 0
    d_ff = params["w_ff1"].shape[1]
    TQ = _pick_q_tile(S)
    n_tiles = S // TQ
    # TODO(synk): real models should pad D / d_ff to multiples of 128 (lane
    # density); the LayerNorm feature axis would then need masking, so padding
    # is left to the caller.

    mask_f = pad_mask.astype(jnp.float32).reshape(B, 1, S)

    bf16 = jnp.bfloat16
    w_q = params["w_qkv"][:, :D].astype(bf16)
    w_kv = params["w_qkv"][:, D:].astype(bf16)
    b_q = params["b_qkv"][:, :D]
    b_kv = params["b_qkv"][:, D:]
    w_out = params["w_out"].astype(bf16)
    w_ff1 = params["w_ff1"].astype(bf16)
    w_ff2 = params["w_ff2"].astype(bf16)

    # ---- VMEM budget (bytes): bf16 weights, f32 x/out blocks, bf16 K/V scratch ----
    weight_bytes = 2 * (w_q.size + w_kv.size + w_out.size + w_ff1.size + w_ff2.size)
    act_bytes = 4 * (2 * S * D + 2 * TQ * D + TQ * max(d_ff, 3 * D) + 2 * TQ * S)
    scratch_bytes = 2 * 2 * S * D
    est = 2 * weight_bytes + act_bytes + scratch_bytes + (1 << 20)
    try:
        vmem_cap = int(pltpu.get_tpu_info().vmem_capacity_bytes)
    except Exception:
        vmem_cap = 64 * 1024 * 1024
    vmem_limit = int(min(0.9 * vmem_cap, max(32 * 1024 * 1024, 1.5 * est)))

    kernel = functools.partial(_encoder_layer_kernel, num_heads=num_heads,
                               d_model=D, q_tile=TQ)

    def build(use_buffered):
        def resident(shape):
            idx = lambda *_: (0,) * len(shape)
            if use_buffered:
                # constant block index -> single buffer is enough
                return pl.BlockSpec(shape, idx, pipeline_mode=pl.Buffered(1))
            return pl.BlockSpec(shape, idx)

        return pl.pallas_call(
            kernel,
            out_shape=jax.ShapeDtypeStruct((B, S, D), x.dtype),
            grid_spec=pltpu.PrefetchScalarGridSpec(
                num_scalar_prefetch=0,
                grid=(B, n_tiles),
                in_specs=[
                    pl.BlockSpec((None, S, D), lambda b, t: (b, 0, 0)),  # x (resident across tiles)
                    pl.BlockSpec((None, 1, S), lambda b, t: (b, 0, 0)),  # pad mask
                    resident((1, D)), resident((1, D)),                  # pre_norm w, b
                    resident((D, D)), resident((1, D)),                  # W_q, b_q (bf16 / f32)
                    resident((D, 2 * D)), resident((1, 2 * D)),          # W_kv, b_kv
                    resident((D, D)), resident((1, D)),                  # out_proj
                    resident((1, D)), resident((1, D)),                  # norm1 w, b
                    resident((D, d_ff)), resident((1, d_ff)),            # ffn linear1
                    resident((d_ff, D)), resident((1, D)),               # ffn linear2
                    resident((1, D)), resident((1, D)),                  # norm2 w, b
                ],
                out_specs=pl.BlockSpec((None, TQ, D), lambda b, t: (b, t, 0)),
                scratch_shapes=[pltpu.VMEM((S, D), jnp.bfloat16),        # K (full seq)
                                pltpu.VMEM((S, D), jnp.bfloat16)],       # V (full seq)
            ),
            compiler_params=pltpu.CompilerParams(
                dimension_semantics=("parallel", "arbitrary"),
                vmem_limit_bytes=vmem_limit,
            ),
        )

    args = (x, mask_f,
            params["ln0_w"], params["ln0_b"],
            w_q, b_q, w_kv, b_kv,
            w_out, params["b_out"],
            params["ln1_w"], params["ln1_b"],
            w_ff1, params["b_ff1"],
            w_ff2, params["b_ff2"],
            params["ln2_w"], params["ln2_b"])

    try:
        out = build(True)(*args)
    except Exception:
        # Fallback for JAX builds where BlockSpec(pipeline_mode=Buffered(1))
        # is not supported by the Mosaic pipeline.
        out = build(False)(*args)
    return out, pad_mask


def encoder_layer_reference(x, pad_mask, params, *, num_heads):
    """Pure-JAX f32 reference with identical math (inference-mode EncoderLayer)."""
    B, S, D = x.shape
    dh = D // num_heads
    mask_f = pad_mask.astype(jnp.float32)

    x_pre = _layer_norm(x, params["ln0_w"], params["ln0_b"])
    qkv = x_pre @ params["w_qkv"] + params["b_qkv"]
    q, k, v = qkv[..., :D], qkv[..., D:2 * D], qkv[..., 2 * D:]
    q = q.reshape(B, S, num_heads, dh).transpose(0, 2, 1, 3)
    k = k.reshape(B, S, num_heads, dh).transpose(0, 2, 1, 3)
    v = v.reshape(B, S, num_heads, dh).transpose(0, 2, 1, 3)
    s = jnp.einsum("bhqd,bhkd->bhqk", q, k) / math.sqrt(dh)
    s = s + jnp.where(mask_f[:, None, None, :] > 0.5, -1e30, 0.0)
    p = jax.nn.softmax(s, axis=-1)
    ctx = jnp.einsum("bhqk,bhkd->bhqd", p, v).transpose(0, 2, 1, 3).reshape(B, S, D)
    attn = ctx @ params["w_out"] + params["b_out"]
    x_post = _layer_norm(x_pre + attn, params["ln1_w"], params["ln1_b"])
    h = _gelu(x_post @ params["w_ff1"] + params["b_ff1"])
    ff = h @ params["w_ff2"] + params["b_ff2"]
    return _layer_norm(x_post + ff, params["ln2_w"], params["ln2_b"])


if __name__ == "__main__":
    B, S, D, H, FF = 2, 16, 64, 4, 128

    keys = jax.random.split(jax.random.PRNGKey(0), 13)

    def w(k, shape, scale):
        return jax.random.normal(k, shape, dtype=jnp.float32) * scale

    params = {
        "ln0_w": jnp.ones((1, D), jnp.float32),
        "ln0_b": jnp.zeros((1, D), jnp.float32),
        "w_qkv": w(keys[0], (D, 3 * D), 1.0 / math.sqrt(D)),
        "b_qkv": w(keys[1], (1, 3 * D), 0.02),
        "w_out": w(keys[2], (D, D), 1.0 / math.sqrt(D)),
        "b_out": w(keys[3], (1, D), 0.02),
        "ln1_w": 1.0 + w(keys[4], (1, D), 0.02),
        "ln1_b": w(keys[5], (1, D), 0.02),
        "w_ff1": w(keys[6], (D, FF), 1.0 / math.sqrt(D)),
        "b_ff1": w(keys[7], (1, FF), 0.02),
        "w_ff2": w(keys[8], (FF, D), 1.0 / math.sqrt(FF)),
        "b_ff2": w(keys[9], (1, D), 0.02),
        "ln2_w": 1.0 + w(keys[10], (1, D), 0.02),
        "ln2_b": w(keys[11], (1, D), 0.02),
    }

    x = jax.random.normal(keys[12], (B, S, D), dtype=jnp.float32)
    # key_padding_mask: True = padded position (ignored as an attention key).
    pad_mask = jnp.array(
        [[False] * S,
         [False] * (S - 5) + [True] * 5], dtype=jnp.bool_)

    out, out_mask = encoder_layer(x, pad_mask, params, num_heads=H)
    out = jax.block_until_ready(out)

    ref = encoder_layer_reference(x, pad_mask, params, num_heads=H)
    assert out.shape == (B, S, D)
    # bf16 MXU operands vs f32 reference -> loosened tolerance
    assert jnp.allclose(out, ref, atol=5e-2, rtol=5e-2), (
        f"mismatch vs reference, max abs diff {jnp.max(jnp.abs(out - ref))}")

    print("KERNEL_OK")
</pallas_src>

<mosaic_0001>
module attributes {stable_mosaic.version = 11 : i64} {
  func.func @_encoder_layer_kernel(%arg0: i32, %arg1: i32, %arg2: memref<1x16x64xf32, #tpu.memory_space<vmem>>, %arg3: memref<1x1x16xf32, #tpu.memory_space<vmem>>, %arg4: memref<1x64xf32, #tpu.memory_space<vmem>>, %arg5: memref<1x64xf32, #tpu.memory_space<vmem>>, %arg6: memref<64x64xbf16, #tpu.memory_space<vmem>>, %arg7: memref<1x64xf32, #tpu.memory_space<vmem>>, %arg8: memref<64x128xbf16, #tpu.memory_space<vmem>>, %arg9: memref<1x128xf32, #tpu.memory_space<vmem>>, %arg10: memref<64x64xbf16, #tpu.memory_space<vmem>>, %arg11: memref<1x64xf32, #tpu.memory_space<vmem>>, %arg12: memref<1x64xf32, #tpu.memory_space<vmem>>, %arg13: memref<1x64xf32, #tpu.memory_space<vmem>>, %arg14: memref<64x128xbf16, #tpu.memory_space<vmem>>, %arg15: memref<1x128xf32, #tpu.memory_space<vmem>>, %arg16: memref<128x64xbf16, #tpu.memory_space<vmem>>, %arg17: memref<1x64xf32, #tpu.memory_space<vmem>>, %arg18: memref<1x64xf32, #tpu.memory_space<vmem>>, %arg19: memref<1x64xf32, #tpu.memory_space<vmem>>, %arg20: memref<1x16x64xf32, #tpu.memory_space<vmem>>, %arg21: memref<16x64xbf16, #tpu.memory_space<vmem>>, %arg22: memref<16x64xbf16, #tpu.memory_space<vmem>>) attributes {dimension_semantics = [#tpu.dimension_semantics<parallel>, #tpu.dimension_semantics<arbitrary>], iteration_bounds = array<i64: 2, 1>, scalar_prefetch = 0 : i64, scratch_operands = 2 : i64, tpu.core_type = #tpu.core_type<tc>, window_params = [{transform_indices = @transform_0, window_bounds = array<i64: 1, 16, 64>}, {transform_indices = @transform_1, window_bounds = array<i64: 1, 1, 16>}, {pipeline_mode = #tpu.pipeline_mode<synchronous>, transform_indices = @transform_2, window_bounds = array<i64: 1, 64>}, {pipeline_mode = #tpu.pipeline_mode<synchronous>, transform_indices = @transform_3, window_bounds = array<i64: 1, 64>}, {pipeline_mode = #tpu.pipeline_mode<synchronous>, transform_indices = @transform_4, window_bounds = array<i64: 64, 64>}, {pipeline_mode = #tpu.pipeline_mode<synchronous>, transform_indices = @transform_5, window_bounds = array<i64: 1, 64>}, {pipeline_mode = #tpu.pipeline_mode<synchronous>, transform_indices = @transform_6, window_bounds = array<i64: 64, 128>}, {pipeline_mode = #tpu.pipeline_mode<synchronous>, transform_indices = @transform_7, window_bounds = array<i64: 1, 128>}, {pipeline_mode = #tpu.pipeline_mode<synchronous>, transform_indices = @transform_8, window_bounds = array<i64: 64, 64>}, {pipeline_mode = #tpu.pipeline_mode<synchronous>, transform_indices = @transform_9, window_bounds = array<i64: 1, 64>}, {pipeline_mode = #tpu.pipeline_mode<synchronous>, transform_indices = @transform_10, window_bounds = array<i64: 1, 64>}, {pipeline_mode = #tpu.pipeline_mode<synchronous>, transform_indices = @transform_11, window_bounds = array<i64: 1, 64>}, {pipeline_mode = #tpu.pipeline_mode<synchronous>, transform_indices = @transform_12, window_bounds = array<i64: 64, 128>}, {pipeline_mode = #tpu.pipeline_mode<synchronous>, transform_indices = @transform_13, window_bounds = array<i64: 1, 128>}, {pipeline_mode = #tpu.pipeline_mode<synchronous>, transform_indices = @transform_14, window_bounds = array<i64: 128, 64>}, {pipeline_mode = #tpu.pipeline_mode<synchronous>, transform_indices = @transform_15, window_bounds = array<i64: 1, 64>}, {pipeline_mode = #tpu.pipeline_mode<synchronous>, transform_indices = @transform_16, window_bounds = array<i64: 1, 64>}, {pipeline_mode = #tpu.pipeline_mode<synchronous>, transform_indices = @transform_17, window_bounds = array<i64: 1, 64>}, {transform_indices = @transform_18, window_bounds = array<i64: 1, 16, 64>}]} {
    %c0 = arith.constant 0 : index
    %c0_0 = arith.constant 0 : index
    %0 = vector.load %arg4[%c0, %c0_0] : memref<1x64xf32, #tpu.memory_space<vmem>>, vector<1x64xf32>
    %c0_1 = arith.constant 0 : index
    %c0_2 = arith.constant 0 : index
    %1 = vector.load %arg5[%c0_1, %c0_2] : memref<1x64xf32, #tpu.memory_space<vmem>>, vector<1x64xf32>
    %c0_i32 = arith.constant 0 : i32
    %2 = arith.cmpi eq, %arg1, %c0_i32 : i32
    %3 = arith.extui %2 : i1 to i32
    %c0_i32_3 = arith.constant 0 : i32
    %4 = arith.cmpi ne, %3, %c0_i32_3 : i32
    scf.if %4 {
      %c0_101 = arith.constant 0 : index
      %c0_102 = arith.constant 0 : index
      %c0_103 = arith.constant 0 : index
      %221 = vector.load %arg2[%c0_101, %c0_102, %c0_103] : memref<1x16x64xf32, #tpu.memory_space<vmem>>, vector<1x16x64xf32>
      %222 = vector.shape_cast %221 : vector<1x16x64xf32> to vector<16x64xf32>
      %cst_104 = arith.constant dense<0.000000e+00> : vector<16xf32>
      %223 = vector.multi_reduction <add>, %222, %cst_104 [1] : vector<16x64xf32> to vector<16xf32>
      %224 = vector.shape_cast %223 : vector<16xf32> to vector<16x1xf32>
      %cst_105 = arith.constant 6.400000e+01 : f32
      %225 = vector.broadcast %cst_105 : f32 to vector<16x1xf32>
      %226 = arith.divf %224, %225 : vector<16x1xf32>
      %227 = vector.broadcast %226 : vector<16x1xf32> to vector<16x64xf32>
      %228 = arith.subf %222, %227 : vector<16x64xf32>
      %229 = arith.mulf %228, %228 : vector<16x64xf32>
      %cst_106 = arith.constant dense<0.000000e+00> : vector<16xf32>
      %230 = vector.multi_reduction <add>, %229, %cst_106 [1] : vector<16x64xf32> to vector<16xf32>
      %231 = vector.shape_cast %230 : vector<16xf32> to vector<16x1xf32>
      %cst_107 = arith.constant 6.400000e+01 : f32
      %232 = vector.broadcast %cst_107 : f32 to vector<16x1xf32>
      %233 = arith.divf %231, %232 : vector<16x1xf32>
      %234 = vector.broadcast %226 : vector<16x1xf32> to vector<16x64xf32>
      %235 = arith.subf %222, %234 : vector<16x64xf32>
      %cst_108 = arith.constant 9.99999974E-6 : f32
      %236 = vector.broadcast %cst_108 : f32 to vector<16x1xf32>
      %237 = arith.addf %233, %236 : vector<16x1xf32>
      %238 = math.rsqrt %237 : vector<16x1xf32>
      %239 = vector.broadcast %238 : vector<16x1xf32> to vector<16x64xf32>
      %240 = arith.mulf %235, %239 : vector<16x64xf32>
      %241 = vector.broadcast %0 : vector<1x64xf32> to vector<16x64xf32>
      %242 = arith.mulf %240, %241 : vector<16x64xf32>
      %243 = vector.broadcast %1 : vector<1x64xf32> to vector<16x64xf32>
      %244 = arith.addf %242, %243 : vector<16x64xf32>
      %245 = arith.truncf %244 : vector<16x64xf32> to vector<16x64xbf16>
      %c0_109 = arith.constant 0 : index
      %c0_110 = arith.constant 0 : index
      %246 = vector.load %arg8[%c0_109, %c0_110] : memref<64x128xbf16, #tpu.memory_space<vmem>>, vector<64x128xbf16>
      %cst_111 = arith.constant dense<0.000000e+00> : vector<16x128xf32>
      %247 = tpu.matmul %245, %246, %cst_111 {dimension_numbers = #tpu.dot_dimension_numbers<[1], [0], [0], [1], [0, 0, 1, 1], [], []>} : vector<16x64xbf16>, vector<64x128xbf16>, vector<16x128xf32> -> vector<16x128xf32>
      %c0_112 = arith.constant 0 : index
      %c0_113 = arith.constant 0 : index
      %248 = vector.load %arg9[%c0_112, %c0_113] : memref<1x128xf32, #tpu.memory_space<vmem>>, vector<1x128xf32>
      %249 = vector.broadcast %248 : vector<1x128xf32> to vector<16x128xf32>
      %250 = arith.addf %247, %249 : vector<16x128xf32>
      %251 = vector.extract_strided_slice %250 {offsets = [0, 0], sizes = [16, 64], strides = [1, 1]} : vector<16x128xf32> to vector<16x64xf32>
      %252 = arith.truncf %251 : vector<16x64xf32> to vector<16x64xbf16>
      %c0_114 = arith.constant 0 : index
      %c0_115 = arith.constant 0 : index
      %253 = vector.load %arg21[%c0_114, %c0_115] : memref<16x64xbf16, #tpu.memory_space<vmem>>, vector<16x64xbf16>
      tpu.vector_store %arg21[%c0_114, %c0_115], %252 {strides = array<i32>} : memref<16x64xbf16, #tpu.memory_space<vmem>>, vector<16x64xbf16>,
      %254 = vector.extract_strided_slice %250 {offsets = [0, 64], sizes = [16, 64], strides = [1, 1]} : vector<16x128xf32> to vector<16x64xf32>
      %255 = arith.truncf %254 : vector<16x64xf32> to vector<16x64xbf16>
      %c0_116 = arith.constant 0 : index
      %c0_117 = arith.constant 0 : index
      %256 = vector.load %arg22[%c0_116, %c0_117] : memref<16x64xbf16, #tpu.memory_space<vmem>>, vector<16x64xbf16>
      tpu.vector_store %arg22[%c0_116, %c0_117], %255 {strides = array<i32>} : memref<16x64xbf16, #tpu.memory_space<vmem>>, vector<16x64xbf16>,
    } else {
    }
    %c16_i32 = arith.constant 16 : i32
    %5 = arith.muli %arg1, %c16_i32 : i32
    %6 = tpu.assume_multiple %5, 16 : i32
    %c0_4 = arith.constant 0 : index
    %7 = arith.index_cast %6 : i32 to index
    %c0_5 = arith.constant 0 : index
    %8 = vector.load %arg2[%c0_4, %7, %c0_5] : memref<1x16x64xf32, #tpu.memory_space<vmem>>, vector<1x16x64xf32>
    %9 = vector.shape_cast %8 : vector<1x16x64xf32> to vector<16x64xf32>
    %cst = arith.constant dense<0.000000e+00> : vector<16xf32>
    %10 = vector.multi_reduction <add>, %9, %cst [1] : vector<16x64xf32> to vector<16xf32>
    %11 = vector.shape_cast %10 : vector<16xf32> to vector<16x1xf32>
    %cst_6 = arith.constant 6.400000e+01 : f32
    %12 = vector.broadcast %cst_6 : f32 to vector<16x1xf32>
    %13 = arith.divf %11, %12 : vector<16x1xf32>
    %14 = vector.broadcast %13 : vector<16x1xf32> to vector<16x64xf32>
    %15 = arith.subf %9, %14 : vector<16x64xf32>
    %16 = arith.mulf %15, %15 : vector<16x64xf32>
    %cst_7 = arith.constant dense<0.000000e+00> : vector<16xf32>
    %17 = vector.multi_reduction <add>, %16, %cst_7 [1] : vector<16x64xf32> to vector<16xf32>
    %18 = vector.shape_cast %17 : vector<16xf32> to vector<16x1xf32>
    %cst_8 = arith.constant 6.400000e+01 : f32
    %19 = vector.broadcast %cst_8 : f32 to vector<16x1xf32>
    %20 = arith.divf %18, %19 : vector<16x1xf32>
    %21 = vector.broadcast %13 : vector<16x1xf32> to vector<16x64xf32>
    %22 = arith.subf %9, %21 : vector<16x64xf32>
    %cst_9 = arith.constant 9.99999974E-6 : f32
    %23 = vector.broadcast %cst_9 : f32 to vector<16x1xf32>
    %24 = arith.addf %20, %23 : vector<16x1xf32>
    %25 = math.rsqrt %24 : vector<16x1xf32>
    %26 = vector.broadcast %25 : vector<16x1xf32> to vector<16x64xf32>
    %27 = arith.mulf %22, %26 : vector<16x64xf32>
    %28 = vector.broadcast %0 : vector<1x64xf32> to vector<16x64xf32>
    %29 = arith.mulf %27, %28 : vector<16x64xf32>
    %30 = vector.broadcast %1 : vector<1x64xf32> to vector<16x64xf32>
    %31 = arith.addf %29, %30 : vector<16x64xf32>
    %32 = arith.truncf %31 : vector<16x64xf32> to vector<16x64xbf16>
    %c0_10 = arith.constant 0 : index
    %c0_11 = arith.constant 0 : index
    %33 = vector.load %arg6[%c0_10, %c0_11] : memref<64x64xbf16, #tpu.memory_space<vmem>>, vector<64x64xbf16>
    %cst_12 = arith.constant dense<0.000000e+00> : vector<16x64xf32>
    %34 = tpu.matmul %32, %33, %cst_12 {dimension_numbers = #tpu.dot_dimension_numbers<[1], [0], [0], [1], [0, 0, 1, 1], [], []>} : vector<16x64xbf16>, vector<64x64xbf16>, vector<16x64xf32> -> vector<16x64xf32>
    %c0_13 = arith.constant 0 : index
    %c0_14 = arith.constant 0 : index
    %35 = vector.load %arg7[%c0_13, %c0_14] : memref<1x64xf32, #tpu.memory_space<vmem>>, vector<1x64xf32>
    %36 = vector.broadcast %35 : vector<1x64xf32> to vector<16x64xf32>
    %37 = arith.addf %34, %36 : vector<16x64xf32>
    %cst_15 = arith.constant 2.500000e-01 : f32
    %38 = vector.broadcast %cst_15 : f32 to vector<16x64xf32>
    %39 = arith.mulf %37, %38 : vector<16x64xf32>
    %c0_16 = arith.constant 0 : index
    %c0_17 = arith.constant 0 : index
    %c0_18 = arith.constant 0 : index
    %40 = vector.load %arg3[%c0_16, %c0_17, %c0_18] : memref<1x1x16xf32, #tpu.memory_space<vmem>>, vector<1x1x16xf32>
    %41 = vector.shape_cast %40 : vector<1x1x16xf32> to vector<1x16xf32>
    %cst_19 = arith.constant 5.000000e-01 : f32
    %42 = vector.broadcast %cst_19 : f32 to vector<1x16xf32>
    %43 = arith.cmpf ogt, %41, %42 : vector<1x16xf32>
    %cst_20 = arith.constant -1.000000e+30 : f32
    %cst_21 = arith.constant 0.000000e+00 : f32
    %44 = vector.broadcast %cst_20 : f32 to vector<1x16xf32>
    %45 = vector.broadcast %cst_21 : f32 to vector<1x16xf32>
    %46 = arith.select %43, %44, %45 : vector<1x16xi1>, vector<1x16xf32>
    %cst_22 = arith.constant 0.000000e+00 : f32
    %47 = vector.broadcast %cst_22 : f32 to vector<16x64xf32>
    %48 = vector.extract_strided_slice %39 {offsets = [0, 0], sizes = [16, 16], strides = [1, 1]} : vector<16x64xf32> to vector<16x16xf32>
    %49 = arith.truncf %48 : vector<16x16xf32> to vector<16x16xbf16>
    %c0_23 = arith.constant 0 : index
    %c0_24 = arith.constant 0 : index
    %50 = vector.load %arg21[%c0_23, %c0_24] : memref<16x64xbf16, #tpu.memory_space<vmem>>, vector<16x16xbf16>
    %cst_25 = arith.constant dense<0.000000e+00> : vector<16x16xf32>
    %51 = tpu.matmul %49, %50, %cst_25 {dimension_numbers = #tpu.dot_dimension_numbers<[1], [1], [0], [0], [0, 0, 1, 0], [], []>} : vector<16x16xbf16>, vector<16x16xbf16>, vector<16x16xf32> -> vector<16x16xf32>
    %52 = vector.broadcast %46 : vector<1x16xf32> to vector<16x16xf32>
    %53 = arith.addf %51, %52 : vector<16x16xf32>
    %cst_26 = arith.constant dense<0xFF800000> : vector<16xf32>
    %54 = vector.multi_reduction <maximumf>, %53, %cst_26 [1] : vector<16x16xf32> to vector<16xf32>
    %55 = vector.shape_cast %54 : vector<16xf32> to vector<16x1xf32>
    %56 = vector.broadcast %55 : vector<16x1xf32> to vector<16x16xf32>
    %57 = arith.subf %53, %56 : vector<16x16xf32>
    %58 = math.exp %57 : vector<16x16xf32>
    %cst_27 = arith.constant dense<0.000000e+00> : vector<16xf32>
    %59 = vector.multi_reduction <add>, %58, %cst_27 [1] : vector<16x16xf32> to vector<16xf32>
    %60 = vector.shape_cast %59 : vector<16xf32> to vector<16x1xf32>
    %61 = tpu.reciprocal %60 {approx = true} : vector<16x1xf32> -> vector<16x1xf32>
    %62 = vector.broadcast %61 : vector<16x1xf32> to vector<16x16xf32>
    %63 = arith.mulf %58, %62 : vector<16x16xf32>
    %64 = arith.truncf %63 : vector<16x16xf32> to vector<16x16xbf16>
    %c0_28 = arith.constant 0 : index
    %c0_29 = arith.constant 0 : index
    %65 = vector.load %arg22[%c0_28, %c0_29] : memref<16x64xbf16, #tpu.memory_space<vmem>>, vector<16x16xbf16>
    %cst_30 = arith.constant dense<0.000000e+00> : vector<16x16xf32>
    %66 = tpu.matmul %64, %65, %cst_30 {dimension_numbers = #tpu.dot_dimension_numbers<[1], [0], [0], [1], [0, 0, 1, 1], [], []>} : vector<16x16xbf16>, vector<16x16xbf16>, vector<16x16xf32> -> vector<16x16xf32>
    %67 = arith.truncf %66 : vector<16x16xf32> to vector<16x16xbf16>
    %c0_31 = arith.constant 0 : index
    %c0_32 = arith.constant 0 : index
    %68 = vector.load %arg10[%c0_31, %c0_32] : memref<64x64xbf16, #tpu.memory_space<vmem>>, vector<16x64xbf16>
    %cst_33 = arith.constant dense<0.000000e+00> : vector<16x64xf32>
    %69 = tpu.matmul %67, %68, %cst_33 {dimension_numbers = #tpu.dot_dimension_numbers<[1], [0], [0], [1], [0, 0, 1, 1], [], []>} : vector<16x16xbf16>, vector<16x64xbf16>, vector<16x64xf32> -> vector<16x64xf32>
    %70 = arith.addf %47, %69 : vector<16x64xf32>
    %71 = vector.extract_strided_slice %39 {offsets = [0, 16], sizes = [16, 16], strides = [1, 1]} : vector<16x64xf32> to vector<16x16xf32>
    %72 = arith.truncf %71 : vector<16x16xf32> to vector<16x16xbf16>
    %c0_34 = arith.constant 0 : index
    %c16 = arith.constant 16 : index
    %73 = vector.load %arg21[%c0_34, %c16] : memref<16x64xbf16, #tpu.memory_space<vmem>>, vector<16x16xbf16>
    %cst_35 = arith.constant dense<0.000000e+00> : vector<16x16xf32>
    %74 = tpu.matmul %72, %73, %cst_35 {dimension_numbers = #tpu.dot_dimension_numbers<[1], [1], [0], [0], [0, 0, 1, 0], [], []>} : vector<16x16xbf16>, vector<16x16xbf16>, vector<16x16xf32> -> vector<16x16xf32>
    %75 = vector.broadcast %46 : vector<1x16xf32> to vector<16x16xf32>
    %76 = arith.addf %74, %75 : vector<16x16xf32>
    %cst_36 = arith.constant dense<0xFF800000> : vector<16xf32>
    %77 = vector.multi_reduction <maximumf>, %76, %cst_36 [1] : vector<16x16xf32> to vector<16xf32>
    %78 = vector.shape_cast %77 : vector<16xf32> to vector<16x1xf32>
    %79 = vector.broadcast %78 : vector<16x1xf32> to vector<16x16xf32>
    %80 = arith.subf %76, %79 : vector<16x16xf32>
    %81 = math.exp %80 : vector<16x16xf32>
    %cst_37 = arith.constant dense<0.000000e+00> : vector<16xf32>
    %82 = vector.multi_reduction <add>, %81, %cst_37 [1] : vector<16x16xf32> to vector<16xf32>
    %83 = vector.shape_cast %82 : vector<16xf32> to vector<16x1xf32>
    %84 = tpu.reciprocal %83 {approx = true} : vector<16x1xf32> -> vector<16x1xf32>
    %85 = vector.broadcast %84 : vector<16x1xf32> to vector<16x16xf32>
    %86 = arith.mulf %81, %85 : vector<16x16xf32>
    %87 = arith.truncf %86 : vector<16x16xf32> to vector<16x16xbf16>
    %c0_38 = arith.constant 0 : index
    %c16_39 = arith.constant 16 : index
    %88 = vector.load %arg22[%c0_38, %c16_39] : memref<16x64xbf16, #tpu.memory_space<vmem>>, vector<16x16xbf16>
    %cst_40 = arith.constant dense<0.000000e+00> : vector<16x16xf32>
    %89 = tpu.matmul %87, %88, %cst_40 {dimension_numbers = #tpu.dot_dimension_numbers<[1], [0], [0], [1], [0, 0, 1, 1], [], []>} : vector<16x16xbf16>, vector<16x16xbf16>, vector<16x16xf32> -> vector<16x16xf32>
    %90 = arith.truncf %89 : vector<16x16xf32> to vector<16x16xbf16>
    %c16_41 = arith.constant 16 : index
    %c0_42 = arith.constant 0 : index
    %91 = vector.load %arg10[%c16_41, %c0_42] : memref<64x64xbf16, #tpu.memory_space<vmem>>, vector<16x64xbf16>
    %cst_43 = arith.constant dense<0.000000e+00> : vector<16x64xf32>
    %92 = tpu.matmul %90, %91, %cst_43 {dimension_numbers = #tpu.dot_dimension_numbers<[1], [0], [0], [1], [0, 0, 1, 1], [], []>} : vector<16x16xbf16>, vector<16x64xbf16>, vector<16x64xf32> -> vector<16x64xf32>
    %93 = arith.addf %70, %92 : vector<16x64xf32>
    %94 = vector.extract_strided_slice %39 {offsets = [0, 32], sizes = [16, 16], strides = [1, 1]} : vector<16x64xf32> to vector<16x16xf32>
    %95 = arith.truncf %94 : vector<16x16xf32> to vector<16x16xbf16>
    %c0_44 = arith.constant 0 : index
    %c32 = arith.constant 32 : index
    %96 = vector.load %arg21[%c0_44, %c32] : memref<16x64xbf16, #tpu.memory_space<vmem>>, vector<16x16xbf16>
    %cst_45 = arith.constant dense<0.000000e+00> : vector<16x16xf32>
    %97 = tpu.matmul %95, %96, %cst_45 {dimension_numbers = #tpu.dot_dimension_numbers<[1], [1], [0], [0], [0, 0, 1, 0], [], []>} : vector<16x16xbf16>, vector<16x16xbf16>, vector<16x16xf32> -> vector<16x16xf32>
    %98 = vector.broadcast %46 : vector<1x16xf32> to vector<16x16xf32>
    %99 = arith.addf %97, %98 : vector<16x16xf32>
    %cst_46 = arith.constant dense<0xFF800000> : vector<16xf32>
    %100 = vector.multi_reduction <maximumf>, %99, %cst_46 [1] : vector<16x16xf32> to vector<16xf32>
    %101 = vector.shape_cast %100 : vector<16xf32> to vector<16x1xf32>
    %102 = vector.broadcast %101 : vector<16x1xf32> to vector<16x16xf32>
    %103 = arith.subf %99, %102 : vector<16x16xf32>
    %104 = math.exp %103 : vector<16x16xf32>
    %cst_47 = arith.constant dense<0.000000e+00> : vector<16xf32>
    %105 = vector.multi_reduction <add>, %104, %cst_47 [1] : vector<16x16xf32> to vector<16xf32>
    %106 = vector.shape_cast %105 : vector<16xf32> to vector<16x1xf32>
    %107 = tpu.reciprocal %106 {approx = true} : vector<16x1xf32> -> vector<16x1xf32>
    %108 = vector.broadcast %107 : vector<16x1xf32> to vector<16x16xf32>
    %109 = arith.mulf %104, %108 : vector<16x16xf32>
    %110 = arith.truncf %109 : vector<16x16xf32> to vector<16x16xbf16>
    %c0_48 = arith.constant 0 : index
    %c32_49 = arith.constant 32 : index
    %111 = vector.load %arg22[%c0_48, %c32_49] : memref<16x64xbf16, #tpu.memory_space<vmem>>, vector<16x16xbf16>
    %cst_50 = arith.constant dense<0.000000e+00> : vector<16x16xf32>
    %112 = tpu.matmul %110, %111, %cst_50 {dimension_numbers = #tpu.dot_dimension_numbers<[1], [0], [0], [1], [0, 0, 1, 1], [], []>} : vector<16x16xbf16>, vector<16x16xbf16>, vector<16x16xf32> -> vector<16x16xf32>
    %113 = arith.truncf %112 : vector<16x16xf32> to vector<16x16xbf16>
    %c32_51 = arith.constant 32 : index
    %c0_52 = arith.constant 0 : index
    %114 = vector.load %arg10[%c32_51, %c0_52] : memref<64x64xbf16, #tpu.memory_space<vmem>>, vector<16x64xbf16>
    %cst_53 = arith.constant dense<0.000000e+00> : vector<16x64xf32>
    %115 = tpu.matmul %113, %114, %cst_53 {dimension_numbers = #tpu.dot_dimension_numbers<[1], [0], [0], [1], [0, 0, 1, 1], [], []>} : vector<16x16xbf16>, vector<16x64xbf16>, vector<16x64xf32> -> vector<16x64xf32>
    %116 = arith.addf %93, %115 : vector<16x64xf32>
    %117 = vector.extract_strided_slice %39 {offsets = [0, 48], sizes = [16, 16], strides = [1, 1]} : vector<16x64xf32> to vector<16x16xf32>
    %118 = arith.truncf %117 : vector<16x16xf32> to vector<16x16xbf16>
    %c0_54 = arith.constant 0 : index
    %c48 = arith.constant 48 : index
    %119 = vector.load %arg21[%c0_54, %c48] : memref<16x64xbf16, #tpu.memory_space<vmem>>, vector<16x16xbf16>
    %cst_55 = arith.constant dense<0.000000e+00> : vector<16x16xf32>
    %120 = tpu.matmul %118, %119, %cst_55 {dimension_numbers = #tpu.dot_dimension_numbers<[1], [1], [0], [0], [0, 0, 1, 0], [], []>} : vector<16x16xbf16>, vector<16x16xbf16>, vector<16x16xf32> -> vector<16x16xf32>
    %121 = vector.broadcast %46 : vector<1x16xf32> to vector<16x16xf32>
    %122 = arith.addf %120, %121 : vector<16x16xf32>
    %cst_56 = arith.constant dense<0xFF800000> : vector<16xf32>
    %123 = vector.multi_reduction <maximumf>, %122, %cst_56 [1] : vector<16x16xf32> to vector<16xf32>
    %124 = vector.shape_cast %123 : vector<16xf32> to vector<16x1xf32>
    %125 = vector.broadcast %124 : vector<16x1xf32> to vector<16x16xf32>
    %126 = arith.subf %122, %125 : vector<16x16xf32>
    %127 = math.exp %126 : vector<16x16xf32>
    %cst_57 = arith.constant dense<0.000000e+00> : vector<16xf32>
    %128 = vector.multi_reduction <add>, %127, %cst_57 [1] : vector<16x16xf32> to vector<16xf32>
    %129 = vector.shape_cast %128 : vector<16xf32> to vector<16x1xf32>
    %130 = tpu.reciprocal %129 {approx = true} : vector<16x1xf32> -> vector<16x1xf32>
    %131 = vector.broadcast %130 : vector<16x1xf32> to vector<16x16xf32>
    %132 = arith.mulf %127, %131 : vector<16x16xf32>
    %133 = arith.truncf %132 : vector<16x16xf32> to vector<16x16xbf16>
    %c0_58 = arith.constant 0 : index
    %c48_59 = arith.constant 48 : index
    %134 = vector.load %arg22[%c0_58, %c48_59] : memref<16x64xbf16, #tpu.memory_space<vmem>>, vector<16x16xbf16>
    %cst_60 = arith.constant dense<0.000000e+00> : vector<16x16xf32>
    %135 = tpu.matmul %133, %134, %cst_60 {dimension_numbers = #tpu.dot_dimension_numbers<[1], [0], [0], [1], [0, 0, 1, 1], [], []>} : vector<16x16xbf16>, vector<16x16xbf16>, vector<16x16xf32> -> vector<16x16xf32>
    %136 = arith.truncf %135 : vector<16x16xf32> to vector<16x16xbf16>
    %c48_61 = arith.constant 48 : index
    %c0_62 = arith.constant 0 : index
    %137 = vector.load %arg10[%c48_61, %c0_62] : memref<64x64xbf16, #tpu.memory_space<vmem>>, vector<16x64xbf16>
    %cst_63 = arith.constant dense<0.000000e+00> : vector<16x64xf32>
    %138 = tpu.matmul %136, %137, %cst_63 {dimension_numbers = #tpu.dot_dimension_numbers<[1], [0], [0], [1], [0, 0, 1, 1], [], []>} : vector<16x16xbf16>, vector<16x64xbf16>, vector<16x64xf32> -> vector<16x64xf32>
    %139 = arith.addf %116, %138 : vector<16x64xf32>
    %c0_64 = arith.constant 0 : index
    %c0_65 = arith.constant 0 : index
    %140 = vector.load %arg11[%c0_64, %c0_65] : memref<1x64xf32, #tpu.memory_space<vmem>>, vector<1x64xf32>
    %141 = vector.broadcast %140 : vector<1x64xf32> to vector<16x64xf32>
    %142 = arith.addf %139, %141 : vector<16x64xf32>
    %143 = arith.addf %31, %142 : vector<16x64xf32>
    %c0_66 = arith.constant 0 : index
    %c0_67 = arith.constant 0 : index
    %144 = vector.load %arg12[%c0_66, %c0_67] : memref<1x64xf32, #tpu.memory_space<vmem>>, vector<1x64xf32>
    %c0_68 = arith.constant 0 : index
    %c0_69 = arith.constant 0 : index
    %145 = vector.load %arg13[%c0_68, %c0_69] : memref<1x64xf32, #tpu.memory_space<vmem>>, vector<1x64xf32>
    %cst_70 = arith.constant dense<0.000000e+00> : vector<16xf32>
    %146 = vector.multi_reduction <add>, %143, %cst_70 [1] : vector<16x64xf32> to vector<16xf32>
    %147 = vector.shape_cast %146 : vector<16xf32> to vector<16x1xf32>
    %cst_71 = arith.constant 6.400000e+01 : f32
    %148 = vector.broadcast %cst_71 : f32 to vector<16x1xf32>
    %149 = arith.divf %147, %148 : vector<16x1xf32>
    %150 = vector.broadcast %149 : vector<16x1xf32> to vector<16x64xf32>
    %151 = arith.subf %143, %150 : vector<16x64xf32>
    %152 = arith.mulf %151, %151 : vector<16x64xf32>
    %cst_72 = arith.constant dense<0.000000e+00> : vector<16xf32>
    %153 = vector.multi_reduction <add>, %152, %cst_72 [1] : vector<16x64xf32> to vector<16xf32>
    %154 = vector.shape_cast %153 : vector<16xf32> to vector<16x1xf32>
    %cst_73 = arith.constant 6.400000e+01 : f32
    %155 = vector.broadcast %cst_73 : f32 to vector<16x1xf32>
    %156 = arith.divf %154, %155 : vector<16x1xf32>
    %157 = vector.broadcast %149 : vector<16x1xf32> to vector<16x64xf32>
    %158 = arith.subf %143, %157 : vector<16x64xf32>
    %cst_74 = arith.constant 9.99999974E-6 : f32
    %159 = vector.broadcast %cst_74 : f32 to vector<16x1xf32>
    %160 = arith.addf %156, %159 : vector<16x1xf32>
    %161 = math.rsqrt %160 : vector<16x1xf32>
    %162 = vector.broadcast %161 : vector<16x1xf32> to vector<16x64xf32>
    %163 = arith.mulf %158, %162 : vector<16x64xf32>
    %164 = vector.broadcast %144 : vector<1x64xf32> to vector<16x64xf32>
    %165 = arith.mulf %163, %164 : vector<16x64xf32>
    %166 = vector.broadcast %145 : vector<1x64xf32> to vector<16x64xf32>
    %167 = arith.addf %165, %166 : vector<16x64xf32>
    %168 = arith.truncf %167 : vector<16x64xf32> to vector<16x64xbf16>
    %c0_75 = arith.constant 0 : index
    %c0_76 = arith.constant 0 : index
    %169 = vector.load %arg14[%c0_75, %c0_76] : memref<64x128xbf16, #tpu.memory_space<vmem>>, vector<64x128xbf16>
    %cst_77 = arith.constant dense<0.000000e+00> : vector<16x128xf32>
    %170 = tpu.matmul %168, %169, %cst_77 {dimension_numbers = #tpu.dot_dimension_numbers<[1], [0], [0], [1], [0, 0, 1, 1], [], []>} : vector<16x64xbf16>, vector<64x128xbf16>, vector<16x128xf32> -> vector<16x128xf32>
    %c0_78 = arith.constant 0 : index
    %c0_79 = arith.constant 0 : index
    %171 = vector.load %arg15[%c0_78, %c0_79] : memref<1x128xf32, #tpu.memory_space<vmem>>, vector<1x128xf32>
    %172 = vector.broadcast %171 : vector<1x128xf32> to vector<16x128xf32>
    %173 = arith.addf %170, %172 : vector<16x128xf32>
    %cst_80 = arith.constant 5.000000e-01 : f32
    %174 = vector.broadcast %cst_80 : f32 to vector<16x128xf32>
    %175 = arith.mulf %174, %173 : vector<16x128xf32>
    %cst_81 = arith.constant 4.471500e-02 : f32
    %176 = vector.broadcast %cst_81 : f32 to vector<16x128xf32>
    %177 = arith.mulf %176, %173 : vector<16x128xf32>
    %178 = arith.mulf %177, %173 : vector<16x128xf32>
    %179 = arith.mulf %178, %173 : vector<16x128xf32>
    %180 = arith.addf %173, %179 : vector<16x128xf32>
    %cst_82 = arith.constant 0.797884583 : f32
    %181 = vector.broadcast %cst_82 : f32 to vector<16x128xf32>
    %182 = arith.mulf %181, %180 : vector<16x128xf32>
    %183 = math.tanh %182 : vector<16x128xf32>
    %cst_83 = arith.constant 1.000000e+00 : f32
    %184 = vector.broadcast %cst_83 : f32 to vector<16x128xf32>
    %185 = arith.addf %184, %183 : vector<16x128xf32>
    %186 = arith.mulf %175, %185 : vector<16x128xf32>
    %187 = arith.truncf %186 : vector<16x128xf32> to vector<16x128xbf16>
    %c0_84 = arith.constant 0 : index
    %c0_85 = arith.constant 0 : index
    %188 = vector.load %arg16[%c0_84, %c0_85] : memref<128x64xbf16, #tpu.memory_space<vmem>>, vector<128x64xbf16>
    %cst_86 = arith.constant dense<0.000000e+00> : vector<16x64xf32>
    %189 = tpu.matmul %187, %188, %cst_86 {dimension_numbers = #tpu.dot_dimension_numbers<[1], [0], [0], [1], [0, 0, 1, 1], [], []>} : vector<16x128xbf16>, vector<128x64xbf16>, vector<16x64xf32> -> vector<16x64xf32>
    %c0_87 = arith.constant 0 : index
    %c0_88 = arith.constant 0 : index
    %190 = vector.load %arg17[%c0_87, %c0_88] : memref<1x64xf32, #tpu.memory_space<vmem>>, vector<1x64xf32>
    %191 = vector.broadcast %190 : vector<1x64xf32> to vector<16x64xf32>
    %192 = arith.addf %189, %191 : vector<16x64xf32>
    %193 = arith.addf %167, %192 : vector<16x64xf32>
    %c0_89 = arith.constant 0 : index
    %c0_90 = arith.constant 0 : index
    %194 = vector.load %arg18[%c0_89, %c0_90] : memref<1x64xf32, #tpu.memory_space<vmem>>, vector<1x64xf32>
    %c0_91 = arith.constant 0 : index
    %c0_92 = arith.constant 0 : index
    %195 = vector.load %arg19[%c0_91, %c0_92] : memref<1x64xf32, #tpu.memory_space<vmem>>, vector<1x64xf32>
    %cst_93 = arith.constant dense<0.000000e+00> : vector<16xf32>
    %196 = vector.multi_reduction <add>, %193, %cst_93 [1] : vector<16x64xf32> to vector<16xf32>
    %197 = vector.shape_cast %196 : vector<16xf32> to vector<16x1xf32>
    %cst_94 = arith.constant 6.400000e+01 : f32
    %198 = vector.broadcast %cst_94 : f32 to vector<16x1xf32>
    %199 = arith.divf %197, %198 : vector<16x1xf32>
    %200 = vector.broadcast %199 : vector<16x1xf32> to vector<16x64xf32>
    %201 = arith.subf %193, %200 : vector<16x64xf32>
    %202 = arith.mulf %201, %201 : vector<16x64xf32>
    %cst_95 = arith.constant dense<0.000000e+00> : vector<16xf32>
    %203 = vector.multi_reduction <add>, %202, %cst_95 [1] : vector<16x64xf32> to vector<16xf32>
    %204 = vector.shape_cast %203 : vector<16xf32> to vector<16x1xf32>
    %cst_96 = arith.constant 6.400000e+01 : f32
    %205 = vector.broadcast %cst_96 : f32 to vector<16x1xf32>
    %206 = arith.divf %204, %205 : vector<16x1xf32>
    %207 = vector.broadcast %199 : vector<16x1xf32> to vector<16x64xf32>
    %208 = arith.subf %193, %207 : vector<16x64xf32>
    %cst_97 = arith.constant 9.99999974E-6 : f32
    %209 = vector.broadcast %cst_97 : f32 to vector<16x1xf32>
    %210 = arith.addf %206, %209 : vector<16x1xf32>
    %211 = math.rsqrt %210 : vector<16x1xf32>
    %212 = vector.broadcast %211 : vector<16x1xf32> to vector<16x64xf32>
    %213 = arith.mulf %208, %212 : vector<16x64xf32>
    %214 = vector.broadcast %194 : vector<1x64xf32> to vector<16x64xf32>
    %215 = arith.mulf %213, %214 : vector<16x64xf32>
    %216 = vector.broadcast %195 : vector<1x64xf32> to vector<16x64xf32>
    %217 = arith.addf %215, %216 : vector<16x64xf32>
    %c0_98 = arith.constant 0 : index
    %c0_99 = arith.constant 0 : index
    %c0_100 = arith.constant 0 : index
    %218 = vector.load %arg20[%c0_98, %c0_99, %c0_100] : memref<1x16x64xf32, #tpu.memory_space<vmem>>, vector<1x16x64xf32>
    %219 = vector.shape_cast %218 : vector<1x16x64xf32> to vector<16x64xf32>
    %220 = vector.shape_cast %217 : vector<16x64xf32> to vector<1x16x64xf32>
    tpu.vector_store %arg20[%c0_98, %c0_99, %c0_100], %220 {strides = array<i32>} : memref<1x16x64xf32, #tpu.memory_space<vmem>>, vector<1x16x64xf32>,
    return
  }
  func.func @transform_0(%arg0: i32, %arg1: i32) -> (i32, i32, i32) {
    %c0_i32 = arith.constant 0 : i32
    %c0_i32_0 = arith.constant 0 : i32
    %c0_i32_1 = arith.constant 0 : i32
    return %arg0, %c0_i32, %c0_i32_0 : i32, i32, i32
  }
  func.func @transform_1(%arg0: i32, %arg1: i32) -> (i32, i32, i32) {
    %c0_i32 = arith.constant 0 : i32
    %c0_i32_0 = arith.constant 0 : i32
    %c0_i32_1 = arith.constant 0 : i32
    return %arg0, %c0_i32, %c0_i32_0 : i32, i32, i32
  }
  func.func @transform_2(%arg0: i32, %arg1: i32) -> (i32, i32) {
    %c0_i32 = arith.constant 0 : i32
    %c0_i32_0 = arith.constant 0 : i32
    %c0_i32_1 = arith.constant 0 : i32
    return %c0_i32, %c0_i32_0 : i32, i32
  }
  func.func @transform_3(%arg0: i32, %arg1: i32) -> (i32, i32) {
    %c0_i32 = arith.constant 0 : i32
    %c0_i32_0 = arith.constant 0 : i32
    %c0_i32_1 = arith.constant 0 : i32
    return %c0_i32, %c0_i32_0 : i32, i32
  }
  func.func @transform_4(%arg0: i32, %arg1: i32) -> (i32, i32) {
    %c0_i32 = arith.constant 0 : i32
    %c0_i32_0 = arith.constant 0 : i32
    %c0_i32_1 = arith.constant 0 : i32
    return %c0_i32, %c0_i32_0 : i32, i32
  }
  func.func @transform_5(%arg0: i32, %arg1: i32) -> (i32, i32) {
    %c0_i32 = arith.constant 0 : i32
    %c0_i32_0 = arith.constant 0 : i32
    %c0_i32_1 = arith.constant 0 : i32
    return %c0_i32, %c0_i32_0 : i32, i32
  }
  func.func @transform_6(%arg0: i32, %arg1: i32) -> (i32, i32) {
    %c0_i32 = arith.constant 0 : i32
    %c0_i32_0 = arith.constant 0 : i32
    %c0_i32_1 = arith.constant 0 : i32
    return %c0_i32, %c0_i32_0 : i32, i32
  }
  func.func @transform_7(%arg0: i32, %arg1: i32) -> (i32, i32) {
    %c0_i32 = arith.constant 0 : i32
    %c0_i32_0 = arith.constant 0 : i32
    %c0_i32_1 = arith.constant 0 : i32
    return %c0_i32, %c0_i32_0 : i32, i32
  }
  func.func @transform_8(%arg0: i32, %arg1: i32) -> (i32, i32) {
    %c0_i32 = arith.constant 0 : i32
    %c0_i32_0 = arith.constant 0 : i32
    %c0_i32_1 = arith.constant 0 : i32
    return %c0_i32, %c0_i32_0 : i32, i32
  }
  func.func @transform_9(%arg0: i32, %arg1: i32) -> (i32, i32) {
    %c0_i32 = arith.constant 0 : i32
    %c0_i32_0 = arith.constant 0 : i32
    %c0_i32_1 = arith.constant 0 : i32
    return %c0_i32, %c0_i32_0 : i32, i32
  }
  func.func @transform_10(%arg0: i32, %arg1: i32) -> (i32, i32) {
    %c0_i32 = arith.constant 0 : i32
    %c0_i32_0 = arith.constant 0 : i32
    %c0_i32_1 = arith.constant 0 : i32
    return %c0_i32, %c0_i32_0 : i32, i32
  }
  func.func @transform_11(%arg0: i32, %arg1: i32) -> (i32, i32) {
    %c0_i32 = arith.constant 0 : i32
    %c0_i32_0 = arith.constant 0 : i32
    %c0_i32_1 = arith.constant 0 : i32
    return %c0_i32, %c0_i32_0 : i32, i32
  }
  func.func @transform_12(%arg0: i32, %arg1: i32) -> (i32, i32) {
    %c0_i32 = arith.constant 0 : i32
    %c0_i32_0 = arith.constant 0 : i32
    %c0_i32_1 = arith.constant 0 : i32
    return %c0_i32, %c0_i32_0 : i32, i32
  }
  func.func @transform_13(%arg0: i32, %arg1: i32) -> (i32, i32) {
    %c0_i32 = arith.constant 0 : i32
    %c0_i32_0 = arith.constant 0 : i32
    %c0_i32_1 = arith.constant 0 : i32
    return %c0_i32, %c0_i32_0 : i32, i32
  }
  func.func @transform_14(%arg0: i32, %arg1: i32) -> (i32, i32) {
    %c0_i32 = arith.constant 0 : i32
    %c0_i32_0 = arith.constant 0 : i32
    %c0_i32_1 = arith.constant 0 : i32
    return %c0_i32, %c0_i32_0 : i32, i32
  }
  func.func @transform_15(%arg0: i32, %arg1: i32) -> (i32, i32) {
    %c0_i32 = arith.constant 0 : i32
    %c0_i32_0 = arith.constant 0 : i32
    %c0_i32_1 = arith.constant 0 : i32
    return %c0_i32, %c0_i32_0 : i32, i32
  }
  func.func @transform_16(%arg0: i32, %arg1: i32) -> (i32, i32) {
    %c0_i32 = arith.constant 0 : i32
    %c0_i32_0 = arith.constant 0 : i32
    %c0_i32_1 = arith.constant 0 : i32
    return %c0_i32, %c0_i32_0 : i32, i32
  }
  func.func @transform_17(%arg0: i32, %arg1: i32) -> (i32, i32) {
    %c0_i32 = arith.constant 0 : i32
    %c0_i32_0 = arith.constant 0 : i32
    %c0_i32_1 = arith.constant 0 : i32
    return %c0_i32, %c0_i32_0 : i32, i32
  }
  func.func @transform_18(%arg0: i32, %arg1: i32) -> (i32, i32, i32) {
    %c0_i32 = arith.constant 0 : i32
    %c0_i32_0 = arith.constant 0 : i32
    return %arg0, %arg1, %c0_i32 : i32, i32, i32
  }
}

module attributes {stable_mosaic.version = 11 : i64} {
  func.func @_encoder_layer_kernel(%arg0: i32, %arg1: i32, %arg2: memref<1x16x64xf32, #tpu.memory_space<vmem>>, %arg3: memref<1x1x16xf32, #tpu.memory_space<vmem>>, %arg4: memref<1x64xf32, #tpu.memory_space<vmem>>, %arg5: memref<1x64xf32, #tpu.memory_space<vmem>>, %arg6: memref<64x64xbf16, #tpu.memory_space<vmem>>, %arg7: memref<1x64xf32, #tpu.memory_space<vmem>>, %arg8: memref<64x128xbf16, #tpu.memory_space<vmem>>, %arg9: memref<1x128xf32, #tpu.memory_space<vmem>>, %arg10: memref<64x64xbf16, #tpu.memory_space<vmem>>, %arg11: memref<1x64xf32, #tpu.memory_space<vmem>>, %arg12: memref<1x64xf32, #tpu.memory_space<vmem>>, %arg13: memref<1x64xf32, #tpu.memory_space<vmem>>, %arg14: memref<64x128xbf16, #tpu.memory_space<vmem>>, %arg15: memref<1x128xf32, #tpu.memory_space<vmem>>, %arg16: memref<128x64xbf16, #tpu.memory_space<vmem>>, %arg17: memref<1x64xf32, #tpu.memory_space<vmem>>, %arg18: memref<1x64xf32, #tpu.memory_space<vmem>>, %arg19: memref<1x64xf32, #tpu.memory_space<vmem>>, %arg20: memref<1x16x64xf32, #tpu.memory_space<vmem>>, %arg21: memref<16x64xbf16, #tpu.memory_space<vmem>>, %arg22: memref<16x64xbf16, #tpu.memory_space<vmem>>) attributes {dimension_semantics = [#tpu.dimension_semantics<parallel>, #tpu.dimension_semantics<arbitrary>], iteration_bounds = array<i64: 2, 1>, scalar_prefetch = 0 : i64, scratch_operands = 2 : i64, tpu.core_type = #tpu.core_type<tc>, window_params = [{transform_indices = @transform_0, window_bounds = array<i64: 1, 16, 64>}, {transform_indices = @transform_1, window_bounds = array<i64: 1, 1, 16>}, {pipeline_mode = #tpu.pipeline_mode<synchronous>, transform_indices = @transform_2, window_bounds = array<i64: 1, 64>}, {pipeline_mode = #tpu.pipeline_mode<synchronous>, transform_indices = @transform_3, window_bounds = array<i64: 1, 64>}, {pipeline_mode = #tpu.pipeline_mode<synchronous>, transform_indices = @transform_4, window_bounds = array<i64: 64, 64>}, {pipeline_mode = #tpu.pipeline_mode<synchronous>, transform_indices = @transform_5, window_bounds = array<i64: 1, 64>}, {pipeline_mode = #tpu.pipeline_mode<synchronous>, transform_indices = @transform_6, window_bounds = array<i64: 64, 128>}, {pipeline_mode = #tpu.pipeline_mode<synchronous>, transform_indices = @transform_7, window_bounds = array<i64: 1, 128>}, {pipeline_mode = #tpu.pipeline_mode<synchronous>, transform_indices = @transform_8, window_bounds = array<i64: 64, 64>}, {pipeline_mode = #tpu.pipeline_mode<synchronous>, transform_indices = @transform_9, window_bounds = array<i64: 1, 64>}, {pipeline_mode = #tpu.pipeline_mode<synchronous>, transform_indices = @transform_10, window_bounds = array<i64: 1, 64>}, {pipeline_mode = #tpu.pipeline_mode<synchronous>, transform_indices = @transform_11, window_bounds = array<i64: 1, 64>}, {pipeline_mode = #tpu.pipeline_mode<synchronous>, transform_indices = @transform_12, window_bounds = array<i64: 64, 128>}, {pipeline_mode = #tpu.pipeline_mode<synchronous>, transform_indices = @transform_13, window_bounds = array<i64: 1, 128>}, {pipeline_mode = #tpu.pipeline_mode<synchronous>, transform_indices = @transform_14, window_bounds = array<i64: 128, 64>}, {pipeline_mode = #tpu.pipeline_mode<synchronous>, transform_indices = @transform_15, window_bounds = array<i64: 1, 64>}, {pipeline_mode = #tpu.pipeline_mode<synchronous>, transform_indices = @transform_16, window_bounds = array<i64: 1, 64>}, {pipeline_mode = #tpu.pipeline_mode<synchronous>, transform_indices = @transform_17, window_bounds = array<i64: 1, 64>}, {transform_indices = @transform_18, window_bounds = array<i64: 1, 16, 64>}]} {
    %c0 = arith.constant 0 : index
    %c0_0 = arith.constant 0 : index
    %0 = vector.load %arg4[%c0, %c0_0] : memref<1x64xf32, #tpu.memory_space<vmem>>, vector<1x64xf32>
    %c0_1 = arith.constant 0 : index
    %c0_2 = arith.constant 0 : index
    %1 = vector.load %arg5[%c0_1, %c0_2] : memref<1x64xf32, #tpu.memory_space<vmem>>, vector<1x64xf32>
    %c0_i32 = arith.constant 0 : i32
    %2 = arith.cmpi eq, %arg1, %c0_i32 : i32
    %3 = arith.extui %2 : i1 to i32
    %c0_i32_3 = arith.constant 0 : i32
    %4 = arith.cmpi ne, %3, %c0_i32_3 : i32
    scf.if %4 {
      %c0_101 = arith.constant 0 : index
      %c0_102 = arith.constant 0 : index
      %c0_103 = arith.constant 0 : index
      %221 = vector.load %arg2[%c0_101, %c0_102, %c0_103] : memref<1x16x64xf32, #tpu.memory_space<vmem>>, vector<1x16x64xf32>
      %222 = vector.shape_cast %221 : vector<1x16x64xf32> to vector<16x64xf32>
      %cst_104 = arith.constant dense<0.000000e+00> : vector<16xf32>
      %223 = vector.multi_reduction <add>, %222, %cst_104 [1] : vector<16x64xf32> to vector<16xf32>
      %224 = vector.shape_cast %223 : vector<16xf32> to vector<16x1xf32>
      %cst_105 = arith.constant 6.400000e+01 : f32
      %225 = vector.broadcast %cst_105 : f32 to vector<16x1xf32>
      %226 = arith.divf %224, %225 : vector<16x1xf32>
      %227 = vector.broadcast %226 : vector<16x1xf32> to vector<16x64xf32>
      %228 = arith.subf %222, %227 : vector<16x64xf32>
      %229 = arith.mulf %228, %228 : vector<16x64xf32>
      %cst_106 = arith.constant dense<0.000000e+00> : vector<16xf32>
      %230 = vector.multi_reduction <add>, %229, %cst_106 [1] : vector<16x64xf32> to vector<16xf32>
      %231 = vector.shape_cast %230 : vector<16xf32> to vector<16x1xf32>
      %cst_107 = arith.constant 6.400000e+01 : f32
      %232 = vector.broadcast %cst_107 : f32 to vector<16x1xf32>
      %233 = arith.divf %231, %232 : vector<16x1xf32>
      %234 = vector.broadcast %226 : vector<16x1xf32> to vector<16x64xf32>
      %235 = arith.subf %222, %234 : vector<16x64xf32>
      %cst_108 = arith.constant 9.99999974E-6 : f32
      %236 = vector.broadcast %cst_108 : f32 to vector<16x1xf32>
      %237 = arith.addf %233, %236 : vector<16x1xf32>
      %238 = math.rsqrt %237 : vector<16x1xf32>
      %239 = vector.broadcast %238 : vector<16x1xf32> to vector<16x64xf32>
      %240 = arith.mulf %235, %239 : vector<16x64xf32>
      %241 = vector.broadcast %0 : vector<1x64xf32> to vector<16x64xf32>
      %242 = arith.mulf %240, %241 : vector<16x64xf32>
      %243 = vector.broadcast %1 : vector<1x64xf32> to vector<16x64xf32>
      %244 = arith.addf %242, %243 : vector<16x64xf32>
      %245 = arith.truncf %244 : vector<16x64xf32> to vector<16x64xbf16>
      %c0_109 = arith.constant 0 : index
      %c0_110 = arith.constant 0 : index
      %246 = vector.load %arg8[%c0_109, %c0_110] : memref<64x128xbf16, #tpu.memory_space<vmem>>, vector<64x128xbf16>
      %cst_111 = arith.constant dense<0.000000e+00> : vector<16x128xf32>
      %247 = tpu.matmul %245, %246, %cst_111 {dimension_numbers = #tpu.dot_dimension_numbers<[1], [0], [0], [1], [0, 0, 1, 1], [], []>} : vector<16x64xbf16>, vector<64x128xbf16>, vector<16x128xf32> -> vector<16x128xf32>
      %c0_112 = arith.constant 0 : index
      %c0_113 = arith.constant 0 : index
      %248 = vector.load %arg9[%c0_112, %c0_113] : memref<1x128xf32, #tpu.memory_space<vmem>>, vector<1x128xf32>
      %249 = vector.broadcast %248 : vector<1x128xf32> to vector<16x128xf32>
      %250 = arith.addf %247, %249 : vector<16x128xf32>
      %251 = vector.extract_strided_slice %250 {offsets = [0, 0], sizes = [16, 64], strides = [1, 1]} : vector<16x128xf32> to vector<16x64xf32>
      %252 = arith.truncf %251 : vector<16x64xf32> to vector<16x64xbf16>
      %c0_114 = arith.constant 0 : index
      %c0_115 = arith.constant 0 : index
      %253 = vector.load %arg21[%c0_114, %c0_115] : memref<16x64xbf16, #tpu.memory_space<vmem>>, vector<16x64xbf16>
      tpu.vector_store %arg21[%c0_114, %c0_115], %252 {strides = array<i32>} : memref<16x64xbf16, #tpu.memory_space<vmem>>, vector<16x64xbf16>,
      %254 = vector.extract_strided_slice %250 {offsets = [0, 64], sizes = [16, 64], strides = [1, 1]} : vector<16x128xf32> to vector<16x64xf32>
      %255 = arith.truncf %254 : vector<16x64xf32> to vector<16x64xbf16>
      %c0_116 = arith.constant 0 : index
      %c0_117 = arith.constant 0 : index
      %256 = vector.load %arg22[%c0_116, %c0_117] : memref<16x64xbf16, #tpu.memory_space<vmem>>, vector<16x64xbf16>
      tpu.vector_store %arg22[%c0_116, %c0_117], %255 {strides = array<i32>} : memref<16x64xbf16, #tpu.memory_space<vmem>>, vector<16x64xbf16>,
    } else {
    }
    %c16_i32 = arith.constant 16 : i32
    %5 = arith.muli %arg1, %c16_i32 : i32
    %6 = tpu.assume_multiple %5, 16 : i32
    %c0_4 = arith.constant 0 : index
    %7 = arith.index_cast %6 : i32 to index
    %c0_5 = arith.constant 0 : index
    %8 = vector.load %arg2[%c0_4, %7, %c0_5] : memref<1x16x64xf32, #tpu.memory_space<vmem>>, vector<1x16x64xf32>
    %9 = vector.shape_cast %8 : vector<1x16x64xf32> to vector<16x64xf32>
    %cst = arith.constant dense<0.000000e+00> : vector<16xf32>
    %10 = vector.multi_reduction <add>, %9, %cst [1] : vector<16x64xf32> to vector<16xf32>
    %11 = vector.shape_cast %10 : vector<16xf32> to vector<16x1xf32>
    %cst_6 = arith.constant 6.400000e+01 : f32
    %12 = vector.broadcast %cst_6 : f32 to vector<16x1xf32>
    %13 = arith.divf %11, %12 : vector<16x1xf32>
    %14 = vector.broadcast %13 : vector<16x1xf32> to vector<16x64xf32>
    %15 = arith.subf %9, %14 : vector<16x64xf32>
    %16 = arith.mulf %15, %15 : vector<16x64xf32>
    %cst_7 = arith.constant dense<0.000000e+00> : vector<16xf32>
    %17 = vector.multi_reduction <add>, %16, %cst_7 [1] : vector<16x64xf32> to vector<16xf32>
    %18 = vector.shape_cast %17 : vector<16xf32> to vector<16x1xf32>
    %cst_8 = arith.constant 6.400000e+01 : f32
    %19 = vector.broadcast %cst_8 : f32 to vector<16x1xf32>
    %20 = arith.divf %18, %19 : vector<16x1xf32>
    %21 = vector.broadcast %13 : vector<16x1xf32> to vector<16x64xf32>
    %22 = arith.subf %9, %21 : vector<16x64xf32>
    %cst_9 = arith.constant 9.99999974E-6 : f32
    %23 = vector.broadcast %cst_9 : f32 to vector<16x1xf32>
    %24 = arith.addf %20, %23 : vector<16x1xf32>
    %25 = math.rsqrt %24 : vector<16x1xf32>
    %26 = vector.broadcast %25 : vector<16x1xf32> to vector<16x64xf32>
    %27 = arith.mulf %22, %26 : vector<16x64xf32>
    %28 = vector.broadcast %0 : vector<1x64xf32> to vector<16x64xf32>
    %29 = arith.mulf %27, %28 : vector<16x64xf32>
    %30 = vector.broadcast %1 : vector<1x64xf32> to vector<16x64xf32>
    %31 = arith.addf %29, %30 : vector<16x64xf32>
    %32 = arith.truncf %31 : vector<16x64xf32> to vector<16x64xbf16>
    %c0_10 = arith.constant 0 : index
    %c0_11 = arith.constant 0 : index
    %33 = vector.load %arg6[%c0_10, %c0_11] : memref<64x64xbf16, #tpu.memory_space<vmem>>, vector<64x64xbf16>
    %cst_12 = arith.constant dense<0.000000e+00> : vector<16x64xf32>
    %34 = tpu.matmul %32, %33, %cst_12 {dimension_numbers = #tpu.dot_dimension_numbers<[1], [0], [0], [1], [0, 0, 1, 1], [], []>} : vector<16x64xbf16>, vector<64x64xbf16>, vector<16x64xf32> -> vector<16x64xf32>
    %c0_13 = arith.constant 0 : index
    %c0_14 = arith.constant 0 : index
    %35 = vector.load %arg7[%c0_13, %c0_14] : memref<1x64xf32, #tpu.memory_space<vmem>>, vector<1x64xf32>
    %36 = vector.broadcast %35 : vector<1x64xf32> to vector<16x64xf32>
    %37 = arith.addf %34, %36 : vector<16x64xf32>
    %cst_15 = arith.constant 2.500000e-01 : f32
    %38 = vector.broadcast %cst_15 : f32 to vector<16x64xf32>
    %39 = arith.mulf %37, %38 : vector<16x64xf32>
    %c0_16 = arith.constant 0 : index
    %c0_17 = arith.constant 0 : index
    %c0_18 = arith.constant 0 : index
    %40 = vector.load %arg3[%c0_16, %c0_17, %c0_18] : memref<1x1x16xf32, #tpu.memory_space<vmem>>, vector<1x1x16xf32>
    %41 = vector.shape_cast %40 : vector<1x1x16xf32> to vector<1x16xf32>
    %cst_19 = arith.constant 5.000000e-01 : f32
    %42 = vector.broadcast %cst_19 : f32 to vector<1x16xf32>
    %43 = arith.cmpf ogt, %41, %42 : vector<1x16xf32>
    %cst_20 = arith.constant -1.000000e+30 : f32
    %cst_21 = arith.constant 0.000000e+00 : f32
    %44 = vector.broadcast %cst_20 : f32 to vector<1x16xf32>
    %45 = vector.broadcast %cst_21 : f32 to vector<1x16xf32>
    %46 = arith.select %43, %44, %45 : vector<1x16xi1>, vector<1x16xf32>
    %cst_22 = arith.constant 0.000000e+00 : f32
    %47 = vector.broadcast %cst_22 : f32 to vector<16x64xf32>
    %48 = vector.extract_strided_slice %39 {offsets = [0, 0], sizes = [16, 16], strides = [1, 1]} : vector<16x64xf32> to vector<16x16xf32>
    %49 = arith.truncf %48 : vector<16x16xf32> to vector<16x16xbf16>
    %c0_23 = arith.constant 0 : index
    %c0_24 = arith.constant 0 : index
    %50 = vector.load %arg21[%c0_23, %c0_24] : memref<16x64xbf16, #tpu.memory_space<vmem>>, vector<16x16xbf16>
    %cst_25 = arith.constant dense<0.000000e+00> : vector<16x16xf32>
    %51 = tpu.matmul %49, %50, %cst_25 {dimension_numbers = #tpu.dot_dimension_numbers<[1], [1], [0], [0], [0, 0, 1, 0], [], []>} : vector<16x16xbf16>, vector<16x16xbf16>, vector<16x16xf32> -> vector<16x16xf32>
    %52 = vector.broadcast %46 : vector<1x16xf32> to vector<16x16xf32>
    %53 = arith.addf %51, %52 : vector<16x16xf32>
    %cst_26 = arith.constant dense<0xFF800000> : vector<16xf32>
    %54 = vector.multi_reduction <maximumf>, %53, %cst_26 [1] : vector<16x16xf32> to vector<16xf32>
    %55 = vector.shape_cast %54 : vector<16xf32> to vector<16x1xf32>
    %56 = vector.broadcast %55 : vector<16x1xf32> to vector<16x16xf32>
    %57 = arith.subf %53, %56 : vector<16x16xf32>
    %58 = math.exp %57 : vector<16x16xf32>
    %cst_27 = arith.constant dense<0.000000e+00> : vector<16xf32>
    %59 = vector.multi_reduction <add>, %58, %cst_27 [1] : vector<16x16xf32> to vector<16xf32>
    %60 = vector.shape_cast %59 : vector<16xf32> to vector<16x1xf32>
    %61 = tpu.reciprocal %60 {approx = true} : vector<16x1xf32> -> vector<16x1xf32>
    %62 = vector.broadcast %61 : vector<16x1xf32> to vector<16x16xf32>
    %63 = arith.mulf %58, %62 : vector<16x16xf32>
    %64 = arith.truncf %63 : vector<16x16xf32> to vector<16x16xbf16>
    %c0_28 = arith.constant 0 : index
    %c0_29 = arith.constant 0 : index
    %65 = vector.load %arg22[%c0_28, %c0_29] : memref<16x64xbf16, #tpu.memory_space<vmem>>, vector<16x16xbf16>
    %cst_30 = arith.constant dense<0.000000e+00> : vector<16x16xf32>
    %66 = tpu.matmul %64, %65, %cst_30 {dimension_numbers = #tpu.dot_dimension_numbers<[1], [0], [0], [1], [0, 0, 1, 1], [], []>} : vector<16x16xbf16>, vector<16x16xbf16>, vector<16x16xf32> -> vector<16x16xf32>
    %67 = arith.truncf %66 : vector<16x16xf32> to vector<16x16xbf16>
    %c0_31 = arith.constant 0 : index
    %c0_32 = arith.constant 0 : index
    %68 = vector.load %arg10[%c0_31, %c0_32] : memref<64x64xbf16, #tpu.memory_space<vmem>>, vector<16x64xbf16>
    %cst_33 = arith.constant dense<0.000000e+00> : vector<16x64xf32>
    %69 = tpu.matmul %67, %68, %cst_33 {dimension_numbers = #tpu.dot_dimension_numbers<[1], [0], [0], [1], [0, 0, 1, 1], [], []>} : vector<16x16xbf16>, vector<16x64xbf16>, vector<16x64xf32> -> vector<16x64xf32>
    %70 = arith.addf %47, %69 : vector<16x64xf32>
    %71 = vector.extract_strided_slice %39 {offsets = [0, 16], sizes = [16, 16], strides = [1, 1]} : vector<16x64xf32> to vector<16x16xf32>
    %72 = arith.truncf %71 : vector<16x16xf32> to vector<16x16xbf16>
    %c0_34 = arith.constant 0 : index
    %c16 = arith.constant 16 : index
    %73 = vector.load %arg21[%c0_34, %c16] : memref<16x64xbf16, #tpu.memory_space<vmem>>, vector<16x16xbf16>
    %cst_35 = arith.constant dense<0.000000e+00> : vector<16x16xf32>
    %74 = tpu.matmul %72, %73, %cst_35 {dimension_numbers = #tpu.dot_dimension_numbers<[1], [1], [0], [0], [0, 0, 1, 0], [], []>} : vector<16x16xbf16>, vector<16x16xbf16>, vector<16x16xf32> -> vector<16x16xf32>
    %75 = vector.broadcast %46 : vector<1x16xf32> to vector<16x16xf32>
    %76 = arith.addf %74, %75 : vector<16x16xf32>
    %cst_36 = arith.constant dense<0xFF800000> : vector<16xf32>
    %77 = vector.multi_reduction <maximumf>, %76, %cst_36 [1] : vector<16x16xf32> to vector<16xf32>
    %78 = vector.shape_cast %77 : vector<16xf32> to vector<16x1xf32>
    %79 = vector.broadcast %78 : vector<16x1xf32> to vector<16x16xf32>
    %80 = arith.subf %76, %79 : vector<16x16xf32>
    %81 = math.exp %80 : vector<16x16xf32>
    %cst_37 = arith.constant dense<0.000000e+00> : vector<16xf32>
    %82 = vector.multi_reduction <add>, %81, %cst_37 [1] : vector<16x16xf32> to vector<16xf32>
    %83 = vector.shape_cast %82 : vector<16xf32> to vector<16x1xf32>
    %84 = tpu.reciprocal %83 {approx = true} : vector<16x1xf32> -> vector<16x1xf32>
    %85 = vector.broadcast %84 : vector<16x1xf32> to vector<16x16xf32>
    %86 = arith.mulf %81, %85 : vector<16x16xf32>
    %87 = arith.truncf %86 : vector<16x16xf32> to vector<16x16xbf16>
    %c0_38 = arith.constant 0 : index
    %c16_39 = arith.constant 16 : index
    %88 = vector.load %arg22[%c0_38, %c16_39] : memref<16x64xbf16, #tpu.memory_space<vmem>>, vector<16x16xbf16>
    %cst_40 = arith.constant dense<0.000000e+00> : vector<16x16xf32>
    %89 = tpu.matmul %87, %88, %cst_40 {dimension_numbers = #tpu.dot_dimension_numbers<[1], [0], [0], [1], [0, 0, 1, 1], [], []>} : vector<16x16xbf16>, vector<16x16xbf16>, vector<16x16xf32> -> vector<16x16xf32>
    %90 = arith.truncf %89 : vector<16x16xf32> to vector<16x16xbf16>
    %c16_41 = arith.constant 16 : index
    %c0_42 = arith.constant 0 : index
    %91 = vector.load %arg10[%c16_41, %c0_42] : memref<64x64xbf16, #tpu.memory_space<vmem>>, vector<16x64xbf16>
    %cst_43 = arith.constant dense<0.000000e+00> : vector<16x64xf32>
    %92 = tpu.matmul %90, %91, %cst_43 {dimension_numbers = #tpu.dot_dimension_numbers<[1], [0], [0], [1], [0, 0, 1, 1], [], []>} : vector<16x16xbf16>, vector<16x64xbf16>, vector<16x64xf32> -> vector<16x64xf32>
    %93 = arith.addf %70, %92 : vector<16x64xf32>
    %94 = vector.extract_strided_slice %39 {offsets = [0, 32], sizes = [16, 16], strides = [1, 1]} : vector<16x64xf32> to vector<16x16xf32>
    %95 = arith.truncf %94 : vector<16x16xf32> to vector<16x16xbf16>
    %c0_44 = arith.constant 0 : index
    %c32 = arith.constant 32 : index
    %96 = vector.load %arg21[%c0_44, %c32] : memref<16x64xbf16, #tpu.memory_space<vmem>>, vector<16x16xbf16>
    %cst_45 = arith.constant dense<0.000000e+00> : vector<16x16xf32>
    %97 = tpu.matmul %95, %96, %cst_45 {dimension_numbers = #tpu.dot_dimension_numbers<[1], [1], [0], [0], [0, 0, 1, 0], [], []>} : vector<16x16xbf16>, vector<16x16xbf16>, vector<16x16xf32> -> vector<16x16xf32>
    %98 = vector.broadcast %46 : vector<1x16xf32> to vector<16x16xf32>
    %99 = arith.addf %97, %98 : vector<16x16xf32>
    %cst_46 = arith.constant dense<0xFF800000> : vector<16xf32>
    %100 = vector.multi_reduction <maximumf>, %99, %cst_46 [1] : vector<16x16xf32> to vector<16xf32>
    %101 = vector.shape_cast %100 : vector<16xf32> to vector<16x1xf32>
    %102 = vector.broadcast %101 : vector<16x1xf32> to vector<16x16xf32>
    %103 = arith.subf %99, %102 : vector<16x16xf32>
    %104 = math.exp %103 : vector<16x16xf32>
    %cst_47 = arith.constant dense<0.000000e+00> : vector<16xf32>
    %105 = vector.multi_reduction <add>, %104, %cst_47 [1] : vector<16x16xf32> to vector<16xf32>
    %106 = vector.shape_cast %105 : vector<16xf32> to vector<16x1xf32>
    %107 = tpu.reciprocal %106 {approx = true} : vector<16x1xf32> -> vector<16x1xf32>
    %108 = vector.broadcast %107 : vector<16x1xf32> to vector<16x16xf32>
    %109 = arith.mulf %104, %108 : vector<16x16xf32>
    %110 = arith.truncf %109 : vector<16x16xf32> to vector<16x16xbf16>
    %c0_48 = arith.constant 0 : index
    %c32_49 = arith.constant 32 : index
    %111 = vector.load %arg22[%c0_48, %c32_49] : memref<16x64xbf16, #tpu.memory_space<vmem>>, vector<16x16xbf16>
    %cst_50 = arith.constant dense<0.000000e+00> : vector<16x16xf32>
    %112 = tpu.matmul %110, %111, %cst_50 {dimension_numbers = #tpu.dot_dimension_numbers<[1], [0], [0], [1], [0, 0, 1, 1], [], []>} : vector<16x16xbf16>, vector<16x16xbf16>, vector<16x16xf32> -> vector<16x16xf32>
    %113 = arith.truncf %112 : vector<16x16xf32> to vector<16x16xbf16>
    %c32_51 = arith.constant 32 : index
    %c0_52 = arith.constant 0 : index
    %114 = vector.load %arg10[%c32_51, %c0_52] : memref<64x64xbf16, #tpu.memory_space<vmem>>, vector<16x64xbf16>
    %cst_53 = arith.constant dense<0.000000e+00> : vector<16x64xf32>
    %115 = tpu.matmul %113, %114, %cst_53 {dimension_numbers = #tpu.dot_dimension_numbers<[1], [0], [0], [1], [0, 0, 1, 1], [], []>} : vector<16x16xbf16>, vector<16x64xbf16>, vector<16x64xf32> -> vector<16x64xf32>
    %116 = arith.addf %93, %115 : vector<16x64xf32>
    %117 = vector.extract_strided_slice %39 {offsets = [0, 48], sizes = [16, 16], strides = [1, 1]} : vector<16x64xf32> to vector<16x16xf32>
    %118 = arith.truncf %117 : vector<16x16xf32> to vector<16x16xbf16>
    %c0_54 = arith.constant 0 : index
    %c48 = arith.constant 48 : index
    %119 = vector.load %arg21[%c0_54, %c48] : memref<16x64xbf16, #tpu.memory_space<vmem>>, vector<16x16xbf16>
    %cst_55 = arith.constant dense<0.000000e+00> : vector<16x16xf32>
    %120 = tpu.matmul %118, %119, %cst_55 {dimension_numbers = #tpu.dot_dimension_numbers<[1], [1], [0], [0], [0, 0, 1, 0], [], []>} : vector<16x16xbf16>, vector<16x16xbf16>, vector<16x16xf32> -> vector<16x16xf32>
    %121 = vector.broadcast %46 : vector<1x16xf32> to vector<16x16xf32>
    %122 = arith.addf %120, %121 : vector<16x16xf32>
    %cst_56 = arith.constant dense<0xFF800000> : vector<16xf32>
    %123 = vector.multi_reduction <maximumf>, %122, %cst_56 [1] : vector<16x16xf32> to vector<16xf32>
    %124 = vector.shape_cast %123 : vector<16xf32> to vector<16x1xf32>
    %125 = vector.broadcast %124 : vector<16x1xf32> to vector<16x16xf32>
    %126 = arith.subf %122, %125 : vector<16x16xf32>
    %127 = math.exp %126 : vector<16x16xf32>
    %cst_57 = arith.constant dense<0.000000e+00> : vector<16xf32>
    %128 = vector.multi_reduction <add>, %127, %cst_57 [1] : vector<16x16xf32> to vector<16xf32>
    %129 = vector.shape_cast %128 : vector<16xf32> to vector<16x1xf32>
    %130 = tpu.reciprocal %129 {approx = true} : vector<16x1xf32> -> vector<16x1xf32>
    %131 = vector.broadcast %130 : vector<16x1xf32> to vector<16x16xf32>
    %132 = arith.mulf %127, %131 : vector<16x16xf32>
    %133 = arith.truncf %132 : vector<16x16xf32> to vector<16x16xbf16>
    %c0_58 = arith.constant 0 : index
    %c48_59 = arith.constant 48 : index
    %134 = vector.load %arg22[%c0_58, %c48_59] : memref<16x64xbf16, #tpu.memory_space<vmem>>, vector<16x16xbf16>
    %cst_60 = arith.constant dense<0.000000e+00> : vector<16x16xf32>
    %135 = tpu.matmul %133, %134, %cst_60 {dimension_numbers = #tpu.dot_dimension_numbers<[1], [0], [0], [1], [0, 0, 1, 1], [], []>} : vector<16x16xbf16>, vector<16x16xbf16>, vector<16x16xf32> -> vector<16x16xf32>
    %136 = arith.truncf %135 : vector<16x16xf32> to vector<16x16xbf16>
    %c48_61 = arith.constant 48 : index
    %c0_62 = arith.constant 0 : index
    %137 = vector.load %arg10[%c48_61, %c0_62] : memref<64x64xbf16, #tpu.memory_space<vmem>>, vector<16x64xbf16>
    %cst_63 = arith.constant dense<0.000000e+00> : vector<16x64xf32>
    %138 = tpu.matmul %136, %137, %cst_63 {dimension_numbers = #tpu.dot_dimension_numbers<[1], [0], [0], [1], [0, 0, 1, 1], [], []>} : vector<16x16xbf16>, vector<16x64xbf16>, vector<16x64xf32> -> vector<16x64xf32>
    %139 = arith.addf %116, %138 : vector<16x64xf32>
    %c0_64 = arith.constant 0 : index
    %c0_65 = arith.constant 0 : index
    %140 = vector.load %arg11[%c0_64, %c0_65] : memref<1x64xf32, #tpu.memory_space<vmem>>, vector<1x64xf32>
    %141 = vector.broadcast %140 : vector<1x64xf32> to vector<16x64xf32>
    %142 = arith.addf %139, %141 : vector<16x64xf32>
    %143 = arith.addf %31, %142 : vector<16x64xf32>
    %c0_66 = arith.constant 0 : index
    %c0_67 = arith.constant 0 : index
    %144 = vector.load %arg12[%c0_66, %c0_67] : memref<1x64xf32, #tpu.memory_space<vmem>>, vector<1x64xf32>
    %c0_68 = arith.constant 0 : index
    %c0_69 = arith.constant 0 : index
    %145 = vector.load %arg13[%c0_68, %c0_69] : memref<1x64xf32, #tpu.memory_space<vmem>>, vector<1x64xf32>
    %cst_70 = arith.constant dense<0.000000e+00> : vector<16xf32>
    %146 = vector.multi_reduction <add>, %143, %cst_70 [1] : vector<16x64xf32> to vector<16xf32>
    %147 = vector.shape_cast %146 : vector<16xf32> to vector<16x1xf32>
    %cst_71 = arith.constant 6.400000e+01 : f32
    %148 = vector.broadcast %cst_71 : f32 to vector<16x1xf32>
    %149 = arith.divf %147, %148 : vector<16x1xf32>
    %150 = vector.broadcast %149 : vector<16x1xf32> to vector<16x64xf32>
    %151 = arith.subf %143, %150 : vector<16x64xf32>
    %152 = arith.mulf %151, %151 : vector<16x64xf32>
    %cst_72 = arith.constant dense<0.000000e+00> : vector<16xf32>
    %153 = vector.multi_reduction <add>, %152, %cst_72 [1] : vector<16x64xf32> to vector<16xf32>
    %154 = vector.shape_cast %153 : vector<16xf32> to vector<16x1xf32>
    %cst_73 = arith.constant 6.400000e+01 : f32
    %155 = vector.broadcast %cst_73 : f32 to vector<16x1xf32>
    %156 = arith.divf %154, %155 : vector<16x1xf32>
    %157 = vector.broadcast %149 : vector<16x1xf32> to vector<16x64xf32>
    %158 = arith.subf %143, %157 : vector<16x64xf32>
    %cst_74 = arith.constant 9.99999974E-6 : f32
    %159 = vector.broadcast %cst_74 : f32 to vector<16x1xf32>
    %160 = arith.addf %156, %159 : vector<16x1xf32>
    %161 = math.rsqrt %160 : vector<16x1xf32>
    %162 = vector.broadcast %161 : vector<16x1xf32> to vector<16x64xf32>
    %163 = arith.mulf %158, %162 : vector<16x64xf32>
    %164 = vector.broadcast %144 : vector<1x64xf32> to vector<16x64xf32>
    %165 = arith.mulf %163, %164 : vector<16x64xf32>
    %166 = vector.broadcast %145 : vector<1x64xf32> to vector<16x64xf32>
    %167 = arith.addf %165, %166 : vector<16x64xf32>
    %168 = arith.truncf %167 : vector<16x64xf32> to vector<16x64xbf16>
    %c0_75 = arith.constant 0 : index
    %c0_76 = arith.constant 0 : index
    %169 = vector.load %arg14[%c0_75, %c0_76] : memref<64x128xbf16, #tpu.memory_space<vmem>>, vector<64x128xbf16>
    %cst_77 = arith.constant dense<0.000000e+00> : vector<16x128xf32>
    %170 = tpu.matmul %168, %169, %cst_77 {dimension_numbers = #tpu.dot_dimension_numbers<[1], [0], [0], [1], [0, 0, 1, 1], [], []>} : vector<16x64xbf16>, vector<64x128xbf16>, vector<16x128xf32> -> vector<16x128xf32>
    %c0_78 = arith.constant 0 : index
    %c0_79 = arith.constant 0 : index
    %171 = vector.load %arg15[%c0_78, %c0_79] : memref<1x128xf32, #tpu.memory_space<vmem>>, vector<1x128xf32>
    %172 = vector.broadcast %171 : vector<1x128xf32> to vector<16x128xf32>
    %173 = arith.addf %170, %172 : vector<16x128xf32>
    %cst_80 = arith.constant 5.000000e-01 : f32
    %174 = vector.broadcast %cst_80 : f32 to vector<16x128xf32>
    %175 = arith.mulf %174, %173 : vector<16x128xf32>
    %cst_81 = arith.constant 4.471500e-02 : f32
    %176 = vector.broadcast %cst_81 : f32 to vector<16x128xf32>
    %177 = arith.mulf %176, %173 : vector<16x128xf32>
    %178 = arith.mulf %177, %173 : vector<16x128xf32>
    %179 = arith.mulf %178, %173 : vector<16x128xf32>
    %180 = arith.addf %173, %179 : vector<16x128xf32>
    %cst_82 = arith.constant 0.797884583 : f32
    %181 = vector.broadcast %cst_82 : f32 to vector<16x128xf32>
    %182 = arith.mulf %181, %180 : vector<16x128xf32>
    %183 = math.tanh %182 : vector<16x128xf32>
    %cst_83 = arith.constant 1.000000e+00 : f32
    %184 = vector.broadcast %cst_83 : f32 to vector<16x128xf32>
    %185 = arith.addf %184, %183 : vector<16x128xf32>
    %186 = arith.mulf %175, %185 : vector<16x128xf32>
    %187 = arith.truncf %186 : vector<16x128xf32> to vector<16x128xbf16>
    %c0_84 = arith.constant 0 : index
    %c0_85 = arith.constant 0 : index
    %188 = vector.load %arg16[%c0_84, %c0_85] : memref<128x64xbf16, #tpu.memory_space<vmem>>, vector<128x64xbf16>
    %cst_86 = arith.constant dense<0.000000e+00> : vector<16x64xf32>
    %189 = tpu.matmul %187, %188, %cst_86 {dimension_numbers = #tpu.dot_dimension_numbers<[1], [0], [0], [1], [0, 0, 1, 1], [], []>} : vector<16x128xbf16>, vector<128x64xbf16>, vector<16x64xf32> -> vector<16x64xf32>
    %c0_87 = arith.constant 0 : index
    %c0_88 = arith.constant 0 : index
    %190 = vector.load %arg17[%c0_87, %c0_88] : memref<1x64xf32, #tpu.memory_space<vmem>>, vector<1x64xf32>
    %191 = vector.broadcast %190 : vector<1x64xf32> to vector<16x64xf32>
    %192 = arith.addf %189, %191 : vector<16x64xf32>
    %193 = arith.addf %167, %192 : vector<16x64xf32>
    %c0_89 = arith.constant 0 : index
    %c0_90 = arith.constant 0 : index
    %194 = vector.load %arg18[%c0_89, %c0_90] : memref<1x64xf32, #tpu.memory_space<vmem>>, vector<1x64xf32>
    %c0_91 = arith.constant 0 : index
    %c0_92 = arith.constant 0 : index
    %195 = vector.load %arg19[%c0_91, %c0_92] : memref<1x64xf32, #tpu.memory_space<vmem>>, vector<1x64xf32>
    %cst_93 = arith.constant dense<0.000000e+00> : vector<16xf32>
    %196 = vector.multi_reduction <add>, %193, %cst_93 [1] : vector<16x64xf32> to vector<16xf32>
    %197 = vector.shape_cast %196 : vector<16xf32> to vector<16x1xf32>
    %cst_94 = arith.constant 6.400000e+01 : f32
    %198 = vector.broadcast %cst_94 : f32 to vector<16x1xf32>
    %199 = arith.divf %197, %198 : vector<16x1xf32>
    %200 = vector.broadcast %199 : vector<16x1xf32> to vector<16x64xf32>
    %201 = arith.subf %193, %200 : vector<16x64xf32>
    %202 = arith.mulf %201, %201 : vector<16x64xf32>
    %cst_95 = arith.constant dense<0.000000e+00> : vector<16xf32>
    %203 = vector.multi_reduction <add>, %202, %cst_95 [1] : vector<16x64xf32> to vector<16xf32>
    %204 = vector.shape_cast %203 : vector<16xf32> to vector<16x1xf32>
    %cst_96 = arith.constant 6.400000e+01 : f32
    %205 = vector.broadcast %cst_96 : f32 to vector<16x1xf32>
    %206 = arith.divf %204, %205 : vector<16x1xf32>
    %207 = vector.broadcast %199 : vector<16x1xf32> to vector<16x64xf32>
    %208 = arith.subf %193, %207 : vector<16x64xf32>
    %cst_97 = arith.constant 9.99999974E-6 : f32
    %209 = vector.broadcast %cst_97 : f32 to vector<16x1xf32>
    %210 = arith.addf %206, %209 : vector<16x1xf32>
    %211 = math.rsqrt %210 : vector<16x1xf32>
    %212 = vector.broadcast %211 : vector<16x1xf32> to vector<16x64xf32>
    %213 = arith.mulf %208, %212 : vector<16x64xf32>
    %214 = vector.broadcast %194 : vector<1x64xf32> to vector<16x64xf32>
    %215 = arith.mulf %213, %214 : vector<16x64xf32>
    %216 = vector.broadcast %195 : vector<1x64xf32> to vector<16x64xf32>
    %217 = arith.addf %215, %216 : vector<16x64xf32>
    %c0_98 = arith.constant 0 : index
    %c0_99 = arith.constant 0 : index
    %c0_100 = arith.constant 0 : index
    %218 = vector.load %arg20[%c0_98, %c0_99, %c0_100] : memref<1x16x64xf32, #tpu.memory_space<vmem>>, vector<1x16x64xf32>
    %219 = vector.shape_cast %218 : vector<1x16x64xf32> to vector<16x64xf32>
    %220 = vector.shape_cast %217 : vector<16x64xf32> to vector<1x16x64xf32>
    tpu.vector_store %arg20[%c0_98, %c0_99, %c0_100], %220 {strides = array<i32>} : memref<1x16x64xf32, #tpu.memory_space<vmem>>, vector<1x16x64xf32>,
    return
  }
  func.func @transform_0(%arg0: i32, %arg1: i32) -> (i32, i32, i32) {
    %c0_i32 = arith.constant 0 : i32
    %c0_i32_0 = arith.constant 0 : i32
    %c0_i32_1 = arith.constant 0 : i32
    return %arg0, %c0_i32, %c0_i32_0 : i32, i32, i32
  }
  func.func @transform_1(%arg0: i32, %arg1: i32) -> (i32, i32, i32) {
    %c0_i32 = arith.constant 0 : i32
    %c0_i32_0 = arith.constant 0 : i32
    %c0_i32_1 = arith.constant 0 : i32
    return %arg0, %c0_i32, %c0_i32_0 : i32, i32, i32
  }
  func.func @transform_2(%arg0: i32, %arg1: i32) -> (i32, i32) {
    %c0_i32 = arith.constant 0 : i32
    %c0_i32_0 = arith.constant 0 : i32
    %c0_i32_1 = arith.constant 0 : i32
    return %c0_i32, %c0_i32_0 : i32, i32
  }
  func.func @transform_3(%arg0: i32, %arg1: i32) -> (i32, i32) {
    %c0_i32 = arith.constant 0 : i32
    %c0_i32_0 = arith.constant 0 : i32
    %c0_i32_1 = arith.constant 0 : i32
    return %c0_i32, %c0_i32_0 : i32, i32
  }
  func.func @transform_4(%arg0: i32, %arg1: i32) -> (i32, i32) {
    %c0_i32 = arith.constant 0 : i32
    %c0_i32_0 = arith.constant 0 : i32
    %c0_i32_1 = arith.constant 0 : i32
    return %c0_i32, %c0_i32_0 : i32, i32
  }
  func.func @transform_5(%arg0: i32, %arg1: i32) -> (i32, i32) {
    %c0_i32 = arith.constant 0 : i32
    %c0_i32_0 = arith.constant 0 : i32
    %c0_i32_1 = arith.constant 0 : i32
    return %c0_i32, %c0_i32_0 : i32, i32
  }
  func.func @transform_6(%arg0: i32, %arg1: i32) -> (i32, i32) {
    %c0_i32 = arith.constant 0 : i32
    %c0_i32_0 = arith.constant 0 : i32
    %c0_i32_1 = arith.constant 0 : i32
    return %c0_i32, %c0_i32_0 : i32, i32
  }
  func.func @transform_7(%arg0: i32, %arg1: i32) -> (i32, i32) {
    %c0_i32 = arith.constant 0 : i32
    %c0_i32_0 = arith.constant 0 : i32
    %c0_i32_1 = arith.constant 0 : i32
    return %c0_i32, %c0_i32_0 : i32, i32
  }
  func.func @transform_8(%arg0: i32, %arg1: i32) -> (i32, i32) {
    %c0_i32 = arith.constant 0 : i32
    %c0_i32_0 = arith.constant 0 : i32
    %c0_i32_1 = arith.constant 0 : i32
    return %c0_i32, %c0_i32_0 : i32, i32
  }
  func.func @transform_9(%arg0: i32, %arg1: i32) -> (i32, i32) {
    %c0_i32 = arith.constant 0 : i32
    %c0_i32_0 = arith.constant 0 : i32
    %c0_i32_1 = arith.constant 0 : i32
    return %c0_i32, %c0_i32_0 : i32, i32
  }
  func.func @transform_10(%arg0: i32, %arg1: i32) -> (i32, i32) {
    %c0_i32 = arith.constant 0 : i32
    %c0_i32_0 = arith.constant 0 : i32
    %c0_i32_1 = arith.constant 0 : i32
    return %c0_i32, %c0_i32_0 : i32, i32
  }
  func.func @transform_11(%arg0: i32, %arg1: i32) -> (i32, i32) {
    %c0_i32 = arith.constant 0 : i32
    %c0_i32_0 = arith.constant 0 : i32
    %c0_i32_1 = arith.constant 0 : i32
    return %c0_i32, %c0_i32_0 : i32, i32
  }
  func.func @transform_12(%arg0: i32, %arg1: i32) -> (i32, i32) {
    %c0_i32 = arith.constant 0 : i32
    %c0_i32_0 = arith.constant 0 : i32
    %c0_i32_1 = arith.constant 0 : i32
    return %c0_i32, %c0_i32_0 : i32, i32
  }
  func.func @transform_13(%arg0: i32, %arg1: i32) -> (i32, i32) {
    %c0_i32 = arith.constant 0 : i32
    %c0_i32_0 = arith.constant 0 : i32
    %c0_i32_1 = arith.constant 0 : i32
    return %c0_i32, %c0_i32_0 : i32, i32
  }
  func.func @transform_14(%arg0: i32, %arg1: i32) -> (i32, i32) {
    %c0_i32 = arith.constant 0 : i32
    %c0_i32_0 = arith.constant 0 : i32
    %c0_i32_1 = arith.constant 0 : i32
    return %c0_i32, %c0_i32_0 : i32, i32
  }
  func.func @transform_15(%arg0: i32, %arg1: i32) -> (i32, i32) {
    %c0_i32 = arith.constant 0 : i32
    %c0_i32_0 = arith.constant 0 : i32
    %c0_i32_1 = arith.constant 0 : i32
    return %c0_i32, %c0_i32_0 : i32, i32
  }
  func.func @transform_16(%arg0: i32, %arg1: i32) -> (i32, i32) {
    %c0_i32 = arith.constant 0 : i32
    %c0_i32_0 = arith.constant 0 : i32
    %c0_i32_1 = arith.constant 0 : i32
    return %c0_i32, %c0_i32_0 : i32, i32
  }
  func.func @transform_17(%arg0: i32, %arg1: i32) -> (i32, i32) {
    %c0_i32 = arith.constant 0 : i32
    %c0_i32_0 = arith.constant 0 : i32
    %c0_i32_1 = arith.constant 0 : i32
    return %c0_i32, %c0_i32_0 : i32, i32
  }
  func.func @transform_18(%arg0: i32, %arg1: i32) -> (i32, i32, i32) {
    %c0_i32 = arith.constant 0 : i32
    %c0_i32_0 = arith.constant 0 : i32
    return %arg0, %arg1, %c0_i32 : i32, i32, i32
  }
}

</mosaic_0001>

<llo_original>
// kernel: tpu_custom_call.1
$region0: #{tpu_custom_call.1}
  #allocation0 [shape = 'u32[]', space=smem, size = 0x4, offset = 0x4, fixed_abs, tag = 'smem constant byte address 0x4 - core index']
  #allocation1 [shape = 'u32[144,128]{1,0:T(1,128)}', space=vmem, size = 0x12000, scoped, tag = 'internal scratch']
  #allocation2 [shape = 'bf16[16,64]{1,0:T(16,128)(2,1)}', space=vmem, size = 0x1000, scoped, tag = 'scratch operand']
  #allocation3 [shape = 'bf16[16,64]{1,0:T(16,128)(2,1)}', space=vmem, size = 0x1000, scoped, tag = 'scratch operand']
  %s0 = inlined_call_operand.vmem [shape: f32[2,16,64], index: 0, kind: input, shape index: {}]
  %s1 = inlined_call_operand.vmem [shape: f32[2,1,16], index: 1, kind: input, shape index: {}]
  %s2 = inlined_call_operand.vmem [shape: f32[1,64], index: 2, kind: input, shape index: {}]
  %s3 = inlined_call_operand.vmem [shape: f32[1,64], index: 3, kind: input, shape index: {}]
  %s4 = inlined_call_operand.vmem [shape: bf16[64,64], index: 4, kind: input, shape index: {}]
  %s5 = inlined_call_operand.vmem [shape: f32[1,64], index: 5, kind: input, shape index: {}]
  %s6 = inlined_call_operand.vmem [shape: bf16[64,128], index: 6, kind: input, shape index: {}]
  %s7 = inlined_call_operand.vmem [shape: f32[1,128], index: 7, kind: input, shape index: {}]
  %s8 = inlined_call_operand.hbm [shape: bf16[64,64], index: 8, kind: input, shape index: {}]
  %s9 = inlined_call_operand.vmem [shape: f32[1,64], index: 9, kind: input, shape index: {}]
  %s10 = inlined_call_operand.vmem [shape: f32[1,64], index: 10, kind: input, shape index: {}]
  %s11 = inlined_call_operand.vmem [shape: f32[1,64], index: 11, kind: input, shape index: {}]
  %s12 = inlined_call_operand.hbm [shape: bf16[64,128], index: 12, kind: input, shape index: {}]
  %s13 = inlined_call_operand.vmem [shape: f32[1,128], index: 13, kind: input, shape index: {}]
  %s14 = inlined_call_operand.vmem [shape: bf16[128,64], index: 14, kind: input, shape index: {}]
  %s15 = inlined_call_operand.vmem [shape: f32[1,64], index: 15, kind: input, shape index: {}]
  %s16 = inlined_call_operand.vmem [shape: f32[1,64], index: 16, kind: input, shape index: {}]
  %s17 = inlined_call_operand.vmem [shape: f32[1,64], index: 17, kind: input, shape index: {}]
  %s18 = inlined_call_operand.hbm [shape: f32[2,16,64], index: 18, kind: output, shape index: {}]
  %s19 = sld [smem:[#allocation0]]
  $region117: #{tpu_custom_call.1} parent=0
    _
  %s21 = ssub.s32 1, %s19
  %s22 = scalar_select 0, %s21, %s19
  $region1: #{tpu_custom_call.1} parent=0
    #allocation4 [shape = 'u8[16384]{0}', space=vmem, size = 0x4000, scoped, tag = 'input window, operand 8, single buffered']
    #allocation5 [shape = 's32[2]{0}', space=sflag, size = 0x8, scoped, tag = 'scoped memory for tpu_custom_call.1']
    #allocation6 [shape = 's32[2]{0}', space=sflag, size = 0x8, scoped, tag = 'scoped memory for tpu_custom_call.1']
    #allocation7 [shape = 'u8[16384]{0}', space=vmem, size = 0x4000, scoped, tag = 'input window, operand 12, single buffered']
    #allocation8 [shape = 's32[1]{0}', space=sflag, size = 0x4, scoped, tag = 'scoped memory for tpu_custom_call.1']
    #allocation9 [shape = 'u8[16384]{0}', space=vmem, size = 0x4000, scoped, tag = 'output window, operand 0']
    %23 = vsyncpa [#allocation5], 0
    %24 = vsyncpa [#allocation8], 0
    %25 = vsyncpa [#allocation6], 0
    %s26 = scalar_lea.sflag [#allocation6], 1
    %27 = vsyncpa %s26, 0
    loop: start=0, step=1, limit=4
    $region2: #{tpu_custom_call.1} parent=1 // loop_pre_header
      _
    $region3: #{tpu_custom_call.1} parent=1 // loop_header
      %s29 = sphi 0, %s33
      %p30 = scmp.ge.s32.totalorder %s29, 4
      %s36 = sphi 0, %s48
      %s37 = sphi 0, %s44
      %s38 = sphi 0, %s36
      %s39 = sphi 0, %s37
      %s40 = sphi 0, %s38
      %s41 = sphi 0, %s39
      %s51 = sphi 0, %s53
      %s54 = sphi 0, %s51
      %s55 = sphi 0, %s54
      %s71 = sphi 0, %s55
      %s77 = sphi 0, %s79
      %s80 = sphi 0, %s77
      %s81 = sphi 0, %s80
      %s97 = sphi 0, %s81
      %s101 = sphi 0, %s101
      %s103 = sphi 0, %s101
      %s104 = sphi 0, %s103
      %s118 = sphi 0, %s104
      %s122 = sphi 0, %s122
      %s124 = sphi 0, %s122
      %s125 = sphi 0, %s124
      %s139 = sphi 0, %s125
      %s143 = sphi 0, %s143
      %s145 = sphi 0, %s143
      %s146 = sphi 0, %s145
      %s160 = sphi 0, %s146
      %s164 = sphi 0, %s164
      %s166 = sphi 0, %s164
      %s167 = sphi 0, %s166
      %s181 = sphi 0, %s167
      %s185 = sphi 0, %s185
      %s187 = sphi 0, %s185
      %s188 = sphi 0, %s187
      %s202 = sphi 0, %s188
      %s206 = sphi 0, %s206
      %s208 = sphi 0, %s206
      %s209 = sphi 0, %s208
      %s223 = sphi 0, %s209
      %s227 = sphi 0, %s227
      %s229 = sphi 0, %s227
      %s230 = sphi 0, %s229
      %s244 = sphi 0, %s230
      %s248 = sphi 0, %s248
      %s250 = sphi 0, %s248
      %s251 = sphi 0, %s250
      %s265 = sphi 0, %s251
      %s269 = sphi 0, %s269
      %s271 = sphi 0, %s269
      %s272 = sphi 0, %s271
      %s286 = sphi 0, %s272
      %s290 = sphi 0, %s290
      %s292 = sphi 0, %s290
      %s293 = sphi 0, %s292
      %s307 = sphi 0, %s293
      %s311 = sphi 0, %s311
      %s313 = sphi 0, %s311
      %s314 = sphi 0, %s313
      %s328 = sphi 0, %s314
      %s332 = sphi 0, %s332
      %s334 = sphi 0, %s332
      %s335 = sphi 0, %s334
      %s349 = sphi 0, %s335
      %s353 = sphi 0, %s353
      %s355 = sphi 0, %s353
      %s356 = sphi 0, %s355
      %s370 = sphi 0, %s356
      %s374 = sphi 0, %s374
      %s376 = sphi 0, %s374
      %s377 = sphi 0, %s376
      %s391 = sphi 0, %s377
      %s395 = sphi 0, %s395
      %s397 = sphi 0, %s395
      %s398 = sphi 0, %s397
      %s412 = sphi 0, %s398
      %s416 = sphi 0, %s416
      %s418 = sphi 0, %s416
      %s419 = sphi 0, %s418
      %s433 = sphi 0, %s419
      %s441 = sphi 0, %s443
      %s444 = sphi 0, %s441
      %s445 = sphi 0, %s444
      %s461 = sphi 0, %s445
    $region4: #{tpu_custom_call.1} parent=1 // loop_header_branch
      %32 = sbr.rel (%p30) target = $region8
    $region5: #{tpu_custom_call.1} parent=1 // loop_body
      %s34 = ssub.s32 %s29, 1
      %s35 = ssub.s32 %s29, 2
      %s42 = sadd.s32 1, %s37
      %p43 = scmp.ge.s32.totalorder %s42, 1
      %s44 = scalar_select %p43, 0, %s42
      %s45 = sadd.s32 1, %s36
      %s46 = scalar_select %p43, %s45, %s36
      %p47 = scmp.ge.s32.totalorder %s46, 2
      %s48 = scalar_select %p47, 0, %s46
      %s49 = ssub.s32 %s36, %s48
      %p50 = scmp.eq.s32.totalorder %s49, 0
      %s52 = sadd.s32 %s51, 1
      %s53 = scalar_select %p50, %s51, %s52
      %p56 = pneg %p50
      %p57 = scmp.eq.s32.totalorder %s29, 1
      %p58 = por %p56, %p57
      %p59 = scmp.ne.s32.totalorder %s51, %s54
      %p60 = scmp.eq.s32.totalorder %s29, 0
      %p61 = por %p59, %p60
      %p62 = scmp.ne.s32.totalorder %s51, %s54
      %p63 = scmp.eq.s32.totalorder %s34, 1
      %p64 = por %p62, %p63
      %p65 = scmp.ne.s32.totalorder %s54, %s55
      %p66 = scmp.eq.s32.totalorder %s34, 0
      %p67 = por %p65, %p66
      %p68 = scmp.ne.s32.totalorder %s54, %s55
      %p69 = scmp.eq.s32.totalorder %s35, 1
      %p70 = por %p68, %p69
      %p72 = scmp.ne.s32.totalorder %s55, %s71
      %p73 = scmp.eq.s32.totalorder %s35, 0
      %p74 = por %p72, %p73
      %s75 = ssub.s32 %s36, %s48
      %p76 = scmp.eq.s32.totalorder %s75, 0
      %s78 = sadd.s32 %s77, 1
      %s79 = scalar_select %p76, %s77, %s78
      %p82 = pneg %p76
      %p83 = scmp.eq.s32.totalorder %s29, 1
      %p84 = por %p82, %p83
      %p85 = scmp.ne.s32.totalorder %s77, %s80
      %p86 = scmp.eq.s32.totalorder %s29, 0
      %p87 = por %p85, %p86
      %p88 = scmp.ne.s32.totalorder %s77, %s80
      %p89 = scmp.eq.s32.totalorder %s34, 1
      %p90 = por %p88, %p89
      %p91 = scmp.ne.s32.totalorder %s80, %s81
      %p92 = scmp.eq.s32.totalorder %s34, 0
      %p93 = por %p91, %p92
      %p94 = scmp.ne.s32.totalorder %s80, %s81
      %p95 = scmp.eq.s32.totalorder %s35, 1
      %p96 = por %p94, %p95
      %p98 = scmp.ne.s32.totalorder %s81, %s97
      %p99 = scmp.eq.s32.totalorder %s35, 0
      %p100 = por %p98, %p99
      %s102 = sadd.s32 %s101, 1
      %p105 = scmp.eq.s32.totalorder %s29, 1
      %p106 = scmp.ne.s32.totalorder %s101, %s103
      %p107 = scmp.eq.s32.totalorder %s29, 0
      %p108 = por %p106, %p107
      %p109 = scmp.ne.s32.totalorder %s101, %s103
      %p110 = scmp.eq.s32.totalorder %s34, 1
      %p111 = por %p109, %p110
      %p112 = scmp.ne.s32.totalorder %s103, %s104
      %p113 = scmp.eq.s32.totalorder %s34, 0
      %p114 = por %p112, %p113
      %p115 = scmp.ne.s32.totalorder %s103, %s104
      %p116 = scmp.eq.s32.totalorder %s35, 1
      %p117 = por %p115, %p116
      %p119 = scmp.ne.s32.totalorder %s104, %s118
      %p120 = scmp.eq.s32.totalorder %s35, 0
      %p121 = por %p119, %p120
      %s123 = sadd.s32 %s122, 1
      %p126 = scmp.eq.s32.totalorder %s29, 1
      %p127 = scmp.ne.s32.totalorder %s122, %s124
      %p128 = scmp.eq.s32.totalorder %s29, 0
      %p129 = por %p127, %p128
      %p130 = scmp.ne.s32.totalorder %s122, %s124
      %p131 = scmp.eq.s32.totalorder %s34, 1
      %p132 = por %p130, %p131
      %p133 = scmp.ne.s32.totalorder %s124, %s125
      %p134 = scmp.eq.s32.totalorder %s34, 0
      %p135 = por %p133, %p134
      %p136 = scmp.ne.s32.totalorder %s124, %s125
      %p137 = scmp.eq.s32.totalorder %s35, 1
      %p138 = por %p136, %p137
      %p140 = scmp.ne.s32.totalorder %s125, %s139
      %p141 = scmp.eq.s32.totalorder %s35, 0
      %p142 = por %p140, %p141
      %s144 = sadd.s32 %s143, 1
      %p147 = scmp.eq.s32.totalorder %s29, 1
      %p148 = scmp.ne.s32.totalorder %s143, %s145
      %p149 = scmp.eq.s32.totalorder %s29, 0
      %p150 = por %p148, %p149
      %p151 = scmp.ne.s32.totalorder %s143, %s145
      %p152 = scmp.eq.s32.totalorder %s34, 1
      %p153 = por %p151, %p152
      %p154 = scmp.ne.s32.totalorder %s145, %s146
      %p155 = scmp.eq.s32.totalorder %s34, 0
      %p156 = por %p154, %p155
      %p157 = scmp.ne.s32.totalorder %s145, %s146
      %p158 = scmp.eq.s32.totalorder %s35, 1
      %p159 = por %p157, %p158
      %p161 = scmp.ne.s32.totalorder %s146, %s160
      %p162 = scmp.eq.s32.totalorder %s35, 0
      %p163 = por %p161, %p162
      %s165 = sadd.s32 %s164, 1
      %p168 = scmp.eq.s32.totalorder %s29, 1
      %p169 = scmp.ne.s32.totalorder %s164, %s166
      %p170 = scmp.eq.s32.totalorder %s29, 0
      %p171 = por %p169, %p170
      %p172 = scmp.ne.s32.totalorder %s164, %s166
      %p173 = scmp.eq.s32.totalorder %s34, 1
      %p174 = por %p172, %p173
      %p175 = scmp.ne.s32.totalorder %s166, %s167
      %p176 = scmp.eq.s32.totalorder %s34, 0
      %p177 = por %p175, %p176
      %p178 = scmp.ne.s32.totalorder %s166, %s167
      %p179 = scmp.eq.s32.totalorder %s35, 1
      %p180 = por %p178, %p179
      %p182 = scmp.ne.s32.totalorder %s167, %s181
      %p183 = scmp.eq.s32.totalorder %s35, 0
      %p184 = por %p182, %p183
      %s186 = sadd.s32 %s185, 1
      %p189 = scmp.eq.s32.totalorder %s29, 1
      %p190 = scmp.ne.s32.totalorder %s185, %s187
      %p191 = scmp.eq.s32.totalorder %s29, 0
      %p192 = por %p190, %p191
      %p193 = scmp.ne.s32.totalorder %s185, %s187
      %p194 = scmp.eq.s32.totalorder %s34, 1
      %p195 = por %p193, %p194
      %p196 = scmp.ne.s32.totalorder %s187, %s188
      %p197 = scmp.eq.s32.totalorder %s34, 0
      %p198 = por %p196, %p197
      %p199 = scmp.ne.s32.totalorder %s187, %s188
      %p200 = scmp.eq.s32.totalorder %s35, 1
      %p201 = por %p199, %p200
      %p203 = scmp.ne.s32.totalorder %s188, %s202
      %p204 = scmp.eq.s32.totalorder %s35, 0
      %p205 = por %p203, %p204
      %s207 = sadd.s32 %s206, 1
      %p210 = scmp.eq.s32.totalorder %s29, 1
      %p211 = scmp.ne.s32.totalorder %s206, %s208
      %p212 = scmp.eq.s32.totalorder %s29, 0
      %p213 = por %p211, %p212
      %p214 = scmp.ne.s32.totalorder %s206, %s208
      %p215 = scmp.eq.s32.totalorder %s34, 1
      %p216 = por %p214, %p215
      %p217 = scmp.ne.s32.totalorder %s208, %s209
      %p218 = scmp.eq.s32.totalorder %s34, 0
      %p219 = por %p217, %p218
      %p220 = scmp.ne.s32.totalorder %s208, %s209
      %p221 = scmp.eq.s32.totalorder %s35, 1
      %p222 = por %p220, %p221
      %p224 = scmp.ne.s32.totalorder %s209, %s223
      %p225 = scmp.eq.s32.totalorder %s35, 0
      %p226 = por %p224, %p225
      %s228 = sadd.s32 %s227, 1
      %p231 = scmp.eq.s32.totalorder %s29, 1
      %p232 = scmp.ne.s32.totalorder %s227, %s229
      %p233 = scmp.eq.s32.totalorder %s29, 0
      %p234 = por %p232, %p233
      %p235 = scmp.ne.s32.totalorder %s227, %s229
      %p236 = scmp.eq.s32.totalorder %s34, 1
      %p237 = por %p235, %p236
      %p238 = scmp.ne.s32.totalorder %s229, %s230
      %p239 = scmp.eq.s32.totalorder %s34, 0
      %p240 = por %p238, %p239
      %p241 = scmp.ne.s32.totalorder %s229, %s230
      %p242 = scmp.eq.s32.totalorder %s35, 1
      %p243 = por %p241, %p242
      %p245 = scmp.ne.s32.totalorder %s230, %s244
      %p246 = scmp.eq.s32.totalorder %s35, 0
      %p247 = por %p245, %p246
      %s249 = sadd.s32 %s248, 1
      %p252 = scmp.eq.s32.totalorder %s29, 1
      %p253 = scmp.ne.s32.totalorder %s248, %s250
      %p254 = scmp.eq.s32.totalorder %s29, 0
      %p255 = por %p253, %p254
      %p256 = scmp.ne.s32.totalorder %s248, %s250
      %p257 = scmp.eq.s32.totalorder %s34, 1
      %p258 = por %p256, %p257
      %p259 = scmp.ne.s32.totalorder %s250, %s251
      %p260 = scmp.eq.s32.totalorder %s34, 0
      %p261 = por %p259, %p260
      %p262 = scmp.ne.s32.totalorder %s250, %s251
      %p263 = scmp.eq.s32.totalorder %s35, 1
      %p264 = por %p262, %p263
      %p266 = scmp.ne.s32.totalorder %s251, %s265
      %p267 = scmp.eq.s32.totalorder %s35, 0
      %p268 = por %p266, %p267
      %s270 = sadd.s32 %s269, 1
      %p273 = scmp.eq.s32.totalorder %s29, 1
      %p274 = scmp.ne.s32.totalorder %s269, %s271
      %p275 = scmp.eq.s32.totalorder %s29, 0
      %p276 = por %p274, %p275
      %p277 = scmp.ne.s32.totalorder %s269, %s271
      %p278 = scmp.eq.s32.totalorder %s34, 1
      %p279 = por %p277, %p278
      %p280 = scmp.ne.s32.totalorder %s271, %s272
      %p281 = scmp.eq.s32.totalorder %s34, 0
      %p282 = por %p280, %p281
      %p283 = scmp.ne.s32.totalorder %s271, %s272
      %p284 = scmp.eq.s32.totalorder %s35, 1
      %p285 = por %p283, %p284
      %p287 = scmp.ne.s32.totalorder %s272, %s286
      %p288 = scmp.eq.s32.totalorder %s35, 0
      %p289 = por %p287, %p288
      %s291 = sadd.s32 %s290, 1
      %p294 = scmp.eq.s32.totalorder %s29, 1
      %p295 = scmp.ne.s32.totalorder %s290, %s292
      %p296 = scmp.eq.s32.totalorder %s29, 0
      %p297 = por %p295, %p296
      %p298 = scmp.ne.s32.totalorder %s290, %s292
      %p299 = scmp.eq.s32.totalorder %s34, 1
      %p300 = por %p298, %p299
      %p301 = scmp.ne.s32.totalorder %s292, %s293
      %p302 = scmp.eq.s32.totalorder %s34, 0
      %p303 = por %p301, %p302
      %p304 = scmp.ne.s32.totalorder %s292, %s293
      %p305 = scmp.eq.s32.totalorder %s35, 1
      %p306 = por %p304, %p305
      %p308 = scmp.ne.s32.totalorder %s293, %s307
      %p309 = scmp.eq.s32.totalorder %s35, 0
      %p310 = por %p308, %p309
      %s312 = sadd.s32 %s311, 1
      %p315 = scmp.eq.s32.totalorder %s29, 1
      %p316 = scmp.ne.s32.totalorder %s311, %s313
      %p317 = scmp.eq.s32.totalorder %s29, 0
      %p318 = por %p316, %p317
      %p319 = scmp.ne.s32.totalorder %s311, %s313
      %p320 = scmp.eq.s32.totalorder %s34, 1
      %p321 = por %p319, %p320
      %p322 = scmp.ne.s32.totalorder %s313, %s314
      %p323 = scmp.eq.s32.totalorder %s34, 0
      %p324 = por %p322, %p323
      %p325 = scmp.ne.s32.totalorder %s313, %s314
      %p326 = scmp.eq.s32.totalorder %s35, 1
      %p327 = por %p325, %p326
      %p329 = scmp.ne.s32.totalorder %s314, %s328
      %p330 = scmp.eq.s32.totalorder %s35, 0
      %p331 = por %p329, %p330
      %s333 = sadd.s32 %s332, 1
      %p336 = scmp.eq.s32.totalorder %s29, 1
      %p337 = scmp.ne.s32.totalorder %s332, %s334
      %p338 = scmp.eq.s32.totalorder %s29, 0
      %p339 = por %p337, %p338
      %p340 = scmp.ne.s32.totalorder %s332, %s334
      %p341 = scmp.eq.s32.totalorder %s34, 1
      %p342 = por %p340, %p341
      %p343 = scmp.ne.s32.totalorder %s334, %s335
      %p344 = scmp.eq.s32.totalorder %s34, 0
      %p345 = por %p343, %p344
      %p346 = scmp.ne.s32.totalorder %s334, %s335
      %p347 = scmp.eq.s32.totalorder %s35, 1
      %p348 = por %p346, %p347
      %p350 = scmp.ne.s32.totalorder %s335, %s349
      %p351 = scmp.eq.s32.totalorder %s35, 0
      %p352 = por %p350, %p351
      %s354 = sadd.s32 %s353, 1
      %p357 = scmp.eq.s32.totalorder %s29, 1
      %p358 = scmp.ne.s32.totalorder %s353, %s355
      %p359 = scmp.eq.s32.totalorder %s29, 0
      %p360 = por %p358, %p359
      %p361 = scmp.ne.s32.totalorder %s353, %s355
      %p362 = scmp.eq.s32.totalorder %s34, 1
      %p363 = por %p361, %p362
      %p364 = scmp.ne.s32.totalorder %s355, %s356
      %p365 = scmp.eq.s32.totalorder %s34, 0
      %p366 = por %p364, %p365
      %p367 = scmp.ne.s32.totalorder %s355, %s356
      %p368 = scmp.eq.s32.totalorder %s35, 1
      %p369 = por %p367, %p368
      %p371 = scmp.ne.s32.totalorder %s356, %s370
      %p372 = scmp.eq.s32.totalorder %s35, 0
      %p373 = por %p371, %p372
      %s375 = sadd.s32 %s374, 1
      %p378 = scmp.eq.s32.totalorder %s29, 1
      %p379 = scmp.ne.s32.totalorder %s374, %s376
      %p380 = scmp.eq.s32.totalorder %s29, 0
      %p381 = por %p379, %p380
      %p382 = scmp.ne.s32.totalorder %s374, %s376
      %p383 = scmp.eq.s32.totalorder %s34, 1
      %p384 = por %p382, %p383
      %p385 = scmp.ne.s32.totalorder %s376, %s377
      %p386 = scmp.eq.s32.totalorder %s34, 0
      %p387 = por %p385, %p386
      %p388 = scmp.ne.s32.totalorder %s376, %s377
      %p389 = scmp.eq.s32.totalorder %s35, 1
      %p390 = por %p388, %p389
      %p392 = scmp.ne.s32.totalorder %s377, %s391
      %p393 = scmp.eq.s32.totalorder %s35, 0
      %p394 = por %p392, %p393
      %s396 = sadd.s32 %s395, 1
      %p399 = scmp.eq.s32.totalorder %s29, 1
      %p400 = scmp.ne.s32.totalorder %s395, %s397
      %p401 = scmp.eq.s32.totalorder %s29, 0
      %p402 = por %p400, %p401
      %p403 = scmp.ne.s32.totalorder %s395, %s397
      %p404 = scmp.eq.s32.totalorder %s34, 1
      %p405 = por %p403, %p404
      %p406 = scmp.ne.s32.totalorder %s397, %s398
      %p407 = scmp.eq.s32.totalorder %s34, 0
      %p408 = por %p406, %p407
      %p409 = scmp.ne.s32.totalorder %s397, %s398
      %p410 = scmp.eq.s32.totalorder %s35, 1
      %p411 = por %p409, %p410
      %p413 = scmp.ne.s32.totalorder %s398, %s412
      %p414 = scmp.eq.s32.totalorder %s35, 0
      %p415 = por %p413, %p414
      %s417 = sadd.s32 %s416, 1
      %p420 = scmp.eq.s32.totalorder %s29, 1
      %p421 = scmp.ne.s32.totalorder %s416, %s418
      %p422 = scmp.eq.s32.totalorder %s29, 0
      %p423 = por %p421, %p422
      %p424 = scmp.ne.s32.totalorder %s416, %s418
      %p425 = scmp.eq.s32.totalorder %s34, 1
      %p426 = por %p424, %p425
      %p427 = scmp.ne.s32.totalorder %s418, %s419
      %p428 = scmp.eq.s32.totalorder %s34, 0
      %p429 = por %p427, %p428
      %p430 = scmp.ne.s32.totalorder %s418, %s419
      %p431 = scmp.eq.s32.totalorder %s35, 1
      %p432 = por %p430, %p431
      %p434 = scmp.ne.s32.totalorder %s419, %s433
      %p435 = scmp.eq.s32.totalorder %s35, 0
      %p436 = por %p434, %p435
      %s437 = ssub.s32 %s36, %s48
      %s438 = ssub.s32 %s37, %s44
      %s439 = sor.u32 %s437, %s438
      %p440 = scmp.eq.s32.totalorder %s439, 0
      %s442 = sadd.s32 %s441, 1
      %s443 = scalar_select %p440, %s441, %s442
      %p446 = pneg %p440
      %p447 = scmp.eq.s32.totalorder %s29, 1
      %p448 = por %p446, %p447
      %p449 = scmp.ne.s32.totalorder %s441, %s444
      %p450 = scmp.eq.s32.totalorder %s29, 0
      %p451 = por %p449, %p450
      %p452 = scmp.ne.s32.totalorder %s441, %s444
      %p453 = scmp.eq.s32.totalorder %s34, 1
      %p454 = por %p452, %p453
      %p455 = scmp.ne.s32.totalorder %s444, %s445
      %p456 = scmp.eq.s32.totalorder %s34, 0
      %p457 = por %p455, %p456
      %p458 = scmp.ne.s32.totalorder %s444, %s445
      %p459 = scmp.eq.s32.totalorder %s35, 1
      %p460 = por %p458, %p459
      %p462 = scmp.ne.s32.totalorder %s445, %s461
      %p463 = scmp.eq.s32.totalorder %s35, 0
      %p464 = por %p462, %p463
      %p465 = scmp.le.s32.totalorder 1, %s29
      %p466 = scmp.lt.s32.totalorder %s29, 3
      %p467 = pnand %p465, %p466
      %p468 = pneg %p467
      // Predicated region
      $region9: #{tpu_custom_call.1} parent=5 // pred_check
        _
      $region10: #{tpu_custom_call.1} parent=5 // pred_check_branch
        %470 = sbr.rel (%p467) target = $region12
      $region11: #{tpu_custom_call.1} parent=5 // pred_region
        %s471 = ssub.s32 %s29, 1
        // Predicated region
        $region13: #{tpu_custom_call.1} parent=11 // pred_check
          %p472 = pneg %p114
        $region14: #{tpu_custom_call.1} parent=11 // pred_check_branch
          %474 = sbr.rel (%p472) target = $region16
        $region15: #{tpu_custom_call.1} parent=11 // pred_region
          _
        $region16: #{tpu_custom_call.1} parent=11 // pred_fallthru
          _
        // Predicated region
        $region17: #{tpu_custom_call.1} parent=11 // pred_check
          %p475 = pneg %p135
        $region18: #{tpu_custom_call.1} parent=11 // pred_check_branch
          %477 = sbr.rel (%p475) target = $region20
        $region19: #{tpu_custom_call.1} parent=11 // pred_region
          _
        $region20: #{tpu_custom_call.1} parent=11 // pred_fallthru
          _
        // Predicated region
        $region21: #{tpu_custom_call.1} parent=11 // pred_check
          %p478 = pneg %p156
        $region22: #{tpu_custom_call.1} parent=11 // pred_check_branch
          %480 = sbr.rel (%p478) target = $region24
        $region23: #{tpu_custom_call.1} parent=11 // pred_region
          _
        $region24: #{tpu_custom_call.1} parent=11 // pred_fallthru
          _
        // Predicated region
        $region25: #{tpu_custom_call.1} parent=11 // pred_check
          %p481 = pneg %p177
        $region26: #{tpu_custom_call.1} parent=11 // pred_check_branch
          %483 = sbr.rel (%p481) target = $region28
        $region27: #{tpu_custom_call.1} parent=11 // pred_region
          _
        $region28: #{tpu_custom_call.1} parent=11 // pred_fallthru
          _
        // Predicated region
        $region29: #{tpu_custom_call.1} parent=11 // pred_check
          %p484 = pneg %p198
        $region30: #{tpu_custom_call.1} parent=11 // pred_check_branch
          %486 = sbr.rel (%p484) target = $region32
        $region31: #{tpu_custom_call.1} parent=11 // pred_region
          _
        $region32: #{tpu_custom_call.1} parent=11 // pred_fallthru
          _
        // Predicated region
        $region33: #{tpu_custom_call.1} parent=11 // pred_check
          %p487 = pneg %p219
        $region34: #{tpu_custom_call.1} parent=11 // pred_check_branch
          %489 = sbr.rel (%p487) target = $region36
        $region35: #{tpu_custom_call.1} parent=11 // pred_region
          _
        $region36: #{tpu_custom_call.1} parent=11 // pred_fallthru
          _
        // Predicated region
        $region37: #{tpu_custom_call.1} parent=11 // pred_check
          %p490 = pneg %p240
        $region38: #{tpu_custom_call.1} parent=11 // pred_check_branch
          %492 = sbr.rel (%p490) target = $region40
        $region39: #{tpu_custom_call.1} parent=11 // pred_region
          %s494 = ssub.s32 512, 512
          %495 = vsyncadd [#allocation5], %s494
          %s496 = sshll.u32 [#allocation4], 4
          %s497 = int_to_ptr.vmem [resolvable:$true] %s496
          %502 = dma.hbm_to_vmem [thread:$0]  %s8, 512, %s497, [#allocation5], 64, 64, 4
        $region40: #{tpu_custom_call.1} parent=11 // pred_fallthru
          _
        // Predicated region
        $region41: #{tpu_custom_call.1} parent=11 // pred_check
          %p503 = pneg %p261
        $region42: #{tpu_custom_call.1} parent=11 // pred_check_branch
          %505 = sbr.rel (%p503) target = $region44
        $region43: #{tpu_custom_call.1} parent=11 // pred_region
          _
        $region44: #{tpu_custom_call.1} parent=11 // pred_fallthru
          _
        // Predicated region
        $region45: #{tpu_custom_call.1} parent=11 // pred_check
          %p506 = pneg %p282
        $region46: #{tpu_custom_call.1} parent=11 // pred_check_branch
          %508 = sbr.rel (%p506) target = $region48
        $region47: #{tpu_custom_call.1} parent=11 // pred_region
          _
        $region48: #{tpu_custom_call.1} parent=11 // pred_fallthru
          _
        // Predicated region
        $region49: #{tpu_custom_call.1} parent=11 // pred_check
          %p509 = pneg %p303
        $region50: #{tpu_custom_call.1} parent=11 // pred_check_branch
          %511 = sbr.rel (%p509) target = $region52
        $region51: #{tpu_custom_call.1} parent=11 // pred_region
          _
        $region52: #{tpu_custom_call.1} parent=11 // pred_fallthru
          _
        // Predicated region
        $region53: #{tpu_custom_call.1} parent=11 // pred_check
          %p512 = pneg %p324
        $region54: #{tpu_custom_call.1} parent=11 // pred_check_branch
          %514 = sbr.rel (%p512) target = $region56
        $region55: #{tpu_custom_call.1} parent=11 // pred_region
          %s516 = ssub.s32 512, 512
          %517 = vsyncadd [#allocation8], %s516
          %s518 = sshll.u32 [#allocation7], 4
          %s519 = int_to_ptr.vmem [resolvable:$true] %s518
          %524 = dma.hbm_to_vmem [thread:$0]  %s12, 512, %s519, [#allocation8], 64, 64, 4
        $region56: #{tpu_custom_call.1} parent=11 // pred_fallthru
          _
        // Predicated region
        $region57: #{tpu_custom_call.1} parent=11 // pred_check
          %p525 = pneg %p345
        $region58: #{tpu_custom_call.1} parent=11 // pred_check_branch
          %527 = sbr.rel (%p525) target = $region60
        $region59: #{tpu_custom_call.1} parent=11 // pred_region
          _
        $region60: #{tpu_custom_call.1} parent=11 // pred_fallthru
          _
        // Predicated region
        $region61: #{tpu_custom_call.1} parent=11 // pred_check
          %p528 = pneg %p366
        $region62: #{tpu_custom_call.1} parent=11 // pred_check_branch
          %530 = sbr.rel (%p528) target = $region64
        $region63: #{tpu_custom_call.1} parent=11 // pred_region
          _
        $region64: #{tpu_custom_call.1} parent=11 // pred_fallthru
          _
        // Predicated region
        $region65: #{tpu_custom_call.1} parent=11 // pred_check
          %p531 = pneg %p387
        $region66: #{tpu_custom_call.1} parent=11 // pred_check_branch
          %533 = sbr.rel (%p531) target = $region68
        $region67: #{tpu_custom_call.1} parent=11 // pred_region
          _
        $region68: #{tpu_custom_call.1} parent=11 // pred_fallthru
          _
        // Predicated region
        $region69: #{tpu_custom_call.1} parent=11 // pred_check
          %p534 = pneg %p408
        $region70: #{tpu_custom_call.1} parent=11 // pred_check_branch
          %536 = sbr.rel (%p534) target = $region72
        $region71: #{tpu_custom_call.1} parent=11 // pred_region
          _
        $region72: #{tpu_custom_call.1} parent=11 // pred_fallthru
          _
        // Predicated region
        $region73: #{tpu_custom_call.1} parent=11 // pred_check
          %p537 = pneg %p429
        $region74: #{tpu_custom_call.1} parent=11 // pred_check_branch
          %539 = sbr.rel (%p537) target = $region76
        $region75: #{tpu_custom_call.1} parent=11 // pred_region
          _
        $region76: #{tpu_custom_call.1} parent=11 // pred_fallthru
          _
      $region12: #{tpu_custom_call.1} parent=5 // pred_fallthru
        _
      %p540 = scmp.lt.s32.totalorder %s29, 2
      // Predicated region
      $region77: #{tpu_custom_call.1} parent=5 // pred_check
        %p541 = pneg %p540
      $region78: #{tpu_custom_call.1} parent=5 // pred_check_branch
        %543 = sbr.rel (%p541) target = $region80
      $region79: #{tpu_custom_call.1} parent=5 // pred_region
        // Predicated region
        $region81: #{tpu_custom_call.1} parent=79 // pred_check
          %p544 = pneg %p61
        $region82: #{tpu_custom_call.1} parent=79 // pred_check_branch
          %546 = sbr.rel (%p544) target = $region84
        $region83: #{tpu_custom_call.1} parent=79 // pred_region
          %p547 = scmp.lt.s32.totalorder %s36, 1
          %s548 = scalar_select %p547, %s36, 1
          %s549 = smul.addr %s548, 2
          %s550 = smul.addr %s549, 8
          %s551 = scalar_lea.vmem %s0, %s550
        $region84: #{tpu_custom_call.1} parent=79 // pred_fallthru
          _
        // Predicated region
        $region85: #{tpu_custom_call.1} parent=79 // pred_check
          %p552 = pneg %p87
        $region86: #{tpu_custom_call.1} parent=79 // pred_check_branch
          %554 = sbr.rel (%p552) target = $region88
        $region87: #{tpu_custom_call.1} parent=79 // pred_region
          %p555 = scmp.lt.s32.totalorder %s36, 1
          %s556 = scalar_select %p555, %s36, 1
          %s557 = scalar_lea.vmem %s1, %s556
        $region88: #{tpu_custom_call.1} parent=79 // pred_fallthru
          _
      $region80: #{tpu_custom_call.1} parent=5 // pred_fallthru
        _
      %p558 = scmp.le.s32.totalorder 1, %s29
      %p559 = scmp.lt.s32.totalorder %s29, 3
      %p560 = pnand %p558, %p559
      %p561 = pneg %p560
      // Predicated region
      $region89: #{tpu_custom_call.1} parent=5 // pred_check
        _
      $region90: #{tpu_custom_call.1} parent=5 // pred_check_branch
        %563 = sbr.rel (%p560) target = $region92
      $region91: #{tpu_custom_call.1} parent=5 // pred_region
        %s564 = ssub.s32 %s29, 1
        // Predicated region
        $region93: #{tpu_custom_call.1} parent=91 // pred_check
          %p565 = pneg %p240
        $region94: #{tpu_custom_call.1} parent=91 // pred_check_branch
          %567 = sbr.rel (%p565) target = $region96
        $region95: #{tpu_custom_call.1} parent=91 // pred_region
          %568 = dma.done [#allocation5], 512
        $region96: #{tpu_custom_call.1} parent=91 // pred_fallthru
          _
        // Predicated region
        $region97: #{tpu_custom_call.1} parent=91 // pred_check
          %p569 = pneg %p324
        $region98: #{tpu_custom_call.1} parent=91 // pred_check_branch
          %571 = sbr.rel (%p569) target = $region100
        $region99: #{tpu_custom_call.1} parent=91 // pred_region
          %572 = dma.done [#allocation8], 512
        $region100: #{tpu_custom_call.1} parent=91 // pred_fallthru
          _
        %p573 = scmp.lt.s32.totalorder %s38, 1
        %s574 = scalar_select %p573, %s38, 1
        %s575 = smul.addr %s574, 2
        %s576 = smul.addr %s575, 8
        %s577 = scalar_lea.vmem %s0, %s576
        %p578 = pneg %p67
        %p579 = pneg %p64
        %p580 = scmp.lt.s32.totalorder %s38, 1
        %s581 = scalar_select %p580, %s38, 1
        %s582 = scalar_lea.vmem %s1, %s581
        %p583 = pneg %p93
        %p584 = pneg %p90
        %p585 = pneg %p114
        %p586 = pneg %p111
        %p587 = pneg %p135
        %p588 = pneg %p132
        %p589 = pneg %p156
        %p590 = pneg %p153
        %p591 = pneg %p177
        %p592 = pneg %p174
        %p593 = pneg %p198
        %p594 = pneg %p195
        %p595 = pneg %p219
        %p596 = pneg %p216
        %p597 = pneg %p240
        %p598 = pneg %p237
        %p599 = pneg %p261
        %p600 = pneg %p258
        %p601 = pneg %p282
        %p602 = pneg %p279
        %p603 = pneg %p303
        %p604 = pneg %p300
        %p605 = pneg %p324
        %p606 = pneg %p321
        %p607 = pneg %p345
        %p608 = pneg %p342
        %p609 = pneg %p366
        %p610 = pneg %p363
        %p611 = pneg %p387
        %p612 = pneg %p384
        %p613 = pneg %p408
        %p614 = pneg %p405
        %p615 = pneg %p429
        %p616 = pneg %p426
        %p617 = pneg %p457
        %p618 = pneg %p454
        %s619 = sand.u32 %s444, 1
        %s620 = scalar_lea.sflag [#allocation6], %s619
        %s621 = sand.u32 %s444, 1
        %s622 = smul.addr %s621, 16
        %s623 = scalar_lea.vmem [#allocation9], %s622
        %p624 = scmp.lt.s32.totalorder %s38, 1
        %s625 = scalar_select %p624, %s38, 1
        %s626 = smul.addr %s625, 2
        %s627 = smul.addr %s626, 8
        %s628 = scalar_lea.vmem %s0, %s627
        %p629 = scmp.lt.s32.totalorder %s38, 1
        %s630 = scalar_select %p629, %s38, 1
        %s631 = scalar_lea.vmem %s1, %s630
        %s632 = smul.u32 2, %s39
        %v634 = vld [vmem:[%s2] sm:$0x1]
        %v635 = vld [vmem:[%s3] sm:$0x1]
        %p636 = scmp.eq.s32.totalorder %s39, 0
        // Predicated region
        $region101: #{tpu_custom_call.1} parent=91 // pred_check
          %p637 = pneg %p636
        $region102: #{tpu_custom_call.1} parent=91 // pred_check_branch
          %639 = sbr.rel (%p637) target = $region104
        $region103: #{tpu_custom_call.1} parent=91 // pred_region
          %v640 = vld [vmem:[%s628] sm:$0xff]
          %v641 = vld [vmem:[%s628 + $0x8] sm:$0xff]
          %vm642 = vcmask 523264
          %v643 = vsel %vm642, %v640, 0.0
          %644 = vadd.xlane.f32.xlu0 %v643
          %v645 = vpop.xlane.xlu0 %644
          %v646 = vsel %vm642, %v641, 0.0
          %647 = vadd.xlane.f32.xlu0 %v646
          %v648 = vpop.xlane.xlu0 %647
          %v649 = vrcp.pop 64.0
          %v650 = vmul.f32 %v645, %v649
          %v651 = vmul.f32 %v648, %v649
          %v652 = vsub.f32 %v640, %v650
          %v653 = vsub.f32 %v641, %v651
          %v654 = vmul.f32 %v652, %v652
          %v655 = vmul.f32 %v653, %v653
          %v656 = vsel %vm642, %v654, 0.0
          %657 = vadd.xlane.f32.xlu0 %v656
          %v658 = vpop.xlane.xlu0 %657
          %v659 = vsel %vm642, %v655, 0.0
          %660 = vadd.xlane.f32.xlu0 %v659
          %v661 = vpop.xlane.xlu0 %660
          %v662 = vmul.f32 %v658, %v649
          %v663 = vmul.f32 %v661, %v649
          %v664 = vadd.f32 %v662, 1e-05
          %v665 = vadd.f32 %v663, 1e-05
          %v666 = vrsqrt.pop %v664
          %v667 = vrsqrt.pop %v665
          %v668 = vmul.f32 %v652, %v666
          %v669 = vmul.f32 %v653, %v667
          %v671 = vlaneseq
          %v672 = vshrl.u32 %v671, 7
          %v673 = vsub.s32 0, %v672
          %v674 = vrot.slane %v634, %v673
          %v676 = vmul.f32 %v668, %v674
          %v677 = vmul.f32 %v669, %v674
          %v679 = vlaneseq
          %v680 = vshrl.u32 %v679, 7
          %v681 = vsub.s32 0, %v680
          %v682 = vrot.slane %v635, %v681
          %v684 = vadd.f32 %v676, %v682
          %v685 = vadd.f32 %v677, %v682
          %v686 = vpack.c.bf16 %v685, %v684
          %v687 = vld [vmem:[%s6] sm:$0xf]
          %v688 = vld [vmem:[%s6 + $0x4] sm:$0xf]
          %v689 = vld [vmem:[%s6 + $0x8] sm:$0xf]
          %v690 = vld [vmem:[%s6 + $0xc] sm:$0xf]
          %v691 = vld [vmem:[%s6 + $0x10] sm:$0xf]
          %v692 = vld [vmem:[%s6 + $0x14] sm:$0xf]
          %v693 = vld [vmem:[%s6 + $0x18] sm:$0xf]
          %v694 = vld [vmem:[%s6 + $0x1c] sm:$0xf]
          %v695 = vld [vmem:[%s7] sm:$0x1]
          %v697 = vlaneseq
          %v698 = vshrl.u32 %v697, 7
          %v699 = vsub.s32 0, %v698
          %v700 = vrot.slane %v695, %v699
          %v710 = vunpack.c.l.b16 %v687
          %v711 = vunpack.c.l.b16 %v688
          %v712 = vunpack.c.l.b16 %v689
          %v713 = vunpack.c.l.b16 %v690
          %v714 = vunpack.c.l.b16 %v691
          %v715 = vunpack.c.l.b16 %v692
          %v716 = vunpack.c.l.b16 %v693
          %v717 = vunpack.c.l.b16 %v694
          %v718 = vpack.c.b16 %v711, %v710
          %v719 = vpack.c.b16 %v713, %v712
          %v720 = vpack.c.b16 %v715, %v714
          %v721 = vpack.c.b16 %v717, %v716
          %v727 = vsel %vm642, %v686, 0
          %729 = vmatprep.subr.bf16.mxu0 0
          %730 = vmatpush1.bf16.msra.mxu0 %v718
          %731 = vmatprep.subr.bf16.mxu0 0
          %732 = vmatpush1.bf16.msra.mxu0 %v719
          %733 = vmatprep.subr.bf16.mxu0 0
          %734 = vmatpush1.bf16.msra.mxu0 %v720
          %735 = vmatprep.subr.bf16.mxu0 0
          %736 = vmatpush1.bf16.msra.mxu0 %v721
          %737 = vmatprep.subr.bf16.mxu0 0
          %738 = vmatpush1.bf16.msra.mxu0 0
          %739 = vmatprep.subr.bf16.mxu0 0
          %740 = vmatpush1.bf16.msra.mxu0 0
          %741 = vmatprep.subr.bf16.mxu0 0
          %742 = vmatpush1.bf16.msra.mxu0 0
          %743 = vmatprep.subr.bf16.mxu0 0
          %744 = vmatpush1.bf16.msra.mxu0 0
          %745 = vmatprep.subr.bf16.mxu0 0
          %746 = vmatpush1.bf16.msra.mxu0 0
          %747 = vmatprep.subr.bf16.mxu0 0
          %748 = vmatpush1.bf16.msra.mxu0 0
          %749 = vmatprep.subr.bf16.mxu0 0
          %750 = vmatpush1.bf16.msra.mxu0 0
          %751 = vmatprep.subr.bf16.mxu0 0
          %752 = vmatpush1.bf16.msra.mxu0 0
          %753 = vmatprep.subr.bf16.mxu0 0
          %754 = vmatpush1.bf16.msra.mxu0 0
          %755 = vmatprep.subr.bf16.mxu0 0
          %756 = vmatpush1.bf16.msra.mxu0 0
          %757 = vmatprep.subr.bf16.mxu0 0
          %758 = vmatpush1.bf16.msra.mxu0 0
          %759 = vmatprep.subr.bf16.mxu0 0
          %760 = vmatpush1.bf16.msra.mxu0 0
          %761 = vmatprep.mubr.bf16.mxu0 0
          %762 = vmatmul.mubr.bf16.gmra.mrb[0].mxu0 %v727
          %v763 = vpop.f32.mrb[0].mxu0
          %v764 = vadd.f32 %v700, %v763
          %v765 = vpop.f32.mrb[0].mxu0
          %v766 = vpop.f32.mrb[0].mxu0
          %v767 = vadd.f32 %v700, %v766
          %v768 = vpop.f32.mrb[0].mxu0
          %769 = vdwg.mxu0
          %v770 = vpack.c.bf16 %v767, %v764
          %771 = vst.msk [vmem:[#allocation2] sm:$0xff] %vm642, %v770
          %773 = vrot.lane.b32.xlu0 %v770, 64
          %v774 = vpop.permute.xlu0 %773
          %776 = vst.msk [vmem:[#allocation3] sm:$0xff] %vm642, %v774
        $region104: #{tpu_custom_call.1} parent=91 // pred_fallthru
          _
        %s777 = smul.u32 %s39, 16
        %s778 = scalar_lea.vmem %s628, %s777
        %v779 = vld [vmem:[%s778] sm:$0xff]
        %v780 = vld [vmem:[%s778 + $0x8] sm:$0xff]
        %vm781 = vcmask 523264
        %v782 = vsel %vm781, %v779, 0.0
        %783 = vadd.xlane.f32.xlu0 %v782
        %v784 = vpop.xlane.xlu0 %783
        %v785 = vsel %vm781, %v780, 0.0
        %786 = vadd.xlane.f32.xlu0 %v785
        %v787 = vpop.xlane.xlu0 %786
        %v788 = vrcp.pop 64.0
        %v789 = vmul.f32 %v784, %v788
        %v790 = vmul.f32 %v787, %v788
        %v791 = vsub.f32 %v779, %v789
        %v792 = vsub.f32 %v780, %v790
        %v793 = vmul.f32 %v791, %v791
        %v794 = vmul.f32 %v792, %v792
        %v795 = vsel %vm781, %v793, 0.0
        %796 = vadd.xlane.f32.xlu0 %v795
        %v797 = vpop.xlane.xlu0 %796
        %v798 = vsel %vm781, %v794, 0.0
        %799 = vadd.xlane.f32.xlu0 %v798
        %v800 = vpop.xlane.xlu0 %799
        %v801 = vmul.f32 %v797, %v788
        %v802 = vmul.f32 %v800, %v788
        %v803 = vadd.f32 %v801, 1e-05
        %v804 = vadd.f32 %v802, 1e-05
        %v805 = vrsqrt.pop %v803
        %v806 = vrsqrt.pop %v804
        %v807 = vmul.f32 %v791, %v805
        %v808 = vmul.f32 %v792, %v806
        %v810 = vlaneseq
        %v811 = vshrl.u32 %v810, 7
        %v812 = vsub.s32 0, %v811
        %v813 = vrot.slane %v634, %v812
        %v815 = vmul.f32 %v807, %v813
        %v816 = vmul.f32 %v808, %v813
        %v818 = vlaneseq
        %v819 = vshrl.u32 %v818, 7
        %v820 = vsub.s32 0, %v819
        %v821 = vrot.slane %v635, %v820
        %v823 = vadd.f32 %v815, %v821
        %v824 = vadd.f32 %v816, %v821
        %v825 = vpack.c.bf16 %v824, %v823
        %v826 = vld [vmem:[%s4] sm:$0xf]
        %v827 = vld [vmem:[%s4 + $0x4] sm:$0xf]
        %v828 = vld [vmem:[%s4 + $0x8] sm:$0xf]
        %v829 = vld [vmem:[%s4 + $0xc] sm:$0xf]
        %v830 = vld [vmem:[%s4 + $0x10] sm:$0xf]
        %v831 = vld [vmem:[%s4 + $0x14] sm:$0xf]
        %v832 = vld [vmem:[%s4 + $0x18] sm:$0xf]
        %v833 = vld [vmem:[%s4 + $0x1c] sm:$0xf]
        %v834 = vld [vmem:[%s5] sm:$0x1]
        %v836 = vlaneseq
        %v837 = vshrl.u32 %v836, 7
        %v838 = vsub.s32 0, %v837
        %v839 = vrot.slane %v834, %v838
        %v849 = vunpack.c.l.b16 %v826
        %v850 = vunpack.c.l.b16 %v827
        %v851 = vunpack.c.l.b16 %v828
        %v852 = vunpack.c.l.b16 %v829
        %v853 = vunpack.c.l.b16 %v830
        %v854 = vunpack.c.l.b16 %v831
        %v855 = vunpack.c.l.b16 %v832
        %v856 = vunpack.c.l.b16 %v833
        %v857 = vpack.c.b16 %v850, %v849
        %v858 = vpack.c.b16 %v852, %v851
        %v859 = vpack.c.b16 %v854, %v853
        %v860 = vpack.c.b16 %v856, %v855
        %v866 = vsel %vm781, %v825, 0
        %868 = vmatprep.subr.bf16.mxu0 0
        %869 = vmatpush1.bf16.msra.mxu0 %v857
        %870 = vmatprep.subr.bf16.mxu0 0
        %871 = vmatpush1.bf16.msra.mxu0 %v858
        %872 = vmatprep.subr.bf16.mxu0 0
        %873 = vmatpush1.bf16.msra.mxu0 %v859
        %874 = vmatprep.subr.bf16.mxu0 0
        %875 = vmatpush1.bf16.msra.mxu0 %v860
        %876 = vmatprep.subr.bf16.mxu0 0
        %877 = vmatpush1.bf16.msra.mxu0 0
        %878 = vmatprep.subr.bf16.mxu0 0
        %879 = vmatpush1.bf16.msra.mxu0 0
        %880 = vmatprep.subr.bf16.mxu0 0
        %881 = vmatpush1.bf16.msra.mxu0 0
        %882 = vmatprep.subr.bf16.mxu0 0
        %883 = vmatpush1.bf16.msra.mxu0 0
        %884 = vmatprep.subr.bf16.mxu0 0
        %885 = vmatpush1.bf16.msra.mxu0 0
        %886 = vmatprep.subr.bf16.mxu0 0
        %887 = vmatpush1.bf16.msra.mxu0 0
        %888 = vmatprep.subr.bf16.mxu0 0
        %889 = vmatpush1.bf16.msra.mxu0 0
        %890 = vmatprep.subr.bf16.mxu0 0
        %891 = vmatpush1.bf16.msra.mxu0 0
        %892 = vmatprep.subr.bf16.mxu0 0
        %893 = vmatpush1.bf16.msra.mxu0 0
        %894 = vmatprep.subr.bf16.mxu0 0
        %895 = vmatpush1.bf16.msra.mxu0 0
        %896 = vmatprep.subr.bf16.mxu0 0
        %897 = vmatpush1.bf16.msra.mxu0 0
        %898 = vmatprep.subr.bf16.mxu0 0
        %899 = vmatpush1.bf16.msra.mxu0 0
        %900 = vmatprep.mubr.bf16.mxu0 0
        %901 = vmatmul.mubr.bf16.gmra.mrb[0].mxu0 %v866
        %v902 = vpop.f32.mrb[0].mxu0
        %v903 = vadd.f32 %v839, %v902
        %v904 = vpop.f32.mrb[0].mxu0
        %v905 = vpop.f32.mrb[0].mxu0
        %v906 = vadd.f32 %v839, %v905
        %v907 = vpop.f32.mrb[0].mxu0
        %908 = vdwg.mxu0
        %v909 = vmul.f32 %v903, 0.25
        %v910 = vmul.f32 %v906, 0.25
        %v911 = vld [vmem:[%s631] sm:$0x1]
        %vm912 = vcmp.gt.f32.partialorder %v911, 0.5
        %v913 = vsel %vm912, -1e+30, 0.0
        %v914 = vpack.c.bf16 %v910, %v909
        %v915 = vld [vmem:[#allocation2] sm:$0xff]
        %v917 = vlaneseq
        %v918 = vshrl.u32 %v917, 7
        %v919 = vsub.s32 0, %v918
        %v920 = vrot.slane %v913, %v919
        %vm922 = vcmask 130048
        %v924 = vsel %vm922, %v914, 0
        %v927 = vsel %vm922, %v915, 0
        %929 = vmatprep.subr.bf16.mxu0 0
        %930 = vmatpush1.bf16.xpose.msra.mxu0 %v927
        %931 = vmatprep.subr.bf16.mxu0 0
        %932 = vmatpush1.bf16.xpose.msra.mxu0 0
        %933 = vmatprep.subr.bf16.mxu0 0
        %934 = vmatpush1.bf16.xpose.msra.mxu0 0
        %935 = vmatprep.subr.bf16.mxu0 0
        %936 = vmatpush1.bf16.xpose.msra.mxu0 0
        %937 = vmatprep.subr.bf16.mxu0 0
        %938 = vmatpush1.bf16.xpose.msra.mxu0 0
        %939 = vmatprep.subr.bf16.mxu0 0
        %940 = vmatpush1.bf16.xpose.msra.mxu0 0
        %941 = vmatprep.subr.bf16.mxu0 0
        %942 = vmatpush1.bf16.xpose.msra.mxu0 0
        %943 = vmatprep.subr.bf16.mxu0 0
        %944 = vmatpush1.bf16.xpose.msra.mxu0 0
        %945 = vmatprep.subr.bf16.mxu0 0
        %946 = vmatpush1.bf16.xpose.msra.mxu0 0
        %947 = vmatprep.subr.bf16.mxu0 0
        %948 = vmatpush1.bf16.xpose.msra.mxu0 0
        %949 = vmatprep.subr.bf16.mxu0 0
        %950 = vmatpush1.bf16.xpose.msra.mxu0 0
        %951 = vmatprep.subr.bf16.mxu0 0
        %952 = vmatpush1.bf16.xpose.msra.mxu0 0
        %953 = vmatprep.subr.bf16.mxu0 0
        %954 = vmatpush1.bf16.xpose.msra.mxu0 0
        %955 = vmatprep.subr.bf16.mxu0 0
        %956 = vmatpush1.bf16.xpose.msra.mxu0 0
        %957 = vmatprep.subr.bf16.mxu0 0
        %958 = vmatpush1.bf16.xpose.msra.mxu0 0
        %959 = vmatprep.subr.bf16.mxu0 0
        %960 = vmatpush1.bf16.xpose.msra.mxu0 0
        %961 = vmatprep.mubr.bf16.mxu0 0
        %962 = vmatmul.mubr.bf16.gmra.mrb[0].mxu0 %v924
        %v963 = vpop.f32.mrb[0].mxu0
        %v964 = vadd.f32 %v920, %v963
        %v965 = vpop.f32.mrb[0].mxu0
        %v966 = vpop.f32.mrb[0].mxu0
        %v967 = vadd.f32 %v920, %v966
        %v968 = vpop.f32.mrb[0].mxu0
        %969 = vdwg.mxu0
        %v970 = vsel %vm922, %v964, -inf
        %971 = vmax.xlane.f32.xlu0 %v970
        %v972 = vpop.xlane.xlu0 %971
        %v973 = vsel %vm922, %v967, -inf
        %974 = vmax.xlane.f32.xlu0 %v973
        %v975 = vpop.xlane.xlu0 %974
        %v976 = vsub.f32 %v964, %v972
        %v977 = vsub.f32 %v967, %v975
        %v978 = vmul.f32 %v976, 1.442695
        %v979 = vpow.pop %v978
        %v980 = vmul.f32 %v977, 1.442695
        %v981 = vpow.pop %v980
        %v982 = vsel %vm922, %v979, 0.0
        %983 = vadd.xlane.f32.xlu0 %v982
        %v984 = vpop.xlane.xlu0 %983
        %v985 = vsel %vm922, %v981, 0.0
        %986 = vadd.xlane.f32.xlu0 %v985
        %v987 = vpop.xlane.xlu0 %986
        %v988 = vrcp.pop %v984
        %v989 = vrcp.pop %v987
        %v990 = vmul.f32 %v979, %v988
        %v991 = vmul.f32 %v981, %v989
        %v992 = vpack.c.bf16 %v991, %v990
        %v993 = vld [vmem:[#allocation3] sm:$0xff]
        %v995 = vsel %vm922, %v992, 0
        %997 = vmatprep.subr.bf16.mxu0 0
        %998 = vmatpush1.bf16.msra.mxu0 %v993
        %999 = vmatprep.subr.bf16.mxu0 0
        %1000 = vmatpush1.bf16.msra.mxu0 0
        %1001 = vmatprep.subr.bf16.mxu0 0
        %1002 = vmatpush1.bf16.msra.mxu0 0
        %1003 = vmatprep.subr.bf16.mxu0 0
        %1004 = vmatpush1.bf16.msra.mxu0 0
        %1005 = vmatprep.subr.bf16.mxu0 0
        %1006 = vmatpush1.bf16.msra.mxu0 0
        %1007 = vmatprep.subr.bf16.mxu0 0
        %1008 = vmatpush1.bf16.msra.mxu0 0
        %1009 = vmatprep.subr.bf16.mxu0 0
        %1010 = vmatpush1.bf16.msra.mxu0 0
        %1011 = vmatprep.subr.bf16.mxu0 0
        %1012 = vmatpush1.bf16.msra.mxu0 0
        %1013 = vmatprep.subr.bf16.mxu0 0
        %1014 = vmatpush1.bf16.msra.mxu0 0
        %1015 = vmatprep.subr.bf16.mxu0 0
        %1016 = vmatpush1.bf16.msra.mxu0 0
        %1017 = vmatprep.subr.bf16.mxu0 0
        %1018 = vmatpush1.bf16.msra.mxu0 0
        %1019 = vmatprep.subr.bf16.mxu0 0
        %1020 = vmatpush1.bf16.msra.mxu0 0
        %1021 = vmatprep.subr.bf16.mxu0 0
        %1022 = vmatpush1.bf16.msra.mxu0 0
        %1023 = vmatprep.subr.bf16.mxu0 0
        %1024 = vmatpush1.bf16.msra.mxu0 0
        %1025 = vmatprep.subr.bf16.mxu0 0
        %1026 = vmatpush1.bf16.msra.mxu0 0
        %1027 = vmatprep.subr.bf16.mxu0 0
        %1028 = vmatpush1.bf16.msra.mxu0 0
        %1029 = vmatprep.mubr.bf16.mxu0 0
        %1030 = vmatmul.mubr.bf16.gmra.mrb[0].mxu0 %v995
        %v1031 = vpop.f32.mrb[0].mxu0
        %v1032 = vadd.f32 0.0, %v1031
        %v1033 = vpop.f32.mrb[0].mxu0
        %v1034 = vpop.f32.mrb[0].mxu0
        %v1035 = vadd.f32 0.0, %v1034
        %v1036 = vpop.f32.mrb[0].mxu0
        %1037 = vdwg.mxu0
        %v1038 = vpack.c.bf16 %v1035, %v1032
        %v1039 = vld [vmem:[#allocation4] sm:$0xf]
        %v1040 = vld [vmem:[#allocation4 + $0x4] sm:$0xf]
        %1042 = vrot.lane.b32.xlu0 %v914, 112
        %v1043 = vpop.permute.xlu0 %1042
        %1045 = vrot.lane.b32.xlu0 %v915, 112
        %v1046 = vpop.permute.xlu0 %1045
        %v1048 = vsel %vm922, %v1043, 0
        %v1051 = vsel %vm922, %v1046, 0
        %1053 = vmatprep.subr.bf16.mxu0 0
        %1054 = vmatpush1.bf16.xpose.msra.mxu0 %v1051
        %1055 = vmatprep.subr.bf16.mxu0 0
        %1056 = vmatpush1.bf16.xpose.msra.mxu0 0
        %1057 = vmatprep.subr.bf16.mxu0 0
        %1058 = vmatpush1.bf16.xpose.msra.mxu0 0
        %1059 = vmatprep.subr.bf16.mxu0 0
        %1060 = vmatpush1.bf16.xpose.msra.mxu0 0
        %1061 = vmatprep.subr.bf16.mxu0 0
        %1062 = vmatpush1.bf16.xpose.msra.mxu0 0
        %1063 = vmatprep.subr.bf16.mxu0 0
        %1064 = vmatpush1.bf16.xpose.msra.mxu0 0
        %1065 = vmatprep.subr.bf16.mxu0 0
        %1066 = vmatpush1.bf16.xpose.msra.mxu0 0
        %1067 = vmatprep.subr.bf16.mxu0 0
        %1068 = vmatpush1.bf16.xpose.msra.mxu0 0
        %1069 = vmatprep.subr.bf16.mxu0 0
        %1070 = vmatpush1.bf16.xpose.msra.mxu0 0
        %1071 = vmatprep.subr.bf16.mxu0 0
        %1072 = vmatpush1.bf16.xpose.msra.mxu0 0
        %1073 = vmatprep.subr.bf16.mxu0 0
        %1074 = vmatpush1.bf16.xpose.msra.mxu0 0
        %1075 = vmatprep.subr.bf16.mxu0 0
        %1076 = vmatpush1.bf16.xpose.msra.mxu0 0
        %1077 = vmatprep.subr.bf16.mxu0 0
        %1078 = vmatpush1.bf16.xpose.msra.mxu0 0
        %1079 = vmatprep.subr.bf16.mxu0 0
        %1080 = vmatpush1.bf16.xpose.msra.mxu0 0
        %1081 = vmatprep.subr.bf16.mxu0 0
        %1082 = vmatpush1.bf16.xpose.msra.mxu0 0
        %1083 = vmatprep.subr.bf16.mxu0 0
        %1084 = vmatpush1.bf16.xpose.msra.mxu0 0
        %1085 = vmatprep.mubr.bf16.mxu0 0
        %1086 = vmatmul.mubr.bf16.gmra.mrb[0].mxu0 %v1048
        %v1087 = vpop.f32.mrb[0].mxu0
        %v1088 = vadd.f32 %v920, %v1087
        %v1089 = vpop.f32.mrb[0].mxu0
        %v1090 = vpop.f32.mrb[0].mxu0
        %v1091 = vadd.f32 %v920, %v1090
        %v1092 = vpop.f32.mrb[0].mxu0
        %1093 = vdwg.mxu0
        %v1094 = vsel %vm922, %v1088, -inf
        %1095 = vmax.xlane.f32.xlu0 %v1094
        %v1096 = vpop.xlane.xlu0 %1095
        %v1097 = vsel %vm922, %v1091, -inf
        %1098 = vmax.xlane.f32.xlu0 %v1097
        %v1099 = vpop.xlane.xlu0 %1098
        %v1100 = vsub.f32 %v1088, %v1096
        %v1101 = vsub.f32 %v1091, %v1099
        %v1102 = vmul.f32 %v1100, 1.442695
        %v1103 = vpow.pop %v1102
        %v1104 = vmul.f32 %v1101, 1.442695
        %v1105 = vpow.pop %v1104
        %v1106 = vsel %vm922, %v1103, 0.0
        %1107 = vadd.xlane.f32.xlu0 %v1106
        %v1108 = vpop.xlane.xlu0 %1107
        %v1109 = vsel %vm922, %v1105, 0.0
        %1110 = vadd.xlane.f32.xlu0 %v1109
        %v1111 = vpop.xlane.xlu0 %1110
        %v1112 = vrcp.pop %v1108
        %v1113 = vrcp.pop %v1111
        %v1114 = vmul.f32 %v1103, %v1112
        %v1115 = vmul.f32 %v1105, %v1113
        %v1116 = vpack.c.bf16 %v1115, %v1114
        %1118 = vrot.lane.b32.xlu0 %v993, 112
        %v1119 = vpop.permute.xlu0 %1118
        %v1122 = vsel %vm922, %v1116, 0
        %1124 = vmatprep.subr.bf16.mxu0 0
        %1125 = vmatpush1.bf16.msra.mxu0 %v1119
        %1126 = vmatprep.subr.bf16.mxu0 0
        %1127 = vmatpush1.bf16.msra.mxu0 0
        %1128 = vmatprep.subr.bf16.mxu0 0
        %1129 = vmatpush1.bf16.msra.mxu0 0
        %1130 = vmatprep.subr.bf16.mxu0 0
        %1131 = vmatpush1.bf16.msra.mxu0 0
        %1132 = vmatprep.subr.bf16.mxu0 0
        %1133 = vmatpush1.bf16.msra.mxu0 0
        %1134 = vmatprep.subr.bf16.mxu0 0
        %1135 = vmatpush1.bf16.msra.mxu0 0
        %1136 = vmatprep.subr.bf16.mxu0 0
        %1137 = vmatpush1.bf16.msra.mxu0 0
        %1138 = vmatprep.subr.bf16.mxu0 0
        %1139 = vmatpush1.bf16.msra.mxu0 0
        %1140 = vmatprep.subr.bf16.mxu0 0
        %1141 = vmatpush1.bf16.msra.mxu0 0
        %1142 = vmatprep.subr.bf16.mxu0 0
        %1143 = vmatpush1.bf16.msra.mxu0 0
        %1144 = vmatprep.subr.bf16.mxu0 0
        %1145 = vmatpush1.bf16.msra.mxu0 0
        %1146 = vmatprep.subr.bf16.mxu0 0
        %1147 = vmatpush1.bf16.msra.mxu0 0
        %1148 = vmatprep.subr.bf16.mxu0 0
        %1149 = vmatpush1.bf16.msra.mxu0 0
        %1150 = vmatprep.subr.bf16.mxu0 0
        %1151 = vmatpush1.bf16.msra.mxu0 0
        %1152 = vmatprep.subr.bf16.mxu0 0
        %1153 = vmatpush1.bf16.msra.mxu0 0
        %1154 = vmatprep.subr.bf16.mxu0 0
        %1155 = vmatpush1.bf16.msra.mxu0 0
        %1156 = vmatprep.mubr.bf16.mxu0 0
        %1157 = vmatmul.mubr.bf16.gmra.mrb[0].mxu0 %v1122
        %v1158 = vpop.f32.mrb[0].mxu0
        %v1159 = vadd.f32 0.0, %v1158
        %v1160 = vpop.f32.mrb[0].mxu0
        %v1161 = vpop.f32.mrb[0].mxu0
        %v1162 = vadd.f32 0.0, %v1161
        %v1163 = vpop.f32.mrb[0].mxu0
        %1164 = vdwg.mxu0
        %v1165 = vpack.c.bf16 %v1162, %v1159
        %v1166 = vld [vmem:[#allocation4 + $0x8] sm:$0xf]
        %v1167 = vld [vmem:[#allocation4 + $0xc] sm:$0xf]
        %v1170 = vunpack.c.l.b16 %v1166
        %v1171 = vunpack.c.l.b16 %v1167
        %v1172 = vpack.c.b16 %v1171, %v1170
        %v1175 = vsel %vm922, %v1165, 0
        %1177 = vmatprep.subr.bf16.mxu0 0
        %1178 = vmatpush1.bf16.msra.mxu0 %v1172
        %1179 = vmatprep.subr.bf16.mxu0 0
        %1180 = vmatpush1.bf16.msra.mxu0 0
        %1181 = vmatprep.subr.bf16.mxu0 0
        %1182 = vmatpush1.bf16.msra.mxu0 0
        %1183 = vmatprep.subr.bf16.mxu0 0
        %1184 = vmatpush1.bf16.msra.mxu0 0
        %1185 = vmatprep.subr.bf16.mxu0 0
        %1186 = vmatpush1.bf16.msra.mxu0 0
        %1187 = vmatprep.subr.bf16.mxu0 0
        %1188 = vmatpush1.bf16.msra.mxu0 0
        %1189 = vmatprep.subr.bf16.mxu0 0
        %1190 = vmatpush1.bf16.msra.mxu0 0
        %1191 = vmatprep.subr.bf16.mxu0 0
        %1192 = vmatpush1.bf16.msra.mxu0 0
        %1193 = vmatprep.subr.bf16.mxu0 0
        %1194 = vmatpush1.bf16.msra.mxu0 0
        %1195 = vmatprep.subr.bf16.mxu0 0
        %1196 = vmatpush1.bf16.msra.mxu0 0
        %1197 = vmatprep.subr.bf16.mxu0 0
        %1198 = vmatpush1.bf16.msra.mxu0 0
        %1199 = vmatprep.subr.bf16.mxu0 0
        %1200 = vmatpush1.bf16.msra.mxu0 0
        %1201 = vmatprep.subr.bf16.mxu0 0
        %1202 = vmatpush1.bf16.msra.mxu0 0
        %1203 = vmatprep.subr.bf16.mxu0 0
        %1204 = vmatpush1.bf16.msra.mxu0 0
        %1205 = vmatprep.subr.bf16.mxu0 0
        %1206 = vmatpush1.bf16.msra.mxu0 0
        %1207 = vmatprep.subr.bf16.mxu0 0
        %1208 = vmatpush1.bf16.msra.mxu0 0
        %1209 = vmatprep.mubr.bf16.mxu0 0
        %1210 = vmatmul.mubr.bf16.gmra.mrb[0].mxu0 %v1175
        %v1211 = vpop.f32.mrb[0].mxu0
        %v1212 = vadd.f32 0.0, %v1211
        %v1213 = vpop.f32.mrb[0].mxu0
        %v1214 = vpop.f32.mrb[0].mxu0
        %v1215 = vadd.f32 0.0, %v1214
        %v1216 = vpop.f32.mrb[0].mxu0
        %1217 = vdwg.mxu0
        %v1220 = vunpack.c.l.b16 %v1039
        %v1221 = vunpack.c.l.b16 %v1040
        %v1222 = vpack.c.b16 %v1221, %v1220
        %v1225 = vsel %vm922, %v1038, 0
        %1227 = vmatprep.subr.bf16.mxu0 0
        %1228 = vmatpush1.bf16.msra.mxu0 %v1222
        %1229 = vmatprep.subr.bf16.mxu0 0
        %1230 = vmatpush1.bf16.msra.mxu0 0
        %1231 = vmatprep.subr.bf16.mxu0 0
        %1232 = vmatpush1.bf16.msra.mxu0 0
        %1233 = vmatprep.subr.bf16.mxu0 0
        %1234 = vmatpush1.bf16.msra.mxu0 0
        %1235 = vmatprep.subr.bf16.mxu0 0
        %1236 = vmatpush1.bf16.msra.mxu0 0
        %1237 = vmatprep.subr.bf16.mxu0 0
        %1238 = vmatpush1.bf16.msra.mxu0 0
        %1239 = vmatprep.subr.bf16.mxu0 0
        %1240 = vmatpush1.bf16.msra.mxu0 0
        %1241 = vmatprep.subr.bf16.mxu0 0
        %1242 = vmatpush1.bf16.msra.mxu0 0
        %1243 = vmatprep.subr.bf16.mxu0 0
        %1244 = vmatpush1.bf16.msra.mxu0 0
        %1245 = vmatprep.subr.bf16.mxu0 0
        %1246 = vmatpush1.bf16.msra.mxu0 0
        %1247 = vmatprep.subr.bf16.mxu0 0
        %1248 = vmatpush1.bf16.msra.mxu0 0
        %1249 = vmatprep.subr.bf16.mxu0 0
        %1250 = vmatpush1.bf16.msra.mxu0 0
        %1251 = vmatprep.subr.bf16.mxu0 0
        %1252 = vmatpush1.bf16.msra.mxu0 0
        %1253 = vmatprep.subr.bf16.mxu0 0
        %1254 = vmatpush1.bf16.msra.mxu0 0
        %1255 = vmatprep.subr.bf16.mxu0 0
        %1256 = vmatpush1.bf16.msra.mxu0 0
        %1257 = vmatprep.subr.bf16.mxu0 0
        %1258 = vmatpush1.bf16.msra.mxu0 0
        %1259 = vmatprep.mubr.bf16.mxu0 0
        %1260 = vmatmul.mubr.bf16.gmra.mrb[0].mxu0 %v1225
        %v1261 = vpop.f32.mrb[0].mxu0
        %v1262 = vadd.f32 %v1212, %v1261
        %v1263 = vpop.f32.mrb[0].mxu0
        %v1264 = vpop.f32.mrb[0].mxu0
        %v1265 = vadd.f32 %v1215, %v1264
        %v1266 = vpop.f32.mrb[0].mxu0
        %1267 = vdwg.mxu0
        %1268 = vrot.lane.b32.xlu0 %v914, 96
        %v1269 = vpop.permute.xlu0 %1268
        %1270 = vrot.lane.b32.xlu0 %v915, 96
        %v1271 = vpop.permute.xlu0 %1270
        %v1273 = vsel %vm922, %v1269, 0
        %v1276 = vsel %vm922, %v1271, 0
        %1278 = vmatprep.subr.bf16.mxu0 0
        %1279 = vmatpush1.bf16.xpose.msra.mxu0 %v1276
        %1280 = vmatprep.subr.bf16.mxu0 0
        %1281 = vmatpush1.bf16.xpose.msra.mxu0 0
        %1282 = vmatprep.subr.bf16.mxu0 0
        %1283 = vmatpush1.bf16.xpose.msra.mxu0 0
        %1284 = vmatprep.subr.bf16.mxu0 0
        %1285 = vmatpush1.bf16.xpose.msra.mxu0 0
        %1286 = vmatprep.subr.bf16.mxu0 0
        %1287 = vmatpush1.bf16.xpose.msra.mxu0 0
        %1288 = vmatprep.subr.bf16.mxu0 0
        %1289 = vmatpush1.bf16.xpose.msra.mxu0 0
        %1290 = vmatprep.subr.bf16.mxu0 0
        %1291 = vmatpush1.bf16.xpose.msra.mxu0 0
        %1292 = vmatprep.subr.bf16.mxu0 0
        %1293 = vmatpush1.bf16.xpose.msra.mxu0 0
        %1294 = vmatprep.subr.bf16.mxu0 0
        %1295 = vmatpush1.bf16.xpose.msra.mxu0 0
        %1296 = vmatprep.subr.bf16.mxu0 0
        %1297 = vmatpush1.bf16.xpose.msra.mxu0 0
        %1298 = vmatprep.subr.bf16.mxu0 0
        %1299 = vmatpush1.bf16.xpose.msra.mxu0 0
        %1300 = vmatprep.subr.bf16.mxu0 0
        %1301 = vmatpush1.bf16.xpose.msra.mxu0 0
        %1302 = vmatprep.subr.bf16.mxu0 0
        %1303 = vmatpush1.bf16.xpose.msra.mxu0 0
        %1304 = vmatprep.subr.bf16.mxu0 0
        %1305 = vmatpush1.bf16.xpose.msra.mxu0 0
        %1306 = vmatprep.subr.bf16.mxu0 0
        %1307 = vmatpush1.bf16.xpose.msra.mxu0 0
        %1308 = vmatprep.subr.bf16.mxu0 0
        %1309 = vmatpush1.bf16.xpose.msra.mxu0 0
        %1310 = vmatprep.mubr.bf16.mxu0 0
        %1311 = vmatmul.mubr.bf16.gmra.mrb[0].mxu0 %v1273
        %v1312 = vpop.f32.mrb[0].mxu0
        %v1313 = vadd.f32 %v920, %v1312
        %v1314 = vpop.f32.mrb[0].mxu0
        %v1315 = vpop.f32.mrb[0].mxu0
        %v1316 = vadd.f32 %v920, %v1315
        %v1317 = vpop.f32.mrb[0].mxu0
        %1318 = vdwg.mxu0
        %v1319 = vsel %vm922, %v1313, -inf
        %1320 = vmax.xlane.f32.xlu0 %v1319
        %v1321 = vpop.xlane.xlu0 %1320
        %v1322 = vsel %vm922, %v1316, -inf
        %1323 = vmax.xlane.f32.xlu0 %v1322
        %v1324 = vpop.xlane.xlu0 %1323
        %v1325 = vsub.f32 %v1313, %v1321
        %v1326 = vsub.f32 %v1316, %v1324
        %v1327 = vmul.f32 %v1325, 1.442695
        %v1328 = vpow.pop %v1327
        %v1329 = vmul.f32 %v1326, 1.442695
        %v1330 = vpow.pop %v1329
        %v1331 = vsel %vm922, %v1328, 0.0
        %1332 = vadd.xlane.f32.xlu0 %v1331
        %v1333 = vpop.xlane.xlu0 %1332
        %v1334 = vsel %vm922, %v1330, 0.0
        %1335 = vadd.xlane.f32.xlu0 %v1334
        %v1336 = vpop.xlane.xlu0 %1335
        %v1337 = vrcp.pop %v1333
        %v1338 = vrcp.pop %v1336
        %v1339 = vmul.f32 %v1328, %v1337
        %v1340 = vmul.f32 %v1330, %v1338
        %v1341 = vpack.c.bf16 %v1340, %v1339
        %1342 = vrot.lane.b32.xlu0 %v993, 96
        %v1343 = vpop.permute.xlu0 %1342
        %v1346 = vsel %vm922, %v1341, 0
        %1348 = vmatprep.subr.bf16.mxu0 0
        %1349 = vmatpush1.bf16.msra.mxu0 %v1343
        %1350 = vmatprep.subr.bf16.mxu0 0
        %1351 = vmatpush1.bf16.msra.mxu0 0
        %1352 = vmatprep.subr.bf16.mxu0 0
        %1353 = vmatpush1.bf16.msra.mxu0 0
        %1354 = vmatprep.subr.bf16.mxu0 0
        %1355 = vmatpush1.bf16.msra.mxu0 0
        %1356 = vmatprep.subr.bf16.mxu0 0
        %1357 = vmatpush1.bf16.msra.mxu0 0
        %1358 = vmatprep.subr.bf16.mxu0 0
        %1359 = vmatpush1.bf16.msra.mxu0 0
        %1360 = vmatprep.subr.bf16.mxu0 0
        %1361 = vmatpush1.bf16.msra.mxu0 0
        %1362 = vmatprep.subr.bf16.mxu0 0
        %1363 = vmatpush1.bf16.msra.mxu0 0
        %1364 = vmatprep.subr.bf16.mxu0 0
        %1365 = vmatpush1.bf16.msra.mxu0 0
        %1366 = vmatprep.subr.bf16.mxu0 0
        %1367 = vmatpush1.bf16.msra.mxu0 0
        %1368 = vmatprep.subr.bf16.mxu0 0
        %1369 = vmatpush1.bf16.msra.mxu0 0
        %1370 = vmatprep.subr.bf16.mxu0 0
        %1371 = vmatpush1.bf16.msra.mxu0 0
        %1372 = vmatprep.subr.bf16.mxu0 0
        %1373 = vmatpush1.bf16.msra.mxu0 0
        %1374 = vmatprep.subr.bf16.mxu0 0
        %1375 = vmatpush1.bf16.msra.mxu0 0
        %1376 = vmatprep.subr.bf16.mxu0 0
        %1377 = vmatpush1.bf16.msra.mxu0 0
        %1378 = vmatprep.subr.bf16.mxu0 0
        %1379 = vmatpush1.bf16.msra.mxu0 0
        %1380 = vmatprep.mubr.bf16.mxu0 0
        %1381 = vmatmul.mubr.bf16.gmra.mrb[0].mxu0 %v1346
        %v1382 = vpop.f32.mrb[0].mxu0
        %v1383 = vadd.f32 0.0, %v1382
        %v1384 = vpop.f32.mrb[0].mxu0
        %v1385 = vpop.f32.mrb[0].mxu0
        %v1386 = vadd.f32 0.0, %v1385
        %v1387 = vpop.f32.mrb[0].mxu0
        %1388 = vdwg.mxu0
        %v1389 = vpack.c.bf16 %v1386, %v1383
        %v1390 = vld [vmem:[#allocation4 + $0x10] sm:$0xf]
        %v1391 = vld [vmem:[#allocation4 + $0x14] sm:$0xf]
        %v1394 = vunpack.c.l.b16 %v1390
        %v1395 = vunpack.c.l.b16 %v1391
        %v1396 = vpack.c.b16 %v1395, %v1394
        %v1399 = vsel %vm922, %v1389, 0
        %1401 = vmatprep.subr.bf16.mxu0 0
        %1402 = vmatpush1.bf16.msra.mxu0 %v1396
        %1403 = vmatprep.subr.bf16.mxu0 0
        %1404 = vmatpush1.bf16.msra.mxu0 0
        %1405 = vmatprep.subr.bf16.mxu0 0
        %1406 = vmatpush1.bf16.msra.mxu0 0
        %1407 = vmatprep.subr.bf16.mxu0 0
        %1408 = vmatpush1.bf16.msra.mxu0 0
        %1409 = vmatprep.subr.bf16.mxu0 0
        %1410 = vmatpush1.bf16.msra.mxu0 0
        %1411 = vmatprep.subr.bf16.mxu0 0
        %1412 = vmatpush1.bf16.msra.mxu0 0
        %1413 = vmatprep.subr.bf16.mxu0 0
        %1414 = vmatpush1.bf16.msra.mxu0 0
        %1415 = vmatprep.subr.bf16.mxu0 0
        %1416 = vmatpush1.bf16.msra.mxu0 0
        %1417 = vmatprep.subr.bf16.mxu0 0
        %1418 = vmatpush1.bf16.msra.mxu0 0
        %1419 = vmatprep.subr.bf16.mxu0 0
        %1420 = vmatpush1.bf16.msra.mxu0 0
        %1421 = vmatprep.subr.bf16.mxu0 0
        %1422 = vmatpush1.bf16.msra.mxu0 0
        %1423 = vmatprep.subr.bf16.mxu0 0
        %1424 = vmatpush1.bf16.msra.mxu0 0
        %1425 = vmatprep.subr.bf16.mxu0 0
        %1426 = vmatpush1.bf16.msra.mxu0 0
        %1427 = vmatprep.subr.bf16.mxu0 0
        %1428 = vmatpush1.bf16.msra.mxu0 0
        %1429 = vmatprep.subr.bf16.mxu0 0
        %1430 = vmatpush1.bf16.msra.mxu0 0
        %1431 = vmatprep.subr.bf16.mxu0 0
        %1432 = vmatpush1.bf16.msra.mxu0 0
        %1433 = vmatprep.mubr.bf16.mxu0 0
        %1434 = vmatmul.mubr.bf16.gmra.mrb[0].mxu0 %v1399
        %v1435 = vpop.f32.mrb[0].mxu0
        %v1436 = vadd.f32 0.0, %v1435
        %v1437 = vpop.f32.mrb[0].mxu0
        %v1438 = vpop.f32.mrb[0].mxu0
        %v1439 = vadd.f32 0.0, %v1438
        %v1440 = vpop.f32.mrb[0].mxu0
        %1441 = vdwg.mxu0
        %v1442 = vadd.f32 %v1262, %v1436
        %v1443 = vadd.f32 %v1265, %v1439
        %1444 = vrot.lane.b32.xlu0 %v914, 80
        %v1445 = vpop.permute.xlu0 %1444
        %1446 = vrot.lane.b32.xlu0 %v915, 80
        %v1447 = vpop.permute.xlu0 %1446
        %v1449 = vsel %vm922, %v1445, 0
        %v1452 = vsel %vm922, %v1447, 0
        %1454 = vmatprep.subr.bf16.mxu0 0
        %1455 = vmatpush1.bf16.xpose.msra.mxu0 %v1452
        %1456 = vmatprep.subr.bf16.mxu0 0
        %1457 = vmatpush1.bf16.xpose.msra.mxu0 0
        %1458 = vmatprep.subr.bf16.mxu0 0
        %1459 = vmatpush1.bf16.xpose.msra.mxu0 0
        %1460 = vmatprep.subr.bf16.mxu0 0
        %1461 = vmatpush1.bf16.xpose.msra.mxu0 0
        %1462 = vmatprep.subr.bf16.mxu0 0
        %1463 = vmatpush1.bf16.xpose.msra.mxu0 0
        %1464 = vmatprep.subr.bf16.mxu0 0
        %1465 = vmatpush1.bf16.xpose.msra.mxu0 0
        %1466 = vmatprep.subr.bf16.mxu0 0
        %1467 = vmatpush1.bf16.xpose.msra.mxu0 0
        %1468 = vmatprep.subr.bf16.mxu0 0
        %1469 = vmatpush1.bf16.xpose.msra.mxu0 0
        %1470 = vmatprep.subr.bf16.mxu0 0
        %1471 = vmatpush1.bf16.xpose.msra.mxu0 0
        %1472 = vmatprep.subr.bf16.mxu0 0
        %1473 = vmatpush1.bf16.xpose.msra.mxu0 0
        %1474 = vmatprep.subr.bf16.mxu0 0
        %1475 = vmatpush1.bf16.xpose.msra.mxu0 0
        %1476 = vmatprep.subr.bf16.mxu0 0
        %1477 = vmatpush1.bf16.xpose.msra.mxu0 0
        %1478 = vmatprep.subr.bf16.mxu0 0
        %1479 = vmatpush1.bf16.xpose.msra.mxu0 0
        %1480 = vmatprep.subr.bf16.mxu0 0
        %1481 = vmatpush1.bf16.xpose.msra.mxu0 0
        %1482 = vmatprep.subr.bf16.mxu0 0
        %1483 = vmatpush1.bf16.xpose.msra.mxu0 0
        %1484 = vmatprep.subr.bf16.mxu0 0
        %1485 = vmatpush1.bf16.xpose.msra.mxu0 0
        %1486 = vmatprep.mubr.bf16.mxu0 0
        %1487 = vmatmul.mubr.bf16.gmra.mrb[0].mxu0 %v1449
        %v1488 = vpop.f32.mrb[0].mxu0
        %v1489 = vadd.f32 %v920, %v1488
        %v1490 = vpop.f32.mrb[0].mxu0
        %v1491 = vpop.f32.mrb[0].mxu0
        %v1492 = vadd.f32 %v920, %v1491
        %v1493 = vpop.f32.mrb[0].mxu0
        %1494 = vdwg.mxu0
        %v1495 = vsel %vm922, %v1489, -inf
        %1496 = vmax.xlane.f32.xlu0 %v1495
        %v1497 = vpop.xlane.xlu0 %1496
        %v1498 = vsel %vm922, %v1492, -inf
        %1499 = vmax.xlane.f32.xlu0 %v1498
        %v1500 = vpop.xlane.xlu0 %1499
        %v1501 = vsub.f32 %v1489, %v1497
        %v1502 = vsub.f32 %v1492, %v1500
        %v1503 = vmul.f32 %v1501, 1.442695
        %v1504 = vpow.pop %v1503
        %v1505 = vmul.f32 %v1502, 1.442695
        %v1506 = vpow.pop %v1505
        %v1507 = vsel %vm922, %v1504, 0.0
        %1508 = vadd.xlane.f32.xlu0 %v1507
        %v1509 = vpop.xlane.xlu0 %1508
        %v1510 = vsel %vm922, %v1506, 0.0
        %1511 = vadd.xlane.f32.xlu0 %v1510
        %v1512 = vpop.xlane.xlu0 %1511
        %v1513 = vrcp.pop %v1509
        %v1514 = vrcp.pop %v1512
        %v1515 = vmul.f32 %v1504, %v1513
        %v1516 = vmul.f32 %v1506, %v1514
        %v1517 = vpack.c.bf16 %v1516, %v1515
        %1518 = vrot.lane.b32.xlu0 %v993, 80
        %v1519 = vpop.permute.xlu0 %1518
        %v1522 = vsel %vm922, %v1517, 0
        %1524 = vmatprep.subr.bf16.mxu0 0
        %1525 = vmatpush1.bf16.msra.mxu0 %v1519
        %1526 = vmatprep.subr.bf16.mxu0 0
        %1527 = vmatpush1.bf16.msra.mxu0 0
        %1528 = vmatprep.subr.bf16.mxu0 0
        %1529 = vmatpush1.bf16.msra.mxu0 0
        %1530 = vmatprep.subr.bf16.mxu0 0
        %1531 = vmatpush1.bf16.msra.mxu0 0
        %1532 = vmatprep.subr.bf16.mxu0 0
        %1533 = vmatpush1.bf16.msra.mxu0 0
        %1534 = vmatprep.subr.bf16.mxu0 0
        %1535 = vmatpush1.bf16.msra.mxu0 0
        %1536 = vmatprep.subr.bf16.mxu0 0
        %1537 = vmatpush1.bf16.msra.mxu0 0
        %1538 = vmatprep.subr.bf16.mxu0 0
        %1539 = vmatpush1.bf16.msra.mxu0 0
        %1540 = vmatprep.subr.bf16.mxu0 0
        %1541 = vmatpush1.bf16.msra.mxu0 0
        %1542 = vmatprep.subr.bf16.mxu0 0
        %1543 = vmatpush1.bf16.msra.mxu0 0
        %1544 = vmatprep.subr.bf16.mxu0 0
        %1545 = vmatpush1.bf16.msra.mxu0 0
        %1546 = vmatprep.subr.bf16.mxu0 0
        %1547 = vmatpush1.bf16.msra.mxu0 0
        %1548 = vmatprep.subr.bf16.mxu0 0
        %1549 = vmatpush1.bf16.msra.mxu0 0
        %1550 = vmatprep.subr.bf16.mxu0 0
        %1551 = vmatpush1.bf16.msra.mxu0 0
        %1552 = vmatprep.subr.bf16.mxu0 0
        %1553 = vmatpush1.bf16.msra.mxu0 0
        %1554 = vmatprep.subr.bf16.mxu0 0
        %1555 = vmatpush1.bf16.msra.mxu0 0
        %1556 = vmatprep.mubr.bf16.mxu0 0
        %1557 = vmatmul.mubr.bf16.gmra.mrb[0].mxu0 %v1522
        %v1558 = vpop.f32.mrb[0].mxu0
        %v1559 = vadd.f32 0.0, %v1558
        %v1560 = vpop.f32.mrb[0].mxu0
        %v1561 = vpop.f32.mrb[0].mxu0
        %v1562 = vadd.f32 0.0, %v1561
        %v1563 = vpop.f32.mrb[0].mxu0
        %1564 = vdwg.mxu0
        %v1565 = vpack.c.bf16 %v1562, %v1559
        %v1566 = vld [vmem:[#allocation4 + $0x18] sm:$0xf]
        %v1567 = vld [vmem:[#allocation4 + $0x1c] sm:$0xf]
        %v1570 = vunpack.c.l.b16 %v1566
        %v1571 = vunpack.c.l.b16 %v1567
        %v1572 = vpack.c.b16 %v1571, %v1570
        %v1575 = vsel %vm922, %v1565, 0
        %1577 = vmatprep.subr.bf16.mxu0 0
        %1578 = vmatpush1.bf16.msra.mxu0 %v1572
        %1579 = vmatprep.subr.bf16.mxu0 0
        %1580 = vmatpush1.bf16.msra.mxu0 0
        %1581 = vmatprep.subr.bf16.mxu0 0
        %1582 = vmatpush1.bf16.msra.mxu0 0
        %1583 = vmatprep.subr.bf16.mxu0 0
        %1584 = vmatpush1.bf16.msra.mxu0 0
        %1585 = vmatprep.subr.bf16.mxu0 0
        %1586 = vmatpush1.bf16.msra.mxu0 0
        %1587 = vmatprep.subr.bf16.mxu0 0
        %1588 = vmatpush1.bf16.msra.mxu0 0
        %1589 = vmatprep.subr.bf16.mxu0 0
        %1590 = vmatpush1.bf16.msra.mxu0 0
        %1591 = vmatprep.subr.bf16.mxu0 0
        %1592 = vmatpush1.bf16.msra.mxu0 0
        %1593 = vmatprep.subr.bf16.mxu0 0
        %1594 = vmatpush1.bf16.msra.mxu0 0
        %1595 = vmatprep.subr.bf16.mxu0 0
        %1596 = vmatpush1.bf16.msra.mxu0 0
        %1597 = vmatprep.subr.bf16.mxu0 0
        %1598 = vmatpush1.bf16.msra.mxu0 0
        %1599 = vmatprep.subr.bf16.mxu0 0
        %1600 = vmatpush1.bf16.msra.mxu0 0
        %1601 = vmatprep.subr.bf16.mxu0 0
        %1602 = vmatpush1.bf16.msra.mxu0 0
        %1603 = vmatprep.subr.bf16.mxu0 0
        %1604 = vmatpush1.bf16.msra.mxu0 0
        %1605 = vmatprep.subr.bf16.mxu0 0
        %1606 = vmatpush1.bf16.msra.mxu0 0
        %1607 = vmatprep.subr.bf16.mxu0 0
        %1608 = vmatpush1.bf16.msra.mxu0 0
        %1609 = vmatprep.mubr.bf16.mxu0 0
        %1610 = vmatmul.mubr.bf16.gmra.mrb[0].mxu0 %v1575
        %v1611 = vpop.f32.mrb[0].mxu0
        %v1612 = vadd.f32 0.0, %v1611
        %v1613 = vpop.f32.mrb[0].mxu0
        %v1614 = vpop.f32.mrb[0].mxu0
        %v1615 = vadd.f32 0.0, %v1614
        %v1616 = vpop.f32.mrb[0].mxu0
        %1617 = vdwg.mxu0
        %v1618 = vadd.f32 %v1442, %v1612
        %v1619 = vadd.f32 %v1443, %v1615
        %v1620 = vld [vmem:[%s9] sm:$0x1]
        %v1622 = vlaneseq
        %v1623 = vshrl.u32 %v1622, 7
        %v1624 = vsub.s32 0, %v1623
        %v1625 = vrot.slane %v1620, %v1624
        %v1627 = vadd.f32 %v1618, %v1625
        %v1628 = vadd.f32 %v1619, %v1625
        %v1629 = vadd.f32 %v823, %v1627
        %v1630 = vadd.f32 %v824, %v1628
        %v1631 = vld [vmem:[%s10] sm:$0x1]
        %v1632 = vld [vmem:[%s11] sm:$0x1]
        %v1633 = vsel %vm781, %v1629, 0.0
        %1634 = vadd.xlane.f32.xlu0 %v1633
        %v1635 = vpop.xlane.xlu0 %1634
        %v1636 = vsel %vm781, %v1630, 0.0
        %1637 = vadd.xlane.f32.xlu0 %v1636
        %v1638 = vpop.xlane.xlu0 %1637
        %v1639 = vmul.f32 %v1635, %v788
        %v1640 = vmul.f32 %v1638, %v788
        %v1641 = vsub.f32 %v1629, %v1639
        %v1642 = vsub.f32 %v1630, %v1640
        %v1643 = vmul.f32 %v1641, %v1641
        %v1644 = vmul.f32 %v1642, %v1642
        %v1645 = vsel %vm781, %v1643, 0.0
        %1646 = vadd.xlane.f32.xlu0 %v1645
        %v1647 = vpop.xlane.xlu0 %1646
        %v1648 = vsel %vm781, %v1644, 0.0
        %1649 = vadd.xlane.f32.xlu0 %v1648
        %v1650 = vpop.xlane.xlu0 %1649
        %v1651 = vmul.f32 %v1647, %v788
        %v1652 = vmul.f32 %v1650, %v788
        %v1653 = vadd.f32 %v1651, 1e-05
        %v1654 = vadd.f32 %v1652, 1e-05
        %v1655 = vrsqrt.pop %v1653
        %v1656 = vrsqrt.pop %v1654
        %v1657 = vmul.f32 %v1641, %v1655
        %v1658 = vmul.f32 %v1642, %v1656
        %v1660 = vlaneseq
        %v1661 = vshrl.u32 %v1660, 7
        %v1662 = vsub.s32 0, %v1661
        %v1663 = vrot.slane %v1631, %v1662
        %v1665 = vmul.f32 %v1657, %v1663
        %v1666 = vmul.f32 %v1658, %v1663
        %v1668 = vlaneseq
        %v1669 = vshrl.u32 %v1668, 7
        %v1670 = vsub.s32 0, %v1669
        %v1671 = vrot.slane %v1632, %v1670
        %v1673 = vadd.f32 %v1665, %v1671
        %v1674 = vadd.f32 %v1666, %v1671
        %v1675 = vpack.c.bf16 %v1674, %v1673
        %v1676 = vld [vmem:[#allocation7] sm:$0xf]
        %v1677 = vld [vmem:[#allocation7 + $0x4] sm:$0xf]
        %v1678 = vld [vmem:[#allocation7 + $0x8] sm:$0xf]
        %v1679 = vld [vmem:[#allocation7 + $0xc] sm:$0xf]
        %v1680 = vld [vmem:[#allocation7 + $0x10] sm:$0xf]
        %v1681 = vld [vmem:[#allocation7 + $0x14] sm:$0xf]
        %v1682 = vld [vmem:[#allocation7 + $0x18] sm:$0xf]
        %v1683 = vld [vmem:[#allocation7 + $0x1c] sm:$0xf]
        %v1684 = vld [vmem:[%s13] sm:$0x1]
        %v1686 = vlaneseq
        %v1687 = vshrl.u32 %v1686, 7
        %v1688 = vsub.s32 0, %v1687
        %v1689 = vrot.slane %v1684, %v1688
        %v1699 = vunpack.c.l.b16 %v1676
        %v1700 = vunpack.c.l.b16 %v1677
        %v1701 = vunpack.c.l.b16 %v1678
        %v1702 = vunpack.c.l.b16 %v1679
        %v1703 = vunpack.c.l.b16 %v1680
        %v1704 = vunpack.c.l.b16 %v1681
        %v1705 = vunpack.c.l.b16 %v1682
        %v1706 = vunpack.c.l.b16 %v1683
        %v1707 = vpack.c.b16 %v1700, %v1699
        %v1708 = vpack.c.b16 %v1702, %v1701
        %v1709 = vpack.c.b16 %v1704, %v1703
        %v1710 = vpack.c.b16 %v1706, %v1705
        %v1716 = vsel %vm781, %v1675, 0
        %1718 = vmatprep.subr.bf16.mxu0 0
        %1719 = vmatpush1.bf16.msra.mxu0 %v1707
        %1720 = vmatprep.subr.bf16.mxu0 0
        %1721 = vmatpush1.bf16.msra.mxu0 %v1708
        %1722 = vmatprep.subr.bf16.mxu0 0
        %1723 = vmatpush1.bf16.msra.mxu0 %v1709
        %1724 = vmatprep.subr.bf16.mxu0 0
        %1725 = vmatpush1.bf16.msra.mxu0 %v1710
        %1726 = vmatprep.subr.bf16.mxu0 0
        %1727 = vmatpush1.bf16.msra.mxu0 0
        %1728 = vmatprep.subr.bf16.mxu0 0
        %1729 = vmatpush1.bf16.msra.mxu0 0
        %1730 = vmatprep.subr.bf16.mxu0 0
        %1731 = vmatpush1.bf16.msra.mxu0 0
        %1732 = vmatprep.subr.bf16.mxu0 0
        %1733 = vmatpush1.bf16.msra.mxu0 0
        %1734 = vmatprep.subr.bf16.mxu0 0
        %1735 = vmatpush1.bf16.msra.mxu0 0
        %1736 = vmatprep.subr.bf16.mxu0 0
        %1737 = vmatpush1.bf16.msra.mxu0 0
        %1738 = vmatprep.subr.bf16.mxu0 0
        %1739 = vmatpush1.bf16.msra.mxu0 0
        %1740 = vmatprep.subr.bf16.mxu0 0
        %1741 = vmatpush1.bf16.msra.mxu0 0
        %1742 = vmatprep.subr.bf16.mxu0 0
        %1743 = vmatpush1.bf16.msra.mxu0 0
        %1744 = vmatprep.subr.bf16.mxu0 0
        %1745 = vmatpush1.bf16.msra.mxu0 0
        %1746 = vmatprep.subr.bf16.mxu0 0
        %1747 = vmatpush1.bf16.msra.mxu0 0
        %1748 = vmatprep.subr.bf16.mxu0 0
        %1749 = vmatpush1.bf16.msra.mxu0 0
        %1750 = vmatprep.mubr.bf16.mxu0 0
        %1751 = vmatmul.mubr.bf16.gmra.mrb[0].mxu0 %v1716
        %v1752 = vpop.f32.mrb[0].mxu0
        %v1753 = vadd.f32 %v1689, %v1752
        %v1754 = vpop.f32.mrb[0].mxu0
        %v1755 = vpop.f32.mrb[0].mxu0
        %v1756 = vadd.f32 %v1689, %v1755
        %v1757 = vpop.f32.mrb[0].mxu0
        %1758 = vdwg.mxu0
        %v1759 = vmul.f32 %v1753, 0.5
        %v1760 = vmul.f32 %v1756, 0.5
        %v1761 = vmul.f32 %v1753, 0.044715
        %v1762 = vmul.f32 %v1756, 0.044715
        %v1763 = vmul.f32 %v1761, %v1753
        %v1764 = vmul.f32 %v1762, %v1756
        %v1765 = vmul.f32 %v1763, %v1753
        %v1766 = vmul.f32 %v1764, %v1756
        %v1767 = vadd.f32 %v1753, %v1765
        %v1768 = vadd.f32 %v1756, %v1766
        %v1769 = vmul.f32 %v1767, 0.7978846
        %v1770 = vmul.f32 %v1768, 0.7978846
        %v1771 = vtanh.pop %v1769
        %v1772 = vtanh.pop %v1770
        %v1773 = vadd.f32 %v1771, 1.0
        %v1774 = vadd.f32 %v1772, 1.0
        %v1775 = vmul.f32 %v1759, %v1773
        %v1776 = vmul.f32 %v1760, %v1774
        %v1777 = vpack.c.bf16 %v1776, %v1775
        %v1778 = vld [vmem:[%s14] sm:$0xf]
        %v1779 = vld [vmem:[%s14 + $0x4] sm:$0xf]
        %v1780 = vld [vmem:[%s14 + $0x8] sm:$0xf]
        %v1781 = vld [vmem:[%s14 + $0xc] sm:$0xf]
        %v1782 = vld [vmem:[%s14 + $0x10] sm:$0xf]
        %v1783 = vld [vmem:[%s14 + $0x14] sm:$0xf]
        %v1784 = vld [vmem:[%s14 + $0x18] sm:$0xf]
        %v1785 = vld [vmem:[%s14 + $0x1c] sm:$0xf]
        %v1786 = vld [vmem:[%s14 + $0x20] sm:$0xf]
        %v1787 = vld [vmem:[%s14 + $0x24] sm:$0xf]
        %v1788 = vld [vmem:[%s14 + $0x28] sm:$0xf]
        %v1789 = vld [vmem:[%s14 + $0x2c] sm:$0xf]
        %v1790 = vld [vmem:[%s14 + $0x30] sm:$0xf]
        %v1791 = vld [vmem:[%s14 + $0x34] sm:$0xf]
        %v1792 = vld [vmem:[%s14 + $0x38] sm:$0xf]
        %v1793 = vld [vmem:[%s14 + $0x3c] sm:$0xf]
        %v1794 = vld [vmem:[%s15] sm:$0x1]
        %v1796 = vlaneseq
        %v1797 = vshrl.u32 %v1796, 7
        %v1798 = vsub.s32 0, %v1797
        %v1799 = vrot.slane %v1794, %v1798
        %v1817 = vunpack.c.l.b16 %v1778
        %v1818 = vunpack.c.l.b16 %v1779
        %v1819 = vunpack.c.l.b16 %v1780
        %v1820 = vunpack.c.l.b16 %v1781
        %v1821 = vunpack.c.l.b16 %v1782
        %v1822 = vunpack.c.l.b16 %v1783
        %v1823 = vunpack.c.l.b16 %v1784
        %v1824 = vunpack.c.l.b16 %v1785
        %v1825 = vunpack.c.l.b16 %v1786
        %v1826 = vunpack.c.l.b16 %v1787
        %v1827 = vunpack.c.l.b16 %v1788
        %v1828 = vunpack.c.l.b16 %v1789
        %v1829 = vunpack.c.l.b16 %v1790
        %v1830 = vunpack.c.l.b16 %v1791
        %v1831 = vunpack.c.l.b16 %v1792
        %v1832 = vunpack.c.l.b16 %v1793
        %v1833 = vpack.c.b16 %v1818, %v1817
        %v1834 = vpack.c.b16 %v1820, %v1819
        %v1835 = vpack.c.b16 %v1822, %v1821
        %v1836 = vpack.c.b16 %v1824, %v1823
        %v1837 = vpack.c.b16 %v1826, %v1825
        %v1838 = vpack.c.b16 %v1828, %v1827
        %v1839 = vpack.c.b16 %v1830, %v1829
        %v1840 = vpack.c.b16 %v1832, %v1831
        %1849 = vmatprep.subr.bf16.mxu0 0
        %1850 = vmatpush1.bf16.msra.mxu0 %v1833
        %1851 = vmatprep.subr.bf16.mxu0 0
        %1852 = vmatpush1.bf16.msra.mxu0 %v1834
        %1853 = vmatprep.subr.bf16.mxu0 0
        %1854 = vmatpush1.bf16.msra.mxu0 %v1835
        %1855 = vmatprep.subr.bf16.mxu0 0
        %1856 = vmatpush1.bf16.msra.mxu0 %v1836
        %1857 = vmatprep.subr.bf16.mxu0 0
        %1858 = vmatpush1.bf16.msra.mxu0 %v1837
        %1859 = vmatprep.subr.bf16.mxu0 0
        %1860 = vmatpush1.bf16.msra.mxu0 %v1838
        %1861 = vmatprep.subr.bf16.mxu0 0
        %1862 = vmatpush1.bf16.msra.mxu0 %v1839
        %1863 = vmatprep.subr.bf16.mxu0 0
        %1864 = vmatpush1.bf16.msra.mxu0 %v1840
        %1865 = vmatprep.subr.bf16.mxu0 0
        %1866 = vmatpush1.bf16.msra.mxu0 0
        %1867 = vmatprep.subr.bf16.mxu0 0
        %1868 = vmatpush1.bf16.msra.mxu0 0
        %1869 = vmatprep.subr.bf16.mxu0 0
        %1870 = vmatpush1.bf16.msra.mxu0 0
        %1871 = vmatprep.subr.bf16.mxu0 0
        %1872 = vmatpush1.bf16.msra.mxu0 0
        %1873 = vmatprep.subr.bf16.mxu0 0
        %1874 = vmatpush1.bf16.msra.mxu0 0
        %1875 = vmatprep.subr.bf16.mxu0 0
        %1876 = vmatpush1.bf16.msra.mxu0 0
        %1877 = vmatprep.subr.bf16.mxu0 0
        %1878 = vmatpush1.bf16.msra.mxu0 0
        %1879 = vmatprep.subr.bf16.mxu0 0
        %1880 = vmatpush1.bf16.msra.mxu0 0
        %1881 = vmatprep.mubr.bf16.mxu0 0
        %1882 = vmatmul.mubr.bf16.gmra.mrb[0].mxu0 %v1777
        %v1883 = vpop.f32.mrb[0].mxu0
        %v1884 = vadd.f32 %v1799, %v1883
        %v1885 = vpop.f32.mrb[0].mxu0
        %v1886 = vpop.f32.mrb[0].mxu0
        %v1887 = vadd.f32 %v1799, %v1886
        %v1888 = vpop.f32.mrb[0].mxu0
        %1889 = vdwg.mxu0
        %v1890 = vadd.f32 %v1673, %v1884
        %v1891 = vadd.f32 %v1674, %v1887
        %v1892 = vld [vmem:[%s16] sm:$0x1]
        %v1893 = vld [vmem:[%s17] sm:$0x1]
        %v1894 = vsel %vm781, %v1890, 0.0
        %1895 = vadd.xlane.f32.xlu0 %v1894
        %v1896 = vpop.xlane.xlu0 %1895
        %v1897 = vsel %vm781, %v1891, 0.0
        %1898 = vadd.xlane.f32.xlu0 %v1897
        %v1899 = vpop.xlane.xlu0 %1898
        %v1900 = vmul.f32 %v1896, %v788
        %v1901 = vmul.f32 %v1899, %v788
        %v1902 = vsub.f32 %v1890, %v1900
        %v1903 = vsub.f32 %v1891, %v1901
        %v1904 = vmul.f32 %v1902, %v1902
        %v1905 = vmul.f32 %v1903, %v1903
        %v1906 = vsel %vm781, %v1904, 0.0
        %1907 = vadd.xlane.f32.xlu0 %v1906
        %v1908 = vpop.xlane.xlu0 %1907
        %v1909 = vsel %vm781, %v1905, 0.0
        %1910 = vadd.xlane.f32.xlu0 %v1909
        %v1911 = vpop.xlane.xlu0 %1910
        %v1912 = vmul.f32 %v1908, %v788
        %v1913 = vmul.f32 %v1911, %v788
        %v1914 = vadd.f32 %v1912, 1e-05
        %v1915 = vadd.f32 %v1913, 1e-05
        %v1916 = vrsqrt.pop %v1914
        %v1917 = vrsqrt.pop %v1915
        %v1918 = vmul.f32 %v1902, %v1916
        %v1919 = vmul.f32 %v1903, %v1917
        %v1921 = vlaneseq
        %v1922 = vshrl.u32 %v1921, 7
        %v1923 = vsub.s32 0, %v1922
        %v1924 = vrot.slane %v1892, %v1923
        %v1926 = vmul.f32 %v1918, %v1924
        %v1927 = vmul.f32 %v1919, %v1924
        %v1929 = vlaneseq
        %v1930 = vshrl.u32 %v1929, 7
        %v1931 = vsub.s32 0, %v1930
        %v1932 = vrot.slane %v1893, %v1931
        %v1934 = vadd.f32 %v1926, %v1932
        %v1935 = vadd.f32 %v1927, %v1932
        %1936 = vst.msk [vmem:[%s623] sm:$0xff] %vm781, %v1934
        %1937 = vst.msk [vmem:[%s623 + $0x8] sm:$0xff] %vm781, %v1935
        %s1938 = sand.u32 %s444, 1
        %s1939 = scalar_lea.sflag [#allocation6], %s1938
        %s1940 = sand.u32 %s444, 1
        %s1941 = smul.addr %s1940, 16
        %s1942 = scalar_lea.vmem [#allocation9], %s1941
        // Predicated region
        $region105: #{tpu_custom_call.1} parent=91 // pred_check
          %p1943 = pneg %p454
        $region106: #{tpu_custom_call.1} parent=91 // pred_check_branch
          %1945 = sbr.rel (%p1943) target = $region108
        $region107: #{tpu_custom_call.1} parent=91 // pred_region
          %s1946 = smul.u32 2, %s39
          %s1948 = ssub.s32 256, 256
          %1949 = vsyncadd %s1939, %s1948
          %s1950 = smul.addr %s38, 2
          %s1951 = sadd.s32 %s1946, %s1950
          %s1952 = smul.addr %s1951, 128
          %s1953 = scalar_lea.hbm %s18, %s1952
          %s1954 = sshll.u32 %s1942, 4
          %s1955 = int_to_ptr.vmem [resolvable:$true] %s1954
          %1960 = dma.vmem_to_hbm [thread:$0]  %s1955, 256, %s1953, %s1939, 128, 128, 8
        $region108: #{tpu_custom_call.1} parent=91 // pred_fallthru
          _
      $region92: #{tpu_custom_call.1} parent=5 // pred_fallthru
        _
      %p1961 = scmp.le.s32.totalorder 2, %s29
      // Predicated region
      $region109: #{tpu_custom_call.1} parent=5 // pred_check
        %p1962 = pneg %p1961
      $region110: #{tpu_custom_call.1} parent=5 // pred_check_branch
        %1964 = sbr.rel (%p1962) target = $region112
      $region111: #{tpu_custom_call.1} parent=5 // pred_region
        %s1965 = ssub.s32 %s29, 2
        // Predicated region
        $region113: #{tpu_custom_call.1} parent=111 // pred_check
          %p1966 = pneg %p460
        $region114: #{tpu_custom_call.1} parent=111 // pred_check_branch
          %1968 = sbr.rel (%p1966) target = $region116
        $region115: #{tpu_custom_call.1} parent=111 // pred_region
          %s1969 = sand.u32 %s445, 1
          %s1970 = scalar_lea.sflag [#allocation6], %s1969
          %s1971 = sand.u32 %s445, 1
          %s1972 = smul.addr %s1971, 16
          %s1973 = scalar_lea.vmem [#allocation9], %s1972
          %1974 = dma.done %s1970, 256
        $region116: #{tpu_custom_call.1} parent=111 // pred_fallthru
          _
      $region112: #{tpu_custom_call.1} parent=5 // pred_fallthru
        _
    $region6: #{tpu_custom_call.1} parent=1 // loop_footer
      %s33 = sadd.s32 1, %s29
    $region7: #{tpu_custom_call.1} parent=1 // loop_footer_branch
      %28 = sbr.rel target = $region3
    $region8: #{tpu_custom_call.1} parent=1 // loop_exit
      _
    %1975 = vsyncpa [#allocation5], 1
    %s1976 = scalar_lea.sflag [#allocation5], 1
    %1977 = vsyncpa %s1976, 1
    %1978 = vsyncpa [#allocation8], 1
    %1979 = vsyncpa [#allocation6], 1
    %s1980 = scalar_lea.sflag [#allocation6], 1
    %1981 = vsyncpa %s1980, 1

// kernel: tpu_custom_call.1
$region0: #{tpu_custom_call.1}
  #allocation0 [shape = 'u32[]', space=smem, size = 0x4, offset = 0x4, fixed_abs, tag = 'smem constant byte address 0x4 - core index']
  #allocation1 [shape = 'u32[144,128]{1,0:T(1,128)}', space=vmem, size = 0x12000, scoped, tag = 'internal scratch']
  #allocation2 [shape = 'bf16[16,64]{1,0:T(16,128)(2,1)}', space=vmem, size = 0x1000, scoped, tag = 'scratch operand']
  #allocation3 [shape = 'bf16[16,64]{1,0:T(16,128)(2,1)}', space=vmem, size = 0x1000, scoped, tag = 'scratch operand']
  %s0 = inlined_call_operand.vmem [shape: f32[2,16,64], index: 0, kind: input, shape index: {}]
  %s1 = inlined_call_operand.vmem [shape: f32[2,1,16], index: 1, kind: input, shape index: {}]
  %s2 = inlined_call_operand.vmem [shape: f32[1,64], index: 2, kind: input, shape index: {}]
  %s3 = inlined_call_operand.vmem [shape: f32[1,64], index: 3, kind: input, shape index: {}]
  %s4 = inlined_call_operand.vmem [shape: bf16[64,64], index: 4, kind: input, shape index: {}]
  %s5 = inlined_call_operand.vmem [shape: f32[1,64], index: 5, kind: input, shape index: {}]
  %s6 = inlined_call_operand.vmem [shape: bf16[64,128], index: 6, kind: input, shape index: {}]
  %s7 = inlined_call_operand.vmem [shape: f32[1,128], index: 7, kind: input, shape index: {}]
  %s8 = inlined_call_operand.hbm [shape: bf16[64,64], index: 8, kind: input, shape index: {}]
  %s9 = inlined_call_operand.vmem [shape: f32[1,64], index: 9, kind: input, shape index: {}]
  %s10 = inlined_call_operand.vmem [shape: f32[1,64], index: 10, kind: input, shape index: {}]
  %s11 = inlined_call_operand.vmem [shape: f32[1,64], index: 11, kind: input, shape index: {}]
  %s12 = inlined_call_operand.hbm [shape: bf16[64,128], index: 12, kind: input, shape index: {}]
  %s13 = inlined_call_operand.vmem [shape: f32[1,128], index: 13, kind: input, shape index: {}]
  %s14 = inlined_call_operand.vmem [shape: bf16[128,64], index: 14, kind: input, shape index: {}]
  %s15 = inlined_call_operand.vmem [shape: f32[1,64], index: 15, kind: input, shape index: {}]
  %s16 = inlined_call_operand.vmem [shape: f32[1,64], index: 16, kind: input, shape index: {}]
  %s17 = inlined_call_operand.vmem [shape: f32[1,64], index: 17, kind: input, shape index: {}]
  %s18 = inlined_call_operand.hbm [shape: f32[2,16,64], index: 18, kind: output, shape index: {}]
  %s19 = sld [smem:[#allocation0]]
  $region117: #{tpu_custom_call.1} parent=0
    _
  %s21 = ssub.s32 1, %s19
  %s22 = scalar_select 0, %s21, %s19
  $region1: #{tpu_custom_call.1} parent=0
    #allocation4 [shape = 'u8[16384]{0}', space=vmem, size = 0x4000, scoped, tag = 'input window, operand 8, single buffered']
    #allocation5 [shape = 's32[2]{0}', space=sflag, size = 0x8, scoped, tag = 'scoped memory for tpu_custom_call.1']
    #allocation6 [shape = 's32[2]{0}', space=sflag, size = 0x8, scoped, tag = 'scoped memory for tpu_custom_call.1']
    #allocation7 [shape = 'u8[16384]{0}', space=vmem, size = 0x4000, scoped, tag = 'input window, operand 12, single buffered']
    #allocation8 [shape = 's32[1]{0}', space=sflag, size = 0x4, scoped, tag = 'scoped memory for tpu_custom_call.1']
    #allocation9 [shape = 'u8[16384]{0}', space=vmem, size = 0x4000, scoped, tag = 'output window, operand 0']
    %23 = vsyncpa [#allocation5], 0
    %24 = vsyncpa [#allocation8], 0
    %25 = vsyncpa [#allocation6], 0
    %s26 = scalar_lea.sflag [#allocation6], 1
    %27 = vsyncpa %s26, 0
    loop: start=0, step=1, limit=4
    $region2: #{tpu_custom_call.1} parent=1 // loop_pre_header
      _
    $region3: #{tpu_custom_call.1} parent=1 // loop_header
      %s29 = sphi 0, %s33
      %p30 = scmp.ge.s32.totalorder %s29, 4
      %s36 = sphi 0, %s48
      %s37 = sphi 0, %s44
      %s38 = sphi 0, %s36
      %s39 = sphi 0, %s37
      %s40 = sphi 0, %s38
      %s41 = sphi 0, %s39
      %s51 = sphi 0, %s53
      %s54 = sphi 0, %s51
      %s55 = sphi 0, %s54
      %s71 = sphi 0, %s55
      %s77 = sphi 0, %s79
      %s80 = sphi 0, %s77
      %s81 = sphi 0, %s80
      %s97 = sphi 0, %s81
      %s101 = sphi 0, %s101
      %s103 = sphi 0, %s101
      %s104 = sphi 0, %s103
      %s118 = sphi 0, %s104
      %s122 = sphi 0, %s122
      %s124 = sphi 0, %s122
      %s125 = sphi 0, %s124
      %s139 = sphi 0, %s125
      %s143 = sphi 0, %s143
      %s145 = sphi 0, %s143
      %s146 = sphi 0, %s145
      %s160 = sphi 0, %s146
      %s164 = sphi 0, %s164
      %s166 = sphi 0, %s164
      %s167 = sphi 0, %s166
      %s181 = sphi 0, %s167
      %s185 = sphi 0, %s185
      %s187 = sphi 0, %s185
      %s188 = sphi 0, %s187
      %s202 = sphi 0, %s188
      %s206 = sphi 0, %s206
      %s208 = sphi 0, %s206
      %s209 = sphi 0, %s208
      %s223 = sphi 0, %s209
      %s227 = sphi 0, %s227
      %s229 = sphi 0, %s227
      %s230 = sphi 0, %s229
      %s244 = sphi 0, %s230
      %s248 = sphi 0, %s248
      %s250 = sphi 0, %s248
      %s251 = sphi 0, %s250
      %s265 = sphi 0, %s251
      %s269 = sphi 0, %s269
      %s271 = sphi 0, %s269
      %s272 = sphi 0, %s271
      %s286 = sphi 0, %s272
      %s290 = sphi 0, %s290
      %s292 = sphi 0, %s290
      %s293 = sphi 0, %s292
      %s307 = sphi 0, %s293
      %s311 = sphi 0, %s311
      %s313 = sphi 0, %s311
      %s314 = sphi 0, %s313
      %s328 = sphi 0, %s314
      %s332 = sphi 0, %s332
      %s334 = sphi 0, %s332
      %s335 = sphi 0, %s334
      %s349 = sphi 0, %s335
      %s353 = sphi 0, %s353
      %s355 = sphi 0, %s353
      %s356 = sphi 0, %s355
      %s370 = sphi 0, %s356
      %s374 = sphi 0, %s374
      %s376 = sphi 0, %s374
      %s377 = sphi 0, %s376
      %s391 = sphi 0, %s377
      %s395 = sphi 0, %s395
      %s397 = sphi 0, %s395
      %s398 = sphi 0, %s397
      %s412 = sphi 0, %s398
      %s416 = sphi 0, %s416
      %s418 = sphi 0, %s416
      %s419 = sphi 0, %s418
      %s433 = sphi 0, %s419
      %s441 = sphi 0, %s443
      %s444 = sphi 0, %s441
      %s445 = sphi 0, %s444
      %s461 = sphi 0, %s445
    $region4: #{tpu_custom_call.1} parent=1 // loop_header_branch
      %32 = sbr.rel (%p30) target = $region8
    $region5: #{tpu_custom_call.1} parent=1 // loop_body
      %s34 = ssub.s32 %s29, 1
      %s35 = ssub.s32 %s29, 2
      %s42 = sadd.s32 1, %s37
      %p43 = scmp.ge.s32.totalorder %s42, 1
      %s44 = scalar_select %p43, 0, %s42
      %s45 = sadd.s32 1, %s36
      %s46 = scalar_select %p43, %s45, %s36
      %p47 = scmp.ge.s32.totalorder %s46, 2
      %s48 = scalar_select %p47, 0, %s46
      %s49 = ssub.s32 %s36, %s48
      %p50 = scmp.eq.s32.totalorder %s49, 0
      %s52 = sadd.s32 %s51, 1
      %s53 = scalar_select %p50, %s51, %s52
      %p56 = pneg %p50
      %p57 = scmp.eq.s32.totalorder %s29, 1
      %p58 = por %p56, %p57
      %p59 = scmp.ne.s32.totalorder %s51, %s54
      %p60 = scmp.eq.s32.totalorder %s29, 0
      %p61 = por %p59, %p60
      %p62 = scmp.ne.s32.totalorder %s51, %s54
      %p63 = scmp.eq.s32.totalorder %s34, 1
      %p64 = por %p62, %p63
      %p65 = scmp.ne.s32.totalorder %s54, %s55
      %p66 = scmp.eq.s32.totalorder %s34, 0
      %p67 = por %p65, %p66
      %p68 = scmp.ne.s32.totalorder %s54, %s55
      %p69 = scmp.eq.s32.totalorder %s35, 1
      %p70 = por %p68, %p69
      %p72 = scmp.ne.s32.totalorder %s55, %s71
      %p73 = scmp.eq.s32.totalorder %s35, 0
      %p74 = por %p72, %p73
      %s75 = ssub.s32 %s36, %s48
      %p76 = scmp.eq.s32.totalorder %s75, 0
      %s78 = sadd.s32 %s77, 1
      %s79 = scalar_select %p76, %s77, %s78
      %p82 = pneg %p76
      %p83 = scmp.eq.s32.totalorder %s29, 1
      %p84 = por %p82, %p83
      %p85 = scmp.ne.s32.totalorder %s77, %s80
      %p86 = scmp.eq.s32.totalorder %s29, 0
      %p87 = por %p85, %p86
      %p88 = scmp.ne.s32.totalorder %s77, %s80
      %p89 = scmp.eq.s32.totalorder %s34, 1
      %p90 = por %p88, %p89
      %p91 = scmp.ne.s32.totalorder %s80, %s81
      %p92 = scmp.eq.s32.totalorder %s34, 0
      %p93 = por %p91, %p92
      %p94 = scmp.ne.s32.totalorder %s80, %s81
      %p95 = scmp.eq.s32.totalorder %s35, 1
      %p96 = por %p94, %p95
      %p98 = scmp.ne.s32.totalorder %s81, %s97
      %p99 = scmp.eq.s32.totalorder %s35, 0
      %p100 = por %p98, %p99
      %s102 = sadd.s32 %s101, 1
      %p105 = scmp.eq.s32.totalorder %s29, 1
      %p106 = scmp.ne.s32.totalorder %s101, %s103
      %p107 = scmp.eq.s32.totalorder %s29, 0
      %p108 = por %p106, %p107
      %p109 = scmp.ne.s32.totalorder %s101, %s103
      %p110 = scmp.eq.s32.totalorder %s34, 1
      %p111 = por %p109, %p110
      %p112 = scmp.ne.s32.totalorder %s103, %s104
      %p113 = scmp.eq.s32.totalorder %s34, 0
      %p114 = por %p112, %p113
      %p115 = scmp.ne.s32.totalorder %s103, %s104
      %p116 = scmp.eq.s32.totalorder %s35, 1
      %p117 = por %p115, %p116
      %p119 = scmp.ne.s32.totalorder %s104, %s118
      %p120 = scmp.eq.s32.totalorder %s35, 0
      %p121 = por %p119, %p120
      %s123 = sadd.s32 %s122, 1
      %p126 = scmp.eq.s32.totalorder %s29, 1
      %p127 = scmp.ne.s32.totalorder %s122, %s124
      %p128 = scmp.eq.s32.totalorder %s29, 0
      %p129 = por %p127, %p128
      %p130 = scmp.ne.s32.totalorder %s122, %s124
      %p131 = scmp.eq.s32.totalorder %s34, 1
      %p132 = por %p130, %p131
      %p133 = scmp.ne.s32.totalorder %s124, %s125
      %p134 = scmp.eq.s32.totalorder %s34, 0
      %p135 = por %p133, %p134
      %p136 = scmp.ne.s32.totalorder %s124, %s125
      %p137 = scmp.eq.s32.totalorder %s35, 1
      %p138 = por %p136, %p137
      %p140 = scmp.ne.s32.totalorder %s125, %s139
      %p141 = scmp.eq.s32.totalorder %s35, 0
      %p142 = por %p140, %p141
      %s144 = sadd.s32 %s143, 1
      %p147 = scmp.eq.s32.totalorder %s29, 1
      %p148 = scmp.ne.s32.totalorder %s143, %s145
      %p149 = scmp.eq.s32.totalorder %s29, 0
      %p150 = por %p148, %p149
      %p151 = scmp.ne.s32.totalorder %s143, %s145
      %p152 = scmp.eq.s32.totalorder %s34, 1
      %p153 = por %p151, %p152
      %p154 = scmp.ne.s32.totalorder %s145, %s146
      %p155 = scmp.eq.s32.totalorder %s34, 0
      %p156 = por %p154, %p155
      %p157 = scmp.ne.s32.totalorder %s145, %s146
      %p158 = scmp.eq.s32.totalorder %s35, 1
      %p159 = por %p157, %p158
      %p161 = scmp.ne.s32.totalorder %s146, %s160
      %p162 = scmp.eq.s32.totalorder %s35, 0
      %p163 = por %p161, %p162
      %s165 = sadd.s32 %s164, 1
      %p168 = scmp.eq.s32.totalorder %s29, 1
      %p169 = scmp.ne.s32.totalorder %s164, %s166
      %p170 = scmp.eq.s32.totalorder %s29, 0
      %p171 = por %p169, %p170
      %p172 = scmp.ne.s32.totalorder %s164, %s166
      %p173 = scmp.eq.s32.totalorder %s34, 1
      %p174 = por %p172, %p173
      %p175 = scmp.ne.s32.totalorder %s166, %s167
      %p176 = scmp.eq.s32.totalorder %s34, 0
      %p177 = por %p175, %p176
      %p178 = scmp.ne.s32.totalorder %s166, %s167
      %p179 = scmp.eq.s32.totalorder %s35, 1
      %p180 = por %p178, %p179
      %p182 = scmp.ne.s32.totalorder %s167, %s181
      %p183 = scmp.eq.s32.totalorder %s35, 0
      %p184 = por %p182, %p183
      %s186 = sadd.s32 %s185, 1
      %p189 = scmp.eq.s32.totalorder %s29, 1
      %p190 = scmp.ne.s32.totalorder %s185, %s187
      %p191 = scmp.eq.s32.totalorder %s29, 0
      %p192 = por %p190, %p191
      %p193 = scmp.ne.s32.totalorder %s185, %s187
      %p194 = scmp.eq.s32.totalorder %s34, 1
      %p195 = por %p193, %p194
      %p196 = scmp.ne.s32.totalorder %s187, %s188
      %p197 = scmp.eq.s32.totalorder %s34, 0
      %p198 = por %p196, %p197
      %p199 = scmp.ne.s32.totalorder %s187, %s188
      %p200 = scmp.eq.s32.totalorder %s35, 1
      %p201 = por %p199, %p200
      %p203 = scmp.ne.s32.totalorder %s188, %s202
      %p204 = scmp.eq.s32.totalorder %s35, 0
      %p205 = por %p203, %p204
      %s207 = sadd.s32 %s206, 1
      %p210 = scmp.eq.s32.totalorder %s29, 1
      %p211 = scmp.ne.s32.totalorder %s206, %s208
      %p212 = scmp.eq.s32.totalorder %s29, 0
      %p213 = por %p211, %p212
      %p214 = scmp.ne.s32.totalorder %s206, %s208
      %p215 = scmp.eq.s32.totalorder %s34, 1
      %p216 = por %p214, %p215
      %p217 = scmp.ne.s32.totalorder %s208, %s209
      %p218 = scmp.eq.s32.totalorder %s34, 0
      %p219 = por %p217, %p218
      %p220 = scmp.ne.s32.totalorder %s208, %s209
      %p221 = scmp.eq.s32.totalorder %s35, 1
      %p222 = por %p220, %p221
      %p224 = scmp.ne.s32.totalorder %s209, %s223
      %p225 = scmp.eq.s32.totalorder %s35, 0
      %p226 = por %p224, %p225
      %s228 = sadd.s32 %s227, 1
      %p231 = scmp.eq.s32.totalorder %s29, 1
      %p232 = scmp.ne.s32.totalorder %s227, %s229
      %p233 = scmp.eq.s32.totalorder %s29, 0
      %p234 = por %p232, %p233
      %p235 = scmp.ne.s32.totalorder %s227, %s229
      %p236 = scmp.eq.s32.totalorder %s34, 1
      %p237 = por %p235, %p236
      %p238 = scmp.ne.s32.totalorder %s229, %s230
      %p239 = scmp.eq.s32.totalorder %s34, 0
      %p240 = por %p238, %p239
      %p241 = scmp.ne.s32.totalorder %s229, %s230
      %p242 = scmp.eq.s32.totalorder %s35, 1
      %p243 = por %p241, %p242
      %p245 = scmp.ne.s32.totalorder %s230, %s244
      %p246 = scmp.eq.s32.totalorder %s35, 0
      %p247 = por %p245, %p246
      %s249 = sadd.s32 %s248, 1
      %p252 = scmp.eq.s32.totalorder %s29, 1
      %p253 = scmp.ne.s32.totalorder %s248, %s250
      %p254 = scmp.eq.s32.totalorder %s29, 0
      %p255 = por %p253, %p254
      %p256 = scmp.ne.s32.totalorder %s248, %s250
      %p257 = scmp.eq.s32.totalorder %s34, 1
      %p258 = por %p256, %p257
      %p259 = scmp.ne.s32.totalorder %s250, %s251
      %p260 = scmp.eq.s32.totalorder %s34, 0
      %p261 = por %p259, %p260
      %p262 = scmp.ne.s32.totalorder %s250, %s251
      %p263 = scmp.eq.s32.totalorder %s35, 1
      %p264 = por %p262, %p263
      %p266 = scmp.ne.s32.totalorder %s251, %s265
      %p267 = scmp.eq.s32.totalorder %s35, 0
      %p268 = por %p266, %p267
      %s270 = sadd.s32 %s269, 1
      %p273 = scmp.eq.s32.totalorder %s29, 1
      %p274 = scmp.ne.s32.totalorder %s269, %s271
      %p275 = scmp.eq.s32.totalorder %s29, 0
      %p276 = por %p274, %p275
      %p277 = scmp.ne.s32.totalorder %s269, %s271
      %p278 = scmp.eq.s32.totalorder %s34, 1
      %p279 = por %p277, %p278
      %p280 = scmp.ne.s32.totalorder %s271, %s272
      %p281 = scmp.eq.s32.totalorder %s34, 0
      %p282 = por %p280, %p281
      %p283 = scmp.ne.s32.totalorder %s271, %s272
      %p284 = scmp.eq.s32.totalorder %s35, 1
      %p285 = por %p283, %p284
      %p287 = scmp.ne.s32.totalorder %s272, %s286
      %p288 = scmp.eq.s32.totalorder %s35, 0
      %p289 = por %p287, %p288
      %s291 = sadd.s32 %s290, 1
      %p294 = scmp.eq.s32.totalorder %s29, 1
      %p295 = scmp.ne.s32.totalorder %s290, %s292
      %p296 = scmp.eq.s32.totalorder %s29, 0
      %p297 = por %p295, %p296
      %p298 = scmp.ne.s32.totalorder %s290, %s292
      %p299 = scmp.eq.s32.totalorder %s34, 1
      %p300 = por %p298, %p299
      %p301 = scmp.ne.s32.totalorder %s292, %s293
      %p302 = scmp.eq.s32.totalorder %s34, 0
      %p303 = por %p301, %p302
      %p304 = scmp.ne.s32.totalorder %s292, %s293
      %p305 = scmp.eq.s32.totalorder %s35, 1
      %p306 = por %p304, %p305
      %p308 = scmp.ne.s32.totalorder %s293, %s307
      %p309 = scmp.eq.s32.totalorder %s35, 0
      %p310 = por %p308, %p309
      %s312 = sadd.s32 %s311, 1
      %p315 = scmp.eq.s32.totalorder %s29, 1
      %p316 = scmp.ne.s32.totalorder %s311, %s313
      %p317 = scmp.eq.s32.totalorder %s29, 0
      %p318 = por %p316, %p317
      %p319 = scmp.ne.s32.totalorder %s311, %s313
      %p320 = scmp.eq.s32.totalorder %s34, 1
      %p321 = por %p319, %p320
      %p322 = scmp.ne.s32.totalorder %s313, %s314
      %p323 = scmp.eq.s32.totalorder %s34, 0
      %p324 = por %p322, %p323
      %p325 = scmp.ne.s32.totalorder %s313, %s314
      %p326 = scmp.eq.s32.totalorder %s35, 1
      %p327 = por %p325, %p326
      %p329 = scmp.ne.s32.totalorder %s314, %s328
      %p330 = scmp.eq.s32.totalorder %s35, 0
      %p331 = por %p329, %p330
      %s333 = sadd.s32 %s332, 1
      %p336 = scmp.eq.s32.totalorder %s29, 1
      %p337 = scmp.ne.s32.totalorder %s332, %s334
      %p338 = scmp.eq.s32.totalorder %s29, 0
      %p339 = por %p337, %p338
      %p340 = scmp.ne.s32.totalorder %s332, %s334
      %p341 = scmp.eq.s32.totalorder %s34, 1
      %p342 = por %p340, %p341
      %p343 = scmp.ne.s32.totalorder %s334, %s335
      %p344 = scmp.eq.s32.totalorder %s34, 0
      %p345 = por %p343, %p344
      %p346 = scmp.ne.s32.totalorder %s334, %s335
      %p347 = scmp.eq.s32.totalorder %s35, 1
      %p348 = por %p346, %p347
      %p350 = scmp.ne.s32.totalorder %s335, %s349
      %p351 = scmp.eq.s32.totalorder %s35, 0
      %p352 = por %p350, %p351
      %s354 = sadd.s32 %s353, 1
      %p357 = scmp.eq.s32.totalorder %s29, 1
      %p358 = scmp.ne.s32.totalorder %s353, %s355
      %p359 = scmp.eq.s32.totalorder %s29, 0
      %p360 = por %p358, %p359
      %p361 = scmp.ne.s32.totalorder %s353, %s355
      %p362 = scmp.eq.s32.totalorder %s34, 1
      %p363 = por %p361, %p362
      %p364 = scmp.ne.s32.totalorder %s355, %s356
      %p365 = scmp.eq.s32.totalorder %s34, 0
      %p366 = por %p364, %p365
      %p367 = scmp.ne.s32.totalorder %s355, %s356
      %p368 = scmp.eq.s32.totalorder %s35, 1
      %p369 = por %p367, %p368
      %p371 = scmp.ne.s32.totalorder %s356, %s370
      %p372 = scmp.eq.s32.totalorder %s35, 0
      %p373 = por %p371, %p372
      %s375 = sadd.s32 %s374, 1
      %p378 = scmp.eq.s32.totalorder %s29, 1
      %p379 = scmp.ne.s32.totalorder %s374, %s376
      %p380 = scmp.eq.s32.totalorder %s29, 0
      %p381 = por %p379, %p380
      %p382 = scmp.ne.s32.totalorder %s374, %s376
      %p383 = scmp.eq.s32.totalorder %s34, 1
      %p384 = por %p382, %p383
      %p385 = scmp.ne.s32.totalorder %s376, %s377
      %p386 = scmp.eq.s32.totalorder %s34, 0
      %p387 = por %p385, %p386
      %p388 = scmp.ne.s32.totalorder %s376, %s377
      %p389 = scmp.eq.s32.totalorder %s35, 1
      %p390 = por %p388, %p389
      %p392 = scmp.ne.s32.totalorder %s377, %s391
      %p393 = scmp.eq.s32.totalorder %s35, 0
      %p394 = por %p392, %p393
      %s396 = sadd.s32 %s395, 1
      %p399 = scmp.eq.s32.totalorder %s29, 1
      %p400 = scmp.ne.s32.totalorder %s395, %s397
      %p401 = scmp.eq.s32.totalorder %s29, 0
      %p402 = por %p400, %p401
      %p403 = scmp.ne.s32.totalorder %s395, %s397
      %p404 = scmp.eq.s32.totalorder %s34, 1
      %p405 = por %p403, %p404
      %p406 = scmp.ne.s32.totalorder %s397, %s398
      %p407 = scmp.eq.s32.totalorder %s34, 0
      %p408 = por %p406, %p407
      %p409 = scmp.ne.s32.totalorder %s397, %s398
      %p410 = scmp.eq.s32.totalorder %s35, 1
      %p411 = por %p409, %p410
      %p413 = scmp.ne.s32.totalorder %s398, %s412
      %p414 = scmp.eq.s32.totalorder %s35, 0
      %p415 = por %p413, %p414
      %s417 = sadd.s32 %s416, 1
      %p420 = scmp.eq.s32.totalorder %s29, 1
      %p421 = scmp.ne.s32.totalorder %s416, %s418
      %p422 = scmp.eq.s32.totalorder %s29, 0
      %p423 = por %p421, %p422
      %p424 = scmp.ne.s32.totalorder %s416, %s418
      %p425 = scmp.eq.s32.totalorder %s34, 1
      %p426 = por %p424, %p425
      %p427 = scmp.ne.s32.totalorder %s418, %s419
      %p428 = scmp.eq.s32.totalorder %s34, 0
      %p429 = por %p427, %p428
      %p430 = scmp.ne.s32.totalorder %s418, %s419
      %p431 = scmp.eq.s32.totalorder %s35, 1
      %p432 = por %p430, %p431
      %p434 = scmp.ne.s32.totalorder %s419, %s433
      %p435 = scmp.eq.s32.totalorder %s35, 0
      %p436 = por %p434, %p435
      %s437 = ssub.s32 %s36, %s48
      %s438 = ssub.s32 %s37, %s44
      %s439 = sor.u32 %s437, %s438
      %p440 = scmp.eq.s32.totalorder %s439, 0
      %s442 = sadd.s32 %s441, 1
      %s443 = scalar_select %p440, %s441, %s442
      %p446 = pneg %p440
      %p447 = scmp.eq.s32.totalorder %s29, 1
      %p448 = por %p446, %p447
      %p449 = scmp.ne.s32.totalorder %s441, %s444
      %p450 = scmp.eq.s32.totalorder %s29, 0
      %p451 = por %p449, %p450
      %p452 = scmp.ne.s32.totalorder %s441, %s444
      %p453 = scmp.eq.s32.totalorder %s34, 1
      %p454 = por %p452, %p453
      %p455 = scmp.ne.s32.totalorder %s444, %s445
      %p456 = scmp.eq.s32.totalorder %s34, 0
      %p457 = por %p455, %p456
      %p458 = scmp.ne.s32.totalorder %s444, %s445
      %p459 = scmp.eq.s32.totalorder %s35, 1
      %p460 = por %p458, %p459
      %p462 = scmp.ne.s32.totalorder %s445, %s461
      %p463 = scmp.eq.s32.totalorder %s35, 0
      %p464 = por %p462, %p463
      %p465 = scmp.le.s32.totalorder 1, %s29
      %p466 = scmp.lt.s32.totalorder %s29, 3
      %p467 = pnand %p465, %p466
      %p468 = pneg %p467
      // Predicated region
      $region9: #{tpu_custom_call.1} parent=5 // pred_check
        _
      $region10: #{tpu_custom_call.1} parent=5 // pred_check_branch
        %470 = sbr.rel (%p467) target = $region12
      $region11: #{tpu_custom_call.1} parent=5 // pred_region
        %s471 = ssub.s32 %s29, 1
        // Predicated region
        $region13: #{tpu_custom_call.1} parent=11 // pred_check
          %p472 = pneg %p114
        $region14: #{tpu_custom_call.1} parent=11 // pred_check_branch
          %474 = sbr.rel (%p472) target = $region16
        $region15: #{tpu_custom_call.1} parent=11 // pred_region
          _
        $region16: #{tpu_custom_call.1} parent=11 // pred_fallthru
          _
        // Predicated region
        $region17: #{tpu_custom_call.1} parent=11 // pred_check
          %p475 = pneg %p135
        $region18: #{tpu_custom_call.1} parent=11 // pred_check_branch
          %477 = sbr.rel (%p475) target = $region20
        $region19: #{tpu_custom_call.1} parent=11 // pred_region
          _
        $region20: #{tpu_custom_call.1} parent=11 // pred_fallthru
          _
        // Predicated region
        $region21: #{tpu_custom_call.1} parent=11 // pred_check
          %p478 = pneg %p156
        $region22: #{tpu_custom_call.1} parent=11 // pred_check_branch
          %480 = sbr.rel (%p478) target = $region24
        $region23: #{tpu_custom_call.1} parent=11 // pred_region
          _
        $region24: #{tpu_custom_call.1} parent=11 // pred_fallthru
          _
        // Predicated region
        $region25: #{tpu_custom_call.1} parent=11 // pred_check
          %p481 = pneg %p177
        $region26: #{tpu_custom_call.1} parent=11 // pred_check_branch
          %483 = sbr.rel (%p481) target = $region28
        $region27: #{tpu_custom_call.1} parent=11 // pred_region
          _
        $region28: #{tpu_custom_call.1} parent=11 // pred_fallthru
          _
        // Predicated region
        $region29: #{tpu_custom_call.1} parent=11 // pred_check
          %p484 = pneg %p198
        $region30: #{tpu_custom_call.1} parent=11 // pred_check_branch
          %486 = sbr.rel (%p484) target = $region32
        $region31: #{tpu_custom_call.1} parent=11 // pred_region
          _
        $region32: #{tpu_custom_call.1} parent=11 // pred_fallthru
          _
        // Predicated region
        $region33: #{tpu_custom_call.1} parent=11 // pred_check
          %p487 = pneg %p219
        $region34: #{tpu_custom_call.1} parent=11 // pred_check_branch
          %489 = sbr.rel (%p487) target = $region36
        $region35: #{tpu_custom_call.1} parent=11 // pred_region
          _
        $region36: #{tpu_custom_call.1} parent=11 // pred_fallthru
          _
        // Predicated region
        $region37: #{tpu_custom_call.1} parent=11 // pred_check
          %p490 = pneg %p240
        $region38: #{tpu_custom_call.1} parent=11 // pred_check_branch
          %492 = sbr.rel (%p490) target = $region40
        $region39: #{tpu_custom_call.1} parent=11 // pred_region
          %s494 = ssub.s32 512, 512
          %495 = vsyncadd [#allocation5], %s494
          %s496 = sshll.u32 [#allocation4], 4
          %s497 = int_to_ptr.vmem [resolvable:$true] %s496
          %502 = dma.hbm_to_vmem [thread:$0]  %s8, 512, %s497, [#allocation5], 64, 64, 4
        $region40: #{tpu_custom_call.1} parent=11 // pred_fallthru
          _
        // Predicated region
        $region41: #{tpu_custom_call.1} parent=11 // pred_check
          %p503 = pneg %p261
        $region42: #{tpu_custom_call.1} parent=11 // pred_check_branch
          %505 = sbr.rel (%p503) target = $region44
        $region43: #{tpu_custom_call.1} parent=11 // pred_region
          _
        $region44: #{tpu_custom_call.1} parent=11 // pred_fallthru
          _
        // Predicated region
        $region45: #{tpu_custom_call.1} parent=11 // pred_check
          %p506 = pneg %p282
        $region46: #{tpu_custom_call.1} parent=11 // pred_check_branch
          %508 = sbr.rel (%p506) target = $region48
        $region47: #{tpu_custom_call.1} parent=11 // pred_region
          _
        $region48: #{tpu_custom_call.1} parent=11 // pred_fallthru
          _
        // Predicated region
        $region49: #{tpu_custom_call.1} parent=11 // pred_check
          %p509 = pneg %p303
        $region50: #{tpu_custom_call.1} parent=11 // pred_check_branch
          %511 = sbr.rel (%p509) target = $region52
        $region51: #{tpu_custom_call.1} parent=11 // pred_region
          _
        $region52: #{tpu_custom_call.1} parent=11 // pred_fallthru
          _
        // Predicated region
        $region53: #{tpu_custom_call.1} parent=11 // pred_check
          %p512 = pneg %p324
        $region54: #{tpu_custom_call.1} parent=11 // pred_check_branch
          %514 = sbr.rel (%p512) target = $region56
        $region55: #{tpu_custom_call.1} parent=11 // pred_region
          %s516 = ssub.s32 512, 512
          %517 = vsyncadd [#allocation8], %s516
          %s518 = sshll.u32 [#allocation7], 4
          %s519 = int_to_ptr.vmem [resolvable:$true] %s518
          %524 = dma.hbm_to_vmem [thread:$0]  %s12, 512, %s519, [#allocation8], 64, 64, 4
        $region56: #{tpu_custom_call.1} parent=11 // pred_fallthru
          _
        // Predicated region
        $region57: #{tpu_custom_call.1} parent=11 // pred_check
          %p525 = pneg %p345
        $region58: #{tpu_custom_call.1} parent=11 // pred_check_branch
          %527 = sbr.rel (%p525) target = $region60
        $region59: #{tpu_custom_call.1} parent=11 // pred_region
          _
        $region60: #{tpu_custom_call.1} parent=11 // pred_fallthru
          _
        // Predicated region
        $region61: #{tpu_custom_call.1} parent=11 // pred_check
          %p528 = pneg %p366
        $region62: #{tpu_custom_call.1} parent=11 // pred_check_branch
          %530 = sbr.rel (%p528) target = $region64
        $region63: #{tpu_custom_call.1} parent=11 // pred_region
          _
        $region64: #{tpu_custom_call.1} parent=11 // pred_fallthru
          _
        // Predicated region
        $region65: #{tpu_custom_call.1} parent=11 // pred_check
          %p531 = pneg %p387
        $region66: #{tpu_custom_call.1} parent=11 // pred_check_branch
          %533 = sbr.rel (%p531) target = $region68
        $region67: #{tpu_custom_call.1} parent=11 // pred_region
          _
        $region68: #{tpu_custom_call.1} parent=11 // pred_fallthru
          _
        // Predicated region
        $region69: #{tpu_custom_call.1} parent=11 // pred_check
          %p534 = pneg %p408
        $region70: #{tpu_custom_call.1} parent=11 // pred_check_branch
          %536 = sbr.rel (%p534) target = $region72
        $region71: #{tpu_custom_call.1} parent=11 // pred_region
          _
        $region72: #{tpu_custom_call.1} parent=11 // pred_fallthru
          _
        // Predicated region
        $region73: #{tpu_custom_call.1} parent=11 // pred_check
          %p537 = pneg %p429
        $region74: #{tpu_custom_call.1} parent=11 // pred_check_branch
          %539 = sbr.rel (%p537) target = $region76
        $region75: #{tpu_custom_call.1} parent=11 // pred_region
          _
        $region76: #{tpu_custom_call.1} parent=11 // pred_fallthru
          _
      $region12: #{tpu_custom_call.1} parent=5 // pred_fallthru
        _
      %p540 = scmp.lt.s32.totalorder %s29, 2
      // Predicated region
      $region77: #{tpu_custom_call.1} parent=5 // pred_check
        %p541 = pneg %p540
      $region78: #{tpu_custom_call.1} parent=5 // pred_check_branch
        %543 = sbr.rel (%p541) target = $region80
      $region79: #{tpu_custom_call.1} parent=5 // pred_region
        // Predicated region
        $region81: #{tpu_custom_call.1} parent=79 // pred_check
          %p544 = pneg %p61
        $region82: #{tpu_custom_call.1} parent=79 // pred_check_branch
          %546 = sbr.rel (%p544) target = $region84
        $region83: #{tpu_custom_call.1} parent=79 // pred_region
          %p547 = scmp.lt.s32.totalorder %s36, 1
          %s548 = scalar_select %p547, %s36, 1
          %s549 = smul.addr %s548, 2
          %s550 = smul.addr %s549, 8
          %s551 = scalar_lea.vmem %s0, %s550
        $region84: #{tpu_custom_call.1} parent=79 // pred_fallthru
          _
        // Predicated region
        $region85: #{tpu_custom_call.1} parent=79 // pred_check
          %p552 = pneg %p87
        $region86: #{tpu_custom_call.1} parent=79 // pred_check_branch
          %554 = sbr.rel (%p552) target = $region88
        $region87: #{tpu_custom_call.1} parent=79 // pred_region
          %p555 = scmp.lt.s32.totalorder %s36, 1
          %s556 = scalar_select %p555, %s36, 1
          %s557 = scalar_lea.vmem %s1, %s556
        $region88: #{tpu_custom_call.1} parent=79 // pred_fallthru
          _
      $region80: #{tpu_custom_call.1} parent=5 // pred_fallthru
        _
      %p558 = scmp.le.s32.totalorder 1, %s29
      %p559 = scmp.lt.s32.totalorder %s29, 3
      %p560 = pnand %p558, %p559
      %p561 = pneg %p560
      // Predicated region
      $region89: #{tpu_custom_call.1} parent=5 // pred_check
        _
      $region90: #{tpu_custom_call.1} parent=5 // pred_check_branch
        %563 = sbr.rel (%p560) target = $region92
      $region91: #{tpu_custom_call.1} parent=5 // pred_region
        %s564 = ssub.s32 %s29, 1
        // Predicated region
        $region93: #{tpu_custom_call.1} parent=91 // pred_check
          %p565 = pneg %p240
        $region94: #{tpu_custom_call.1} parent=91 // pred_check_branch
          %567 = sbr.rel (%p565) target = $region96
        $region95: #{tpu_custom_call.1} parent=91 // pred_region
          %568 = dma.done [#allocation5], 512
        $region96: #{tpu_custom_call.1} parent=91 // pred_fallthru
          _
        // Predicated region
        $region97: #{tpu_custom_call.1} parent=91 // pred_check
          %p569 = pneg %p324
        $region98: #{tpu_custom_call.1} parent=91 // pred_check_branch
          %571 = sbr.rel (%p569) target = $region100
        $region99: #{tpu_custom_call.1} parent=91 // pred_region
          %572 = dma.done [#allocation8], 512
        $region100: #{tpu_custom_call.1} parent=91 // pred_fallthru
          _
        %p573 = scmp.lt.s32.totalorder %s38, 1
        %s574 = scalar_select %p573, %s38, 1
        %s575 = smul.addr %s574, 2
        %s576 = smul.addr %s575, 8
        %s577 = scalar_lea.vmem %s0, %s576
        %p578 = pneg %p67
        %p579 = pneg %p64
        %p580 = scmp.lt.s32.totalorder %s38, 1
        %s581 = scalar_select %p580, %s38, 1
        %s582 = scalar_lea.vmem %s1, %s581
        %p583 = pneg %p93
        %p584 = pneg %p90
        %p585 = pneg %p114
        %p586 = pneg %p111
        %p587 = pneg %p135
        %p588 = pneg %p132
        %p589 = pneg %p156
        %p590 = pneg %p153
        %p591 = pneg %p177
        %p592 = pneg %p174
        %p593 = pneg %p198
        %p594 = pneg %p195
        %p595 = pneg %p219
        %p596 = pneg %p216
        %p597 = pneg %p240
        %p598 = pneg %p237
        %p599 = pneg %p261
        %p600 = pneg %p258
        %p601 = pneg %p282
        %p602 = pneg %p279
        %p603 = pneg %p303
        %p604 = pneg %p300
        %p605 = pneg %p324
        %p606 = pneg %p321
        %p607 = pneg %p345
        %p608 = pneg %p342
        %p609 = pneg %p366
        %p610 = pneg %p363
        %p611 = pneg %p387
        %p612 = pneg %p384
        %p613 = pneg %p408
        %p614 = pneg %p405
        %p615 = pneg %p429
        %p616 = pneg %p426
        %p617 = pneg %p457
        %p618 = pneg %p454
        %s619 = sand.u32 %s444, 1
        %s620 = scalar_lea.sflag [#allocation6], %s619
        %s621 = sand.u32 %s444, 1
        %s622 = smul.addr %s621, 16
        %s623 = scalar_lea.vmem [#allocation9], %s622
        %p624 = scmp.lt.s32.totalorder %s38, 1
        %s625 = scalar_select %p624, %s38, 1
        %s626 = smul.addr %s625, 2
        %s627 = smul.addr %s626, 8
        %s628 = scalar_lea.vmem %s0, %s627
        %p629 = scmp.lt.s32.totalorder %s38, 1
        %s630 = scalar_select %p629, %s38, 1
        %s631 = scalar_lea.vmem %s1, %s630
        %s632 = smul.u32 2, %s39
        %v634 = vld [vmem:[%s2] sm:$0x1]
        %v635 = vld [vmem:[%s3] sm:$0x1]
        %p636 = scmp.eq.s32.totalorder %s39, 0
        // Predicated region
        $region101: #{tpu_custom_call.1} parent=91 // pred_check
          %p637 = pneg %p636
        $region102: #{tpu_custom_call.1} parent=91 // pred_check_branch
          %639 = sbr.rel (%p637) target = $region104
        $region103: #{tpu_custom_call.1} parent=91 // pred_region
          %v640 = vld [vmem:[%s628] sm:$0xff]
          %v641 = vld [vmem:[%s628 + $0x8] sm:$0xff]
          %vm642 = vcmask 523264
          %v643 = vsel %vm642, %v640, 0.0
          %644 = vadd.xlane.f32.xlu0 %v643
          %v645 = vpop.xlane.xlu0 %644
          %v646 = vsel %vm642, %v641, 0.0
          %647 = vadd.xlane.f32.xlu0 %v646
          %v648 = vpop.xlane.xlu0 %647
          %v649 = vrcp.pop 64.0
          %v650 = vmul.f32 %v645, %v649
          %v651 = vmul.f32 %v648, %v649
          %v652 = vsub.f32 %v640, %v650
          %v653 = vsub.f32 %v641, %v651
          %v654 = vmul.f32 %v652, %v652
          %v655 = vmul.f32 %v653, %v653
          %v656 = vsel %vm642, %v654, 0.0
          %657 = vadd.xlane.f32.xlu0 %v656
          %v658 = vpop.xlane.xlu0 %657
          %v659 = vsel %vm642, %v655, 0.0
          %660 = vadd.xlane.f32.xlu0 %v659
          %v661 = vpop.xlane.xlu0 %660
          %v662 = vmul.f32 %v658, %v649
          %v663 = vmul.f32 %v661, %v649
          %v664 = vadd.f32 %v662, 1e-05
          %v665 = vadd.f32 %v663, 1e-05
          %v666 = vrsqrt.pop %v664
          %v667 = vrsqrt.pop %v665
          %v668 = vmul.f32 %v652, %v666
          %v669 = vmul.f32 %v653, %v667
          %v671 = vlaneseq
          %v672 = vshrl.u32 %v671, 7
          %v673 = vsub.s32 0, %v672
          %v674 = vrot.slane %v634, %v673
          %v676 = vmul.f32 %v668, %v674
          %v677 = vmul.f32 %v669, %v674
          %v679 = vlaneseq
          %v680 = vshrl.u32 %v679, 7
          %v681 = vsub.s32 0, %v680
          %v682 = vrot.slane %v635, %v681
          %v684 = vadd.f32 %v676, %v682
          %v685 = vadd.f32 %v677, %v682
          %v686 = vpack.c.bf16 %v685, %v684
          %v687 = vld [vmem:[%s6] sm:$0xf]
          %v688 = vld [vmem:[%s6 + $0x4] sm:$0xf]
          %v689 = vld [vmem:[%s6 + $0x8] sm:$0xf]
          %v690 = vld [vmem:[%s6 + $0xc] sm:$0xf]
          %v691 = vld [vmem:[%s6 + $0x10] sm:$0xf]
          %v692 = vld [vmem:[%s6 + $0x14] sm:$0xf]
          %v693 = vld [vmem:[%s6 + $0x18] sm:$0xf]
          %v694 = vld [vmem:[%s6 + $0x1c] sm:$0xf]
          %v695 = vld [vmem:[%s7] sm:$0x1]
          %v697 = vlaneseq
          %v698 = vshrl.u32 %v697, 7
          %v699 = vsub.s32 0, %v698
          %v700 = vrot.slane %v695, %v699
          %v710 = vunpack.c.l.b16 %v687
          %v711 = vunpack.c.l.b16 %v688
          %v712 = vunpack.c.l.b16 %v689
          %v713 = vunpack.c.l.b16 %v690
          %v714 = vunpack.c.l.b16 %v691
          %v715 = vunpack.c.l.b16 %v692
          %v716 = vunpack.c.l.b16 %v693
          %v717 = vunpack.c.l.b16 %v694
          %v718 = vpack.c.b16 %v711, %v710
          %v719 = vpack.c.b16 %v713, %v712
          %v720 = vpack.c.b16 %v715, %v714
          %v721 = vpack.c.b16 %v717, %v716
          %v727 = vsel %vm642, %v686, 0
          %729 = vmatprep.subr.bf16.mxu0 0
          %730 = vmatpush1.bf16.msra.mxu0 %v718
          %731 = vmatprep.subr.bf16.mxu0 0
          %732 = vmatpush1.bf16.msra.mxu0 %v719
          %733 = vmatprep.subr.bf16.mxu0 0
          %734 = vmatpush1.bf16.msra.mxu0 %v720
          %735 = vmatprep.subr.bf16.mxu0 0
          %736 = vmatpush1.bf16.msra.mxu0 %v721
          %737 = vmatprep.subr.bf16.mxu0 0
          %738 = vmatpush1.bf16.msra.mxu0 0
          %739 = vmatprep.subr.bf16.mxu0 0
          %740 = vmatpush1.bf16.msra.mxu0 0
          %741 = vmatprep.subr.bf16.mxu0 0
          %742 = vmatpush1.bf16.msra.mxu0 0
          %743 = vmatprep.subr.bf16.mxu0 0
          %744 = vmatpush1.bf16.msra.mxu0 0
          %745 = vmatprep.subr.bf16.mxu0 0
          %746 = vmatpush1.bf16.msra.mxu0 0
          %747 = vmatprep.subr.bf16.mxu0 0
          %748 = vmatpush1.bf16.msra.mxu0 0
          %749 = vmatprep.subr.bf16.mxu0 0
          %750 = vmatpush1.bf16.msra.mxu0 0
          %751 = vmatprep.subr.bf16.mxu0 0
          %752 = vmatpush1.bf16.msra.mxu0 0
          %753 = vmatprep.subr.bf16.mxu0 0
          %754 = vmatpush1.bf16.msra.mxu0 0
          %755 = vmatprep.subr.bf16.mxu0 0
          %756 = vmatpush1.bf16.msra.mxu0 0
          %757 = vmatprep.subr.bf16.mxu0 0
          %758 = vmatpush1.bf16.msra.mxu0 0
          %759 = vmatprep.subr.bf16.mxu0 0
          %760 = vmatpush1.bf16.msra.mxu0 0
          %761 = vmatprep.mubr.bf16.mxu0 0
          %762 = vmatmul.mubr.bf16.gmra.mrb[0].mxu0 %v727
          %v763 = vpop.f32.mrb[0].mxu0
          %v764 = vadd.f32 %v700, %v763
          %v765 = vpop.f32.mrb[0].mxu0
          %v766 = vpop.f32.mrb[0].mxu0
          %v767 = vadd.f32 %v700, %v766
          %v768 = vpop.f32.mrb[0].mxu0
          %769 = vdwg.mxu0
          %v770 = vpack.c.bf16 %v767, %v764
          %771 = vst.msk [vmem:[#allocation2] sm:$0xff] %vm642, %v770
          %773 = vrot.lane.b32.xlu0 %v770, 64
          %v774 = vpop.permute.xlu0 %773
          %776 = vst.msk [vmem:[#allocation3] sm:$0xff] %vm642, %v774
        $region104: #{tpu_custom_call.1} parent=91 // pred_fallthru
          _
        %s777 = smul.u32 %s39, 16
        %s778 = scalar_lea.vmem %s628, %s777
        %v779 = vld [vmem:[%s778] sm:$0xff]
        %v780 = vld [vmem:[%s778 + $0x8] sm:$0xff]
        %vm781 = vcmask 523264
        %v782 = vsel %vm781, %v779, 0.0
        %783 = vadd.xlane.f32.xlu0 %v782
        %v784 = vpop.xlane.xlu0 %783
        %v785 = vsel %vm781, %v780, 0.0
        %786 = vadd.xlane.f32.xlu0 %v785
        %v787 = vpop.xlane.xlu0 %786
        %v788 = vrcp.pop 64.0
        %v789 = vmul.f32 %v784, %v788
        %v790 = vmul.f32 %v787, %v788
        %v791 = vsub.f32 %v779, %v789
        %v792 = vsub.f32 %v780, %v790
        %v793 = vmul.f32 %v791, %v791
        %v794 = vmul.f32 %v792, %v792
        %v795 = vsel %vm781, %v793, 0.0
        %796 = vadd.xlane.f32.xlu0 %v795
        %v797 = vpop.xlane.xlu0 %796
        %v798 = vsel %vm781, %v794, 0.0
        %799 = vadd.xlane.f32.xlu0 %v798
        %v800 = vpop.xlane.xlu0 %799
        %v801 = vmul.f32 %v797, %v788
        %v802 = vmul.f32 %v800, %v788
        %v803 = vadd.f32 %v801, 1e-05
        %v804 = vadd.f32 %v802, 1e-05
        %v805 = vrsqrt.pop %v803
        %v806 = vrsqrt.pop %v804
        %v807 = vmul.f32 %v791, %v805
        %v808 = vmul.f32 %v792, %v806
        %v810 = vlaneseq
        %v811 = vshrl.u32 %v810, 7
        %v812 = vsub.s32 0, %v811
        %v813 = vrot.slane %v634, %v812
        %v815 = vmul.f32 %v807, %v813
        %v816 = vmul.f32 %v808, %v813
        %v818 = vlaneseq
        %v819 = vshrl.u32 %v818, 7
        %v820 = vsub.s32 0, %v819
        %v821 = vrot.slane %v635, %v820
        %v823 = vadd.f32 %v815, %v821
        %v824 = vadd.f32 %v816, %v821
        %v825 = vpack.c.bf16 %v824, %v823
        %v826 = vld [vmem:[%s4] sm:$0xf]
        %v827 = vld [vmem:[%s4 + $0x4] sm:$0xf]
        %v828 = vld [vmem:[%s4 + $0x8] sm:$0xf]
        %v829 = vld [vmem:[%s4 + $0xc] sm:$0xf]
        %v830 = vld [vmem:[%s4 + $0x10] sm:$0xf]
        %v831 = vld [vmem:[%s4 + $0x14] sm:$0xf]
        %v832 = vld [vmem:[%s4 + $0x18] sm:$0xf]
        %v833 = vld [vmem:[%s4 + $0x1c] sm:$0xf]
        %v834 = vld [vmem:[%s5] sm:$0x1]
        %v836 = vlaneseq
        %v837 = vshrl.u32 %v836, 7
        %v838 = vsub.s32 0, %v837
        %v839 = vrot.slane %v834, %v838
        %v849 = vunpack.c.l.b16 %v826
        %v850 = vunpack.c.l.b16 %v827
        %v851 = vunpack.c.l.b16 %v828
        %v852 = vunpack.c.l.b16 %v829
        %v853 = vunpack.c.l.b16 %v830
        %v854 = vunpack.c.l.b16 %v831
        %v855 = vunpack.c.l.b16 %v832
        %v856 = vunpack.c.l.b16 %v833
        %v857 = vpack.c.b16 %v850, %v849
        %v858 = vpack.c.b16 %v852, %v851
        %v859 = vpack.c.b16 %v854, %v853
        %v860 = vpack.c.b16 %v856, %v855
        %v866 = vsel %vm781, %v825, 0
        %868 = vmatprep.subr.bf16.mxu0 0
        %869 = vmatpush1.bf16.msra.mxu0 %v857
        %870 = vmatprep.subr.bf16.mxu0 0
        %871 = vmatpush1.bf16.msra.mxu0 %v858
        %872 = vmatprep.subr.bf16.mxu0 0
        %873 = vmatpush1.bf16.msra.mxu0 %v859
        %874 = vmatprep.subr.bf16.mxu0 0
        %875 = vmatpush1.bf16.msra.mxu0 %v860
        %876 = vmatprep.subr.bf16.mxu0 0
        %877 = vmatpush1.bf16.msra.mxu0 0
        %878 = vmatprep.subr.bf16.mxu0 0
        %879 = vmatpush1.bf16.msra.mxu0 0
        %880 = vmatprep.subr.bf16.mxu0 0
        %881 = vmatpush1.bf16.msra.mxu0 0
        %882 = vmatprep.subr.bf16.mxu0 0
        %883 = vmatpush1.bf16.msra.mxu0 0
        %884 = vmatprep.subr.bf16.mxu0 0
        %885 = vmatpush1.bf16.msra.mxu0 0
        %886 = vmatprep.subr.bf16.mxu0 0
        %887 = vmatpush1.bf16.msra.mxu0 0
        %888 = vmatprep.subr.bf16.mxu0 0
        %889 = vmatpush1.bf16.msra.mxu0 0
        %890 = vmatprep.subr.bf16.mxu0 0
        %891 = vmatpush1.bf16.msra.mxu0 0
        %892 = vmatprep.subr.bf16.mxu0 0
        %893 = vmatpush1.bf16.msra.mxu0 0
        %894 = vmatprep.subr.bf16.mxu0 0
        %895 = vmatpush1.bf16.msra.mxu0 0
        %896 = vmatprep.subr.bf16.mxu0 0
        %897 = vmatpush1.bf16.msra.mxu0 0
        %898 = vmatprep.subr.bf16.mxu0 0
        %899 = vmatpush1.bf16.msra.mxu0 0
        %900 = vmatprep.mubr.bf16.mxu0 0
        %901 = vmatmul.mubr.bf16.gmra.mrb[0].mxu0 %v866
        %v902 = vpop.f32.mrb[0].mxu0
        %v903 = vadd.f32 %v839, %v902
        %v904 = vpop.f32.mrb[0].mxu0
        %v905 = vpop.f32.mrb[0].mxu0
        %v906 = vadd.f32 %v839, %v905
        %v907 = vpop.f32.mrb[0].mxu0
        %908 = vdwg.mxu0
        %v909 = vmul.f32 %v903, 0.25
        %v910 = vmul.f32 %v906, 0.25
        %v911 = vld [vmem:[%s631] sm:$0x1]
        %vm912 = vcmp.gt.f32.partialorder %v911, 0.5
        %v913 = vsel %vm912, -1e+30, 0.0
        %v914 = vpack.c.bf16 %v910, %v909
        %v915 = vld [vmem:[#allocation2] sm:$0xff]
        %v917 = vlaneseq
        %v918 = vshrl.u32 %v917, 7
        %v919 = vsub.s32 0, %v918
        %v920 = vrot.slane %v913, %v919
        %vm922 = vcmask 130048
        %v924 = vsel %vm922, %v914, 0
        %v927 = vsel %vm922, %v915, 0
        %929 = vmatprep.subr.bf16.mxu0 0
        %930 = vmatpush1.bf16.xpose.msra.mxu0 %v927
        %931 = vmatprep.subr.bf16.mxu0 0
        %932 = vmatpush1.bf16.xpose.msra.mxu0 0
        %933 = vmatprep.subr.bf16.mxu0 0
        %934 = vmatpush1.bf16.xpose.msra.mxu0 0
        %935 = vmatprep.subr.bf16.mxu0 0
        %936 = vmatpush1.bf16.xpose.msra.mxu0 0
        %937 = vmatprep.subr.bf16.mxu0 0
        %938 = vmatpush1.bf16.xpose.msra.mxu0 0
        %939 = vmatprep.subr.bf16.mxu0 0
        %940 = vmatpush1.bf16.xpose.msra.mxu0 0
        %941 = vmatprep.subr.bf16.mxu0 0
        %942 = vmatpush1.bf16.xpose.msra.mxu0 0
        %943 = vmatprep.subr.bf16.mxu0 0
        %944 = vmatpush1.bf16.xpose.msra.mxu0 0
        %945 = vmatprep.subr.bf16.mxu0 0
        %946 = vmatpush1.bf16.xpose.msra.mxu0 0
        %947 = vmatprep.subr.bf16.mxu0 0
        %948 = vmatpush1.bf16.xpose.msra.mxu0 0
        %949 = vmatprep.subr.bf16.mxu0 0
        %950 = vmatpush1.bf16.xpose.msra.mxu0 0
        %951 = vmatprep.subr.bf16.mxu0 0
        %952 = vmatpush1.bf16.xpose.msra.mxu0 0
        %953 = vmatprep.subr.bf16.mxu0 0
        %954 = vmatpush1.bf16.xpose.msra.mxu0 0
        %955 = vmatprep.subr.bf16.mxu0 0
        %956 = vmatpush1.bf16.xpose.msra.mxu0 0
        %957 = vmatprep.subr.bf16.mxu0 0
        %958 = vmatpush1.bf16.xpose.msra.mxu0 0
        %959 = vmatprep.subr.bf16.mxu0 0
        %960 = vmatpush1.bf16.xpose.msra.mxu0 0
        %961 = vmatprep.mubr.bf16.mxu0 0
        %962 = vmatmul.mubr.bf16.gmra.mrb[0].mxu0 %v924
        %v963 = vpop.f32.mrb[0].mxu0
        %v964 = vadd.f32 %v920, %v963
        %v965 = vpop.f32.mrb[0].mxu0
        %v966 = vpop.f32.mrb[0].mxu0
        %v967 = vadd.f32 %v920, %v966
        %v968 = vpop.f32.mrb[0].mxu0
        %969 = vdwg.mxu0
        %v970 = vsel %vm922, %v964, -inf
        %971 = vmax.xlane.f32.xlu0 %v970
        %v972 = vpop.xlane.xlu0 %971
        %v973 = vsel %vm922, %v967, -inf
        %974 = vmax.xlane.f32.xlu0 %v973
        %v975 = vpop.xlane.xlu0 %974
        %v976 = vsub.f32 %v964, %v972
        %v977 = vsub.f32 %v967, %v975
        %v978 = vmul.f32 %v976, 1.442695
        %v979 = vpow.pop %v978
        %v980 = vmul.f32 %v977, 1.442695
        %v981 = vpow.pop %v980
        %v982 = vsel %vm922, %v979, 0.0
        %983 = vadd.xlane.f32.xlu0 %v982
        %v984 = vpop.xlane.xlu0 %983
        %v985 = vsel %vm922, %v981, 0.0
        %986 = vadd.xlane.f32.xlu0 %v985
        %v987 = vpop.xlane.xlu0 %986
        %v988 = vrcp.pop %v984
        %v989 = vrcp.pop %v987
        %v990 = vmul.f32 %v979, %v988
        %v991 = vmul.f32 %v981, %v989
        %v992 = vpack.c.bf16 %v991, %v990
        %v993 = vld [vmem:[#allocation3] sm:$0xff]
        %v995 = vsel %vm922, %v992, 0
        %997 = vmatprep.subr.bf16.mxu0 0
        %998 = vmatpush1.bf16.msra.mxu0 %v993
        %999 = vmatprep.subr.bf16.mxu0 0
        %1000 = vmatpush1.bf16.msra.mxu0 0
        %1001 = vmatprep.subr.bf16.mxu0 0
        %1002 = vmatpush1.bf16.msra.mxu0 0
        %1003 = vmatprep.subr.bf16.mxu0 0
        %1004 = vmatpush1.bf16.msra.mxu0 0
        %1005 = vmatprep.subr.bf16.mxu0 0
        %1006 = vmatpush1.bf16.msra.mxu0 0
        %1007 = vmatprep.subr.bf16.mxu0 0
        %1008 = vmatpush1.bf16.msra.mxu0 0
        %1009 = vmatprep.subr.bf16.mxu0 0
        %1010 = vmatpush1.bf16.msra.mxu0 0
        %1011 = vmatprep.subr.bf16.mxu0 0
        %1012 = vmatpush1.bf16.msra.mxu0 0
        %1013 = vmatprep.subr.bf16.mxu0 0
        %1014 = vmatpush1.bf16.msra.mxu0 0
        %1015 = vmatprep.subr.bf16.mxu0 0
        %1016 = vmatpush1.bf16.msra.mxu0 0
        %1017 = vmatprep.subr.bf16.mxu0 0
        %1018 = vmatpush1.bf16.msra.mxu0 0
        %1019 = vmatprep.subr.bf16.mxu0 0
        %1020 = vmatpush1.bf16.msra.mxu0 0
        %1021 = vmatprep.subr.bf16.mxu0 0
        %1022 = vmatpush1.bf16.msra.mxu0 0
        %1023 = vmatprep.subr.bf16.mxu0 0
        %1024 = vmatpush1.bf16.msra.mxu0 0
        %1025 = vmatprep.subr.bf16.mxu0 0
        %1026 = vmatpush1.bf16.msra.mxu0 0
        %1027 = vmatprep.subr.bf16.mxu0 0
        %1028 = vmatpush1.bf16.msra.mxu0 0
        %1029 = vmatprep.mubr.bf16.mxu0 0
        %1030 = vmatmul.mubr.bf16.gmra.mrb[0].mxu0 %v995
        %v1031 = vpop.f32.mrb[0].mxu0
        %v1032 = vadd.f32 0.0, %v1031
        %v1033 = vpop.f32.mrb[0].mxu0
        %v1034 = vpop.f32.mrb[0].mxu0
        %v1035 = vadd.f32 0.0, %v1034
        %v1036 = vpop.f32.mrb[0].mxu0
        %1037 = vdwg.mxu0
        %v1038 = vpack.c.bf16 %v1035, %v1032
        %v1039 = vld [vmem:[#allocation4] sm:$0xf]
        %v1040 = vld [vmem:[#allocation4 + $0x4] sm:$0xf]
        %1042 = vrot.lane.b32.xlu0 %v914, 112
        %v1043 = vpop.permute.xlu0 %1042
        %1045 = vrot.lane.b32.xlu0 %v915, 112
        %v1046 = vpop.permute.xlu0 %1045
        %v1048 = vsel %vm922, %v1043, 0
        %v1051 = vsel %vm922, %v1046, 0
        %1053 = vmatprep.subr.bf16.mxu0 0
        %1054 = vmatpush1.bf16.xpose.msra.mxu0 %v1051
        %1055 = vmatprep.subr.bf16.mxu0 0
        %1056 = vmatpush1.bf16.xpose.msra.mxu0 0
        %1057 = vmatprep.subr.bf16.mxu0 0
        %1058 = vmatpush1.bf16.xpose.msra.mxu0 0
        %1059 = vmatprep.subr.bf16.mxu0 0
        %1060 = vmatpush1.bf16.xpose.msra.mxu0 0
        %1061 = vmatprep.subr.bf16.mxu0 0
        %1062 = vmatpush1.bf16.xpose.msra.mxu0 0
        %1063 = vmatprep.subr.bf16.mxu0 0
        %1064 = vmatpush1.bf16.xpose.msra.mxu0 0
        %1065 = vmatprep.subr.bf16.mxu0 0
        %1066 = vmatpush1.bf16.xpose.msra.mxu0 0
        %1067 = vmatprep.subr.bf16.mxu0 0
        %1068 = vmatpush1.bf16.xpose.msra.mxu0 0
        %1069 = vmatprep.subr.bf16.mxu0 0
        %1070 = vmatpush1.bf16.xpose.msra.mxu0 0
        %1071 = vmatprep.subr.bf16.mxu0 0
        %1072 = vmatpush1.bf16.xpose.msra.mxu0 0
        %1073 = vmatprep.subr.bf16.mxu0 0
        %1074 = vmatpush1.bf16.xpose.msra.mxu0 0
        %1075 = vmatprep.subr.bf16.mxu0 0
        %1076 = vmatpush1.bf16.xpose.msra.mxu0 0
        %1077 = vmatprep.subr.bf16.mxu0 0
        %1078 = vmatpush1.bf16.xpose.msra.mxu0 0
        %1079 = vmatprep.subr.bf16.mxu0 0
        %1080 = vmatpush1.bf16.xpose.msra.mxu0 0
        %1081 = vmatprep.subr.bf16.mxu0 0
        %1082 = vmatpush1.bf16.xpose.msra.mxu0 0
        %1083 = vmatprep.subr.bf16.mxu0 0
        %1084 = vmatpush1.bf16.xpose.msra.mxu0 0
        %1085 = vmatprep.mubr.bf16.mxu0 0
        %1086 = vmatmul.mubr.bf16.gmra.mrb[0].mxu0 %v1048
        %v1087 = vpop.f32.mrb[0].mxu0
        %v1088 = vadd.f32 %v920, %v1087
        %v1089 = vpop.f32.mrb[0].mxu0
        %v1090 = vpop.f32.mrb[0].mxu0
        %v1091 = vadd.f32 %v920, %v1090
        %v1092 = vpop.f32.mrb[0].mxu0
        %1093 = vdwg.mxu0
        %v1094 = vsel %vm922, %v1088, -inf
        %1095 = vmax.xlane.f32.xlu0 %v1094
        %v1096 = vpop.xlane.xlu0 %1095
        %v1097 = vsel %vm922, %v1091, -inf
        %1098 = vmax.xlane.f32.xlu0 %v1097
        %v1099 = vpop.xlane.xlu0 %1098
        %v1100 = vsub.f32 %v1088, %v1096
        %v1101 = vsub.f32 %v1091, %v1099
        %v1102 = vmul.f32 %v1100, 1.442695
        %v1103 = vpow.pop %v1102
        %v1104 = vmul.f32 %v1101, 1.442695
        %v1105 = vpow.pop %v1104
        %v1106 = vsel %vm922, %v1103, 0.0
        %1107 = vadd.xlane.f32.xlu0 %v1106
        %v1108 = vpop.xlane.xlu0 %1107
        %v1109 = vsel %vm922, %v1105, 0.0
        %1110 = vadd.xlane.f32.xlu0 %v1109
        %v1111 = vpop.xlane.xlu0 %1110
        %v1112 = vrcp.pop %v1108
        %v1113 = vrcp.pop %v1111
        %v1114 = vmul.f32 %v1103, %v1112
        %v1115 = vmul.f32 %v1105, %v1113
        %v1116 = vpack.c.bf16 %v1115, %v1114
        %1118 = vrot.lane.b32.xlu0 %v993, 112
        %v1119 = vpop.permute.xlu0 %1118
        %v1122 = vsel %vm922, %v1116, 0
        %1124 = vmatprep.subr.bf16.mxu0 0
        %1125 = vmatpush1.bf16.msra.mxu0 %v1119
        %1126 = vmatprep.subr.bf16.mxu0 0
        %1127 = vmatpush1.bf16.msra.mxu0 0
        %1128 = vmatprep.subr.bf16.mxu0 0
        %1129 = vmatpush1.bf16.msra.mxu0 0
        %1130 = vmatprep.subr.bf16.mxu0 0
        %1131 = vmatpush1.bf16.msra.mxu0 0
        %1132 = vmatprep.subr.bf16.mxu0 0
        %1133 = vmatpush1.bf16.msra.mxu0 0
        %1134 = vmatprep.subr.bf16.mxu0 0
        %1135 = vmatpush1.bf16.msra.mxu0 0
        %1136 = vmatprep.subr.bf16.mxu0 0
        %1137 = vmatpush1.bf16.msra.mxu0 0
        %1138 = vmatprep.subr.bf16.mxu0 0
        %1139 = vmatpush1.bf16.msra.mxu0 0
        %1140 = vmatprep.subr.bf16.mxu0 0
        %1141 = vmatpush1.bf16.msra.mxu0 0
        %1142 = vmatprep.subr.bf16.mxu0 0
        %1143 = vmatpush1.bf16.msra.mxu0 0
        %1144 = vmatprep.subr.bf16.mxu0 0
        %1145 = vmatpush1.bf16.msra.mxu0 0
        %1146 = vmatprep.subr.bf16.mxu0 0
        %1147 = vmatpush1.bf16.msra.mxu0 0
        %1148 = vmatprep.subr.bf16.mxu0 0
        %1149 = vmatpush1.bf16.msra.mxu0 0
        %1150 = vmatprep.subr.bf16.mxu0 0
        %1151 = vmatpush1.bf16.msra.mxu0 0
        %1152 = vmatprep.subr.bf16.mxu0 0
        %1153 = vmatpush1.bf16.msra.mxu0 0
        %1154 = vmatprep.subr.bf16.mxu0 0
        %1155 = vmatpush1.bf16.msra.mxu0 0
        %1156 = vmatprep.mubr.bf16.mxu0 0
        %1157 = vmatmul.mubr.bf16.gmra.mrb[0].mxu0 %v1122
        %v1158 = vpop.f32.mrb[0].mxu0
        %v1159 = vadd.f32 0.0, %v1158
        %v1160 = vpop.f32.mrb[0].mxu0
        %v1161 = vpop.f32.mrb[0].mxu0
        %v1162 = vadd.f32 0.0, %v1161
        %v1163 = vpop.f32.mrb[0].mxu0
        %1164 = vdwg.mxu0
        %v1165 = vpack.c.bf16 %v1162, %v1159
        %v1166 = vld [vmem:[#allocation4 + $0x8] sm:$0xf]
        %v1167 = vld [vmem:[#allocation4 + $0xc] sm:$0xf]
        %v1170 = vunpack.c.l.b16 %v1166
        %v1171 = vunpack.c.l.b16 %v1167
        %v1172 = vpack.c.b16 %v1171, %v1170
        %v1175 = vsel %vm922, %v1165, 0
        %1177 = vmatprep.subr.bf16.mxu0 0
        %1178 = vmatpush1.bf16.msra.mxu0 %v1172
        %1179 = vmatprep.subr.bf16.mxu0 0
        %1180 = vmatpush1.bf16.msra.mxu0 0
        %1181 = vmatprep.subr.bf16.mxu0 0
        %1182 = vmatpush1.bf16.msra.mxu0 0
        %1183 = vmatprep.subr.bf16.mxu0 0
        %1184 = vmatpush1.bf16.msra.mxu0 0
        %1185 = vmatprep.subr.bf16.mxu0 0
        %1186 = vmatpush1.bf16.msra.mxu0 0
        %1187 = vmatprep.subr.bf16.mxu0 0
        %1188 = vmatpush1.bf16.msra.mxu0 0
        %1189 = vmatprep.subr.bf16.mxu0 0
        %1190 = vmatpush1.bf16.msra.mxu0 0
        %1191 = vmatprep.subr.bf16.mxu0 0
        %1192 = vmatpush1.bf16.msra.mxu0 0
        %1193 = vmatprep.subr.bf16.mxu0 0
        %1194 = vmatpush1.bf16.msra.mxu0 0
        %1195 = vmatprep.subr.bf16.mxu0 0
        %1196 = vmatpush1.bf16.msra.mxu0 0
        %1197 = vmatprep.subr.bf16.mxu0 0
        %1198 = vmatpush1.bf16.msra.mxu0 0
        %1199 = vmatprep.subr.bf16.mxu0 0
        %1200 = vmatpush1.bf16.msra.mxu0 0
        %1201 = vmatprep.subr.bf16.mxu0 0
        %1202 = vmatpush1.bf16.msra.mxu0 0
        %1203 = vmatprep.subr.bf16.mxu0 0
        %1204 = vmatpush1.bf16.msra.mxu0 0
        %1205 = vmatprep.subr.bf16.mxu0 0
        %1206 = vmatpush1.bf16.msra.mxu0 0
        %1207 = vmatprep.subr.bf16.mxu0 0
        %1208 = vmatpush1.bf16.msra.mxu0 0
        %1209 = vmatprep.mubr.bf16.mxu0 0
        %1210 = vmatmul.mubr.bf16.gmra.mrb[0].mxu0 %v1175
        %v1211 = vpop.f32.mrb[0].mxu0
        %v1212 = vadd.f32 0.0, %v1211
        %v1213 = vpop.f32.mrb[0].mxu0
        %v1214 = vpop.f32.mrb[0].mxu0
        %v1215 = vadd.f32 0.0, %v1214
        %v1216 = vpop.f32.mrb[0].mxu0
        %1217 = vdwg.mxu0
        %v1220 = vunpack.c.l.b16 %v1039
        %v1221 = vunpack.c.l.b16 %v1040
        %v1222 = vpack.c.b16 %v1221, %v1220
        %v1225 = vsel %vm922, %v1038, 0
        %1227 = vmatprep.subr.bf16.mxu0 0
        %1228 = vmatpush1.bf16.msra.mxu0 %v1222
        %1229 = vmatprep.subr.bf16.mxu0 0
        %1230 = vmatpush1.bf16.msra.mxu0 0
        %1231 = vmatprep.subr.bf16.mxu0 0
        %1232 = vmatpush1.bf16.msra.mxu0 0
        %1233 = vmatprep.subr.bf16.mxu0 0
        %1234 = vmatpush1.bf16.msra.mxu0 0
        %1235 = vmatprep.subr.bf16.mxu0 0
        %1236 = vmatpush1.bf16.msra.mxu0 0
        %1237 = vmatprep.subr.bf16.mxu0 0
        %1238 = vmatpush1.bf16.msra.mxu0 0
        %1239 = vmatprep.subr.bf16.mxu0 0
        %1240 = vmatpush1.bf16.msra.mxu0 0
        %1241 = vmatprep.subr.bf16.mxu0 0
        %1242 = vmatpush1.bf16.msra.mxu0 0
        %1243 = vmatprep.subr.bf16.mxu0 0
        %1244 = vmatpush1.bf16.msra.mxu0 0
        %1245 = vmatprep.subr.bf16.mxu0 0
        %1246 = vmatpush1.bf16.msra.mxu0 0
        %1247 = vmatprep.subr.bf16.mxu0 0
        %1248 = vmatpush1.bf16.msra.mxu0 0
        %1249 = vmatprep.subr.bf16.mxu0 0
        %1250 = vmatpush1.bf16.msra.mxu0 0
        %1251 = vmatprep.subr.bf16.mxu0 0
        %1252 = vmatpush1.bf16.msra.mxu0 0
        %1253 = vmatprep.subr.bf16.mxu0 0
        %1254 = vmatpush1.bf16.msra.mxu0 0
        %1255 = vmatprep.subr.bf16.mxu0 0
        %1256 = vmatpush1.bf16.msra.mxu0 0
        %1257 = vmatprep.subr.bf16.mxu0 0
        %1258 = vmatpush1.bf16.msra.mxu0 0
        %1259 = vmatprep.mubr.bf16.mxu0 0
        %1260 = vmatmul.mubr.bf16.gmra.mrb[0].mxu0 %v1225
        %v1261 = vpop.f32.mrb[0].mxu0
        %v1262 = vadd.f32 %v1212, %v1261
        %v1263 = vpop.f32.mrb[0].mxu0
        %v1264 = vpop.f32.mrb[0].mxu0
        %v1265 = vadd.f32 %v1215, %v1264
        %v1266 = vpop.f32.mrb[0].mxu0
        %1267 = vdwg.mxu0
        %1268 = vrot.lane.b32.xlu0 %v914, 96
        %v1269 = vpop.permute.xlu0 %1268
        %1270 = vrot.lane.b32.xlu0 %v915, 96
        %v1271 = vpop.permute.xlu0 %1270
        %v1273 = vsel %vm922, %v1269, 0
        %v1276 = vsel %vm922, %v1271, 0
        %1278 = vmatprep.subr.bf16.mxu0 0
        %1279 = vmatpush1.bf16.xpose.msra.mxu0 %v1276
        %1280 = vmatprep.subr.bf16.mxu0 0
        %1281 = vmatpush1.bf16.xpose.msra.mxu0 0
        %1282 = vmatprep.subr.bf16.mxu0 0
        %1283 = vmatpush1.bf16.xpose.msra.mxu0 0
        %1284 = vmatprep.subr.bf16.mxu0 0
        %1285 = vmatpush1.bf16.xpose.msra.mxu0 0
        %1286 = vmatprep.subr.bf16.mxu0 0
        %1287 = vmatpush1.bf16.xpose.msra.mxu0 0
        %1288 = vmatprep.subr.bf16.mxu0 0
        %1289 = vmatpush1.bf16.xpose.msra.mxu0 0
        %1290 = vmatprep.subr.bf16.mxu0 0
        %1291 = vmatpush1.bf16.xpose.msra.mxu0 0
        %1292 = vmatprep.subr.bf16.mxu0 0
        %1293 = vmatpush1.bf16.xpose.msra.mxu0 0
        %1294 = vmatprep.subr.bf16.mxu0 0
        %1295 = vmatpush1.bf16.xpose.msra.mxu0 0
        %1296 = vmatprep.subr.bf16.mxu0 0
        %1297 = vmatpush1.bf16.xpose.msra.mxu0 0
        %1298 = vmatprep.subr.bf16.mxu0 0
        %1299 = vmatpush1.bf16.xpose.msra.mxu0 0
        %1300 = vmatprep.subr.bf16.mxu0 0
        %1301 = vmatpush1.bf16.xpose.msra.mxu0 0
        %1302 = vmatprep.subr.bf16.mxu0 0
        %1303 = vmatpush1.bf16.xpose.msra.mxu0 0
        %1304 = vmatprep.subr.bf16.mxu0 0
        %1305 = vmatpush1.bf16.xpose.msra.mxu0 0
        %1306 = vmatprep.subr.bf16.mxu0 0
        %1307 = vmatpush1.bf16.xpose.msra.mxu0 0
        %1308 = vmatprep.subr.bf16.mxu0 0
        %1309 = vmatpush1.bf16.xpose.msra.mxu0 0
        %1310 = vmatprep.mubr.bf16.mxu0 0
        %1311 = vmatmul.mubr.bf16.gmra.mrb[0].mxu0 %v1273
        %v1312 = vpop.f32.mrb[0].mxu0
        %v1313 = vadd.f32 %v920, %v1312
        %v1314 = vpop.f32.mrb[0].mxu0
        %v1315 = vpop.f32.mrb[0].mxu0
        %v1316 = vadd.f32 %v920, %v1315
        %v1317 = vpop.f32.mrb[0].mxu0
        %1318 = vdwg.mxu0
        %v1319 = vsel %vm922, %v1313, -inf
        %1320 = vmax.xlane.f32.xlu0 %v1319
        %v1321 = vpop.xlane.xlu0 %1320
        %v1322 = vsel %vm922, %v1316, -inf
        %1323 = vmax.xlane.f32.xlu0 %v1322
        %v1324 = vpop.xlane.xlu0 %1323
        %v1325 = vsub.f32 %v1313, %v1321
        %v1326 = vsub.f32 %v1316, %v1324
        %v1327 = vmul.f32 %v1325, 1.442695
        %v1328 = vpow.pop %v1327
        %v1329 = vmul.f32 %v1326, 1.442695
        %v1330 = vpow.pop %v1329
        %v1331 = vsel %vm922, %v1328, 0.0
        %1332 = vadd.xlane.f32.xlu0 %v1331
        %v1333 = vpop.xlane.xlu0 %1332
        %v1334 = vsel %vm922, %v1330, 0.0
        %1335 = vadd.xlane.f32.xlu0 %v1334
        %v1336 = vpop.xlane.xlu0 %1335
        %v1337 = vrcp.pop %v1333
        %v1338 = vrcp.pop %v1336
        %v1339 = vmul.f32 %v1328, %v1337
        %v1340 = vmul.f32 %v1330, %v1338
        %v1341 = vpack.c.bf16 %v1340, %v1339
        %1342 = vrot.lane.b32.xlu0 %v993, 96
        %v1343 = vpop.permute.xlu0 %1342
        %v1346 = vsel %vm922, %v1341, 0
        %1348 = vmatprep.subr.bf16.mxu0 0
        %1349 = vmatpush1.bf16.msra.mxu0 %v1343
        %1350 = vmatprep.subr.bf16.mxu0 0
        %1351 = vmatpush1.bf16.msra.mxu0 0
        %1352 = vmatprep.subr.bf16.mxu0 0
        %1353 = vmatpush1.bf16.msra.mxu0 0
        %1354 = vmatprep.subr.bf16.mxu0 0
        %1355 = vmatpush1.bf16.msra.mxu0 0
        %1356 = vmatprep.subr.bf16.mxu0 0
        %1357 = vmatpush1.bf16.msra.mxu0 0
        %1358 = vmatprep.subr.bf16.mxu0 0
        %1359 = vmatpush1.bf16.msra.mxu0 0
        %1360 = vmatprep.subr.bf16.mxu0 0
        %1361 = vmatpush1.bf16.msra.mxu0 0
        %1362 = vmatprep.subr.bf16.mxu0 0
        %1363 = vmatpush1.bf16.msra.mxu0 0
        %1364 = vmatprep.subr.bf16.mxu0 0
        %1365 = vmatpush1.bf16.msra.mxu0 0
        %1366 = vmatprep.subr.bf16.mxu0 0
        %1367 = vmatpush1.bf16.msra.mxu0 0
        %1368 = vmatprep.subr.bf16.mxu0 0
        %1369 = vmatpush1.bf16.msra.mxu0 0
        %1370 = vmatprep.subr.bf16.mxu0 0
        %1371 = vmatpush1.bf16.msra.mxu0 0
        %1372 = vmatprep.subr.bf16.mxu0 0
        %1373 = vmatpush1.bf16.msra.mxu0 0
        %1374 = vmatprep.subr.bf16.mxu0 0
        %1375 = vmatpush1.bf16.msra.mxu0 0
        %1376 = vmatprep.subr.bf16.mxu0 0
        %1377 = vmatpush1.bf16.msra.mxu0 0
        %1378 = vmatprep.subr.bf16.mxu0 0
        %1379 = vmatpush1.bf16.msra.mxu0 0
        %1380 = vmatprep.mubr.bf16.mxu0 0
        %1381 = vmatmul.mubr.bf16.gmra.mrb[0].mxu0 %v1346
        %v1382 = vpop.f32.mrb[0].mxu0
        %v1383 = vadd.f32 0.0, %v1382
        %v1384 = vpop.f32.mrb[0].mxu0
        %v1385 = vpop.f32.mrb[0].mxu0
        %v1386 = vadd.f32 0.0, %v1385
        %v1387 = vpop.f32.mrb[0].mxu0
        %1388 = vdwg.mxu0
        %v1389 = vpack.c.bf16 %v1386, %v1383
        %v1390 = vld [vmem:[#allocation4 + $0x10] sm:$0xf]
        %v1391 = vld [vmem:[#allocation4 + $0x14] sm:$0xf]
        %v1394 = vunpack.c.l.b16 %v1390
        %v1395 = vunpack.c.l.b16 %v1391
        %v1396 = vpack.c.b16 %v1395, %v1394
        %v1399 = vsel %vm922, %v1389, 0
        %1401 = vmatprep.subr.bf16.mxu0 0
        %1402 = vmatpush1.bf16.msra.mxu0 %v1396
        %1403 = vmatprep.subr.bf16.mxu0 0
        %1404 = vmatpush1.bf16.msra.mxu0 0
        %1405 = vmatprep.subr.bf16.mxu0 0
        %1406 = vmatpush1.bf16.msra.mxu0 0
        %1407 = vmatprep.subr.bf16.mxu0 0
        %1408 = vmatpush1.bf16.msra.mxu0 0
        %1409 = vmatprep.subr.bf16.mxu0 0
        %1410 = vmatpush1.bf16.msra.mxu0 0
        %1411 = vmatprep.subr.bf16.mxu0 0
        %1412 = vmatpush1.bf16.msra.mxu0 0
        %1413 = vmatprep.subr.bf16.mxu0 0
        %1414 = vmatpush1.bf16.msra.mxu0 0
        %1415 = vmatprep.subr.bf16.mxu0 0
        %1416 = vmatpush1.bf16.msra.mxu0 0
        %1417 = vmatprep.subr.bf16.mxu0 0
        %1418 = vmatpush1.bf16.msra.mxu0 0
        %1419 = vmatprep.subr.bf16.mxu0 0
        %1420 = vmatpush1.bf16.msra.mxu0 0
        %1421 = vmatprep.subr.bf16.mxu0 0
        %1422 = vmatpush1.bf16.msra.mxu0 0
        %1423 = vmatprep.subr.bf16.mxu0 0
        %1424 = vmatpush1.bf16.msra.mxu0 0
        %1425 = vmatprep.subr.bf16.mxu0 0
        %1426 = vmatpush1.bf16.msra.mxu0 0
        %1427 = vmatprep.subr.bf16.mxu0 0
        %1428 = vmatpush1.bf16.msra.mxu0 0
        %1429 = vmatprep.subr.bf16.mxu0 0
        %1430 = vmatpush1.bf16.msra.mxu0 0
        %1431 = vmatprep.subr.bf16.mxu0 0
        %1432 = vmatpush1.bf16.msra.mxu0 0
        %1433 = vmatprep.mubr.bf16.mxu0 0
        %1434 = vmatmul.mubr.bf16.gmra.mrb[0].mxu0 %v1399
        %v1435 = vpop.f32.mrb[0].mxu0
        %v1436 = vadd.f32 0.0, %v1435
        %v1437 = vpop.f32.mrb[0].mxu0
        %v1438 = vpop.f32.mrb[0].mxu0
        %v1439 = vadd.f32 0.0, %v1438
        %v1440 = vpop.f32.mrb[0].mxu0
        %1441 = vdwg.mxu0
        %v1442 = vadd.f32 %v1262, %v1436
        %v1443 = vadd.f32 %v1265, %v1439
        %1444 = vrot.lane.b32.xlu0 %v914, 80
        %v1445 = vpop.permute.xlu0 %1444
        %1446 = vrot.lane.b32.xlu0 %v915, 80
        %v1447 = vpop.permute.xlu0 %1446
        %v1449 = vsel %vm922, %v1445, 0
        %v1452 = vsel %vm922, %v1447, 0
        %1454 = vmatprep.subr.bf16.mxu0 0
        %1455 = vmatpush1.bf16.xpose.msra.mxu0 %v1452
        %1456 = vmatprep.subr.bf16.mxu0 0
        %1457 = vmatpush1.bf16.xpose.msra.mxu0 0
        %1458 = vmatprep.subr.bf16.mxu0 0
        %1459 = vmatpush1.bf16.xpose.msra.mxu0 0
        %1460 = vmatprep.subr.bf16.mxu0 0
        %1461 = vmatpush1.bf16.xpose.msra.mxu0 0
        %1462 = vmatprep.subr.bf16.mxu0 0
        %1463 = vmatpush1.bf16.xpose.msra.mxu0 0
        %1464 = vmatprep.subr.bf16.mxu0 0
        %1465 = vmatpush1.bf16.xpose.msra.mxu0 0
        %1466 = vmatprep.subr.bf16.mxu0 0
        %1467 = vmatpush1.bf16.xpose.msra.mxu0 0
        %1468 = vmatprep.subr.bf16.mxu0 0
        %1469 = vmatpush1.bf16.xpose.msra.mxu0 0
        %1470 = vmatprep.subr.bf16.mxu0 0
        %1471 = vmatpush1.bf16.xpose.msra.mxu0 0
        %1472 = vmatprep.subr.bf16.mxu0 0
        %1473 = vmatpush1.bf16.xpose.msra.mxu0 0
        %1474 = vmatprep.subr.bf16.mxu0 0
        %1475 = vmatpush1.bf16.xpose.msra.mxu0 0
        %1476 = vmatprep.subr.bf16.mxu0 0
        %1477 = vmatpush1.bf16.xpose.msra.mxu0 0
        %1478 = vmatprep.subr.bf16.mxu0 0
        %1479 = vmatpush1.bf16.xpose.msra.mxu0 0
        %1480 = vmatprep.subr.bf16.mxu0 0
        %1481 = vmatpush1.bf16.xpose.msra.mxu0 0
        %1482 = vmatprep.subr.bf16.mxu0 0
        %1483 = vmatpush1.bf16.xpose.msra.mxu0 0
        %1484 = vmatprep.subr.bf16.mxu0 0
        %1485 = vmatpush1.bf16.xpose.msra.mxu0 0
        %1486 = vmatprep.mubr.bf16.mxu0 0
        %1487 = vmatmul.mubr.bf16.gmra.mrb[0].mxu0 %v1449
        %v1488 = vpop.f32.mrb[0].mxu0
        %v1489 = vadd.f32 %v920, %v1488
        %v1490 = vpop.f32.mrb[0].mxu0
        %v1491 = vpop.f32.mrb[0].mxu0
        %v1492 = vadd.f32 %v920, %v1491
        %v1493 = vpop.f32.mrb[0].mxu0
        %1494 = vdwg.mxu0
        %v1495 = vsel %vm922, %v1489, -inf
        %1496 = vmax.xlane.f32.xlu0 %v1495
        %v1497 = vpop.xlane.xlu0 %1496
        %v1498 = vsel %vm922, %v1492, -inf
        %1499 = vmax.xlane.f32.xlu0 %v1498
        %v1500 = vpop.xlane.xlu0 %1499
        %v1501 = vsub.f32 %v1489, %v1497
        %v1502 = vsub.f32 %v1492, %v1500
        %v1503 = vmul.f32 %v1501, 1.442695
        %v1504 = vpow.pop %v1503
        %v1505 = vmul.f32 %v1502, 1.442695
        %v1506 = vpow.pop %v1505
        %v1507 = vsel %vm922, %v1504, 0.0
        %1508 = vadd.xlane.f32.xlu0 %v1507
        %v1509 = vpop.xlane.xlu0 %1508
        %v1510 = vsel %vm922, %v1506, 0.0
        %1511 = vadd.xlane.f32.xlu0 %v1510
        %v1512 = vpop.xlane.xlu0 %1511
        %v1513 = vrcp.pop %v1509
        %v1514 = vrcp.pop %v1512
        %v1515 = vmul.f32 %v1504, %v1513
        %v1516 = vmul.f32 %v1506, %v1514
        %v1517 = vpack.c.bf16 %v1516, %v1515
        %1518 = vrot.lane.b32.xlu0 %v993, 80
        %v1519 = vpop.permute.xlu0 %1518
        %v1522 = vsel %vm922, %v1517, 0
        %1524 = vmatprep.subr.bf16.mxu0 0
        %1525 = vmatpush1.bf16.msra.mxu0 %v1519
        %1526 = vmatprep.subr.bf16.mxu0 0
        %1527 = vmatpush1.bf16.msra.mxu0 0
        %1528 = vmatprep.subr.bf16.mxu0 0
        %1529 = vmatpush1.bf16.msra.mxu0 0
        %1530 = vmatprep.subr.bf16.mxu0 0
        %1531 = vmatpush1.bf16.msra.mxu0 0
        %1532 = vmatprep.subr.bf16.mxu0 0
        %1533 = vmatpush1.bf16.msra.mxu0 0
        %1534 = vmatprep.subr.bf16.mxu0 0
        %1535 = vmatpush1.bf16.msra.mxu0 0
        %1536 = vmatprep.subr.bf16.mxu0 0
        %1537 = vmatpush1.bf16.msra.mxu0 0
        %1538 = vmatprep.subr.bf16.mxu0 0
        %1539 = vmatpush1.bf16.msra.mxu0 0
        %1540 = vmatprep.subr.bf16.mxu0 0
        %1541 = vmatpush1.bf16.msra.mxu0 0
        %1542 = vmatprep.subr.bf16.mxu0 0
        %1543 = vmatpush1.bf16.msra.mxu0 0
        %1544 = vmatprep.subr.bf16.mxu0 0
        %1545 = vmatpush1.bf16.msra.mxu0 0
        %1546 = vmatprep.subr.bf16.mxu0 0
        %1547 = vmatpush1.bf16.msra.mxu0 0
        %1548 = vmatprep.subr.bf16.mxu0 0
        %1549 = vmatpush1.bf16.msra.mxu0 0
        %1550 = vmatprep.subr.bf16.mxu0 0
        %1551 = vmatpush1.bf16.msra.mxu0 0
        %1552 = vmatprep.subr.bf16.mxu0 0
        %1553 = vmatpush1.bf16.msra.mxu0 0
        %1554 = vmatprep.subr.bf16.mxu0 0
        %1555 = vmatpush1.bf16.msra.mxu0 0
        %1556 = vmatprep.mubr.bf16.mxu0 0
        %1557 = vmatmul.mubr.bf16.gmra.mrb[0].mxu0 %v1522
        %v1558 = vpop.f32.mrb[0].mxu0
        %v1559 = vadd.f32 0.0, %v1558
        %v1560 = vpop.f32.mrb[0].mxu0
        %v1561 = vpop.f32.mrb[0].mxu0
        %v1562 = vadd.f32 0.0, %v1561
        %v1563 = vpop.f32.mrb[0].mxu0
        %1564 = vdwg.mxu0
        %v1565 = vpack.c.bf16 %v1562, %v1559
        %v1566 = vld [vmem:[#allocation4 + $0x18] sm:$0xf]
        %v1567 = vld [vmem:[#allocation4 + $0x1c] sm:$0xf]
        %v1570 = vunpack.c.l.b16 %v1566
        %v1571 = vunpack.c.l.b16 %v1567
        %v1572 = vpack.c.b16 %v1571, %v1570
        %v1575 = vsel %vm922, %v1565, 0
        %1577 = vmatprep.subr.bf16.mxu0 0
        %1578 = vmatpush1.bf16.msra.mxu0 %v1572
        %1579 = vmatprep.subr.bf16.mxu0 0
        %1580 = vmatpush1.bf16.msra.mxu0 0
        %1581 = vmatprep.subr.bf16.mxu0 0
        %1582 = vmatpush1.bf16.msra.mxu0 0
        %1583 = vmatprep.subr.bf16.mxu0 0
        %1584 = vmatpush1.bf16.msra.mxu0 0
        %1585 = vmatprep.subr.bf16.mxu0 0
        %1586 = vmatpush1.bf16.msra.mxu0 0
        %1587 = vmatprep.subr.bf16.mxu0 0
        %1588 = vmatpush1.bf16.msra.mxu0 0
        %1589 = vmatprep.subr.bf16.mxu0 0
        %1590 = vmatpush1.bf16.msra.mxu0 0
        %1591 = vmatprep.subr.bf16.mxu0 0
        %1592 = vmatpush1.bf16.msra.mxu0 0
        %1593 = vmatprep.subr.bf16.mxu0 0
        %1594 = vmatpush1.bf16.msra.mxu0 0
        %1595 = vmatprep.subr.bf16.mxu0 0
        %1596 = vmatpush1.bf16.msra.mxu0 0
        %1597 = vmatprep.subr.bf16.mxu0 0
        %1598 = vmatpush1.bf16.msra.mxu0 0
        %1599 = vmatprep.subr.bf16.mxu0 0
        %1600 = vmatpush1.bf16.msra.mxu0 0
        %1601 = vmatprep.subr.bf16.mxu0 0
        %1602 = vmatpush1.bf16.msra.mxu0 0
        %1603 = vmatprep.subr.bf16.mxu0 0
        %1604 = vmatpush1.bf16.msra.mxu0 0
        %1605 = vmatprep.subr.bf16.mxu0 0
        %1606 = vmatpush1.bf16.msra.mxu0 0
        %1607 = vmatprep.subr.bf16.mxu0 0
        %1608 = vmatpush1.bf16.msra.mxu0 0
        %1609 = vmatprep.mubr.bf16.mxu0 0
        %1610 = vmatmul.mubr.bf16.gmra.mrb[0].mxu0 %v1575
        %v1611 = vpop.f32.mrb[0].mxu0
        %v1612 = vadd.f32 0.0, %v1611
        %v1613 = vpop.f32.mrb[0].mxu0
        %v1614 = vpop.f32.mrb[0].mxu0
        %v1615 = vadd.f32 0.0, %v1614
        %v1616 = vpop.f32.mrb[0].mxu0
        %1617 = vdwg.mxu0
        %v1618 = vadd.f32 %v1442, %v1612
        %v1619 = vadd.f32 %v1443, %v1615
        %v1620 = vld [vmem:[%s9] sm:$0x1]
        %v1622 = vlaneseq
        %v1623 = vshrl.u32 %v1622, 7
        %v1624 = vsub.s32 0, %v1623
        %v1625 = vrot.slane %v1620, %v1624
        %v1627 = vadd.f32 %v1618, %v1625
        %v1628 = vadd.f32 %v1619, %v1625
        %v1629 = vadd.f32 %v823, %v1627
        %v1630 = vadd.f32 %v824, %v1628
        %v1631 = vld [vmem:[%s10] sm:$0x1]
        %v1632 = vld [vmem:[%s11] sm:$0x1]
        %v1633 = vsel %vm781, %v1629, 0.0
        %1634 = vadd.xlane.f32.xlu0 %v1633
        %v1635 = vpop.xlane.xlu0 %1634
        %v1636 = vsel %vm781, %v1630, 0.0
        %1637 = vadd.xlane.f32.xlu0 %v1636
        %v1638 = vpop.xlane.xlu0 %1637
        %v1639 = vmul.f32 %v1635, %v788
        %v1640 = vmul.f32 %v1638, %v788
        %v1641 = vsub.f32 %v1629, %v1639
        %v1642 = vsub.f32 %v1630, %v1640
        %v1643 = vmul.f32 %v1641, %v1641
        %v1644 = vmul.f32 %v1642, %v1642
        %v1645 = vsel %vm781, %v1643, 0.0
        %1646 = vadd.xlane.f32.xlu0 %v1645
        %v1647 = vpop.xlane.xlu0 %1646
        %v1648 = vsel %vm781, %v1644, 0.0
        %1649 = vadd.xlane.f32.xlu0 %v1648
        %v1650 = vpop.xlane.xlu0 %1649
        %v1651 = vmul.f32 %v1647, %v788
        %v1652 = vmul.f32 %v1650, %v788
        %v1653 = vadd.f32 %v1651, 1e-05
        %v1654 = vadd.f32 %v1652, 1e-05
        %v1655 = vrsqrt.pop %v1653
        %v1656 = vrsqrt.pop %v1654
        %v1657 = vmul.f32 %v1641, %v1655
        %v1658 = vmul.f32 %v1642, %v1656
        %v1660 = vlaneseq
        %v1661 = vshrl.u32 %v1660, 7
        %v1662 = vsub.s32 0, %v1661
        %v1663 = vrot.slane %v1631, %v1662
        %v1665 = vmul.f32 %v1657, %v1663
        %v1666 = vmul.f32 %v1658, %v1663
        %v1668 = vlaneseq
        %v1669 = vshrl.u32 %v1668, 7
        %v1670 = vsub.s32 0, %v1669
        %v1671 = vrot.slane %v1632, %v1670
        %v1673 = vadd.f32 %v1665, %v1671
        %v1674 = vadd.f32 %v1666, %v1671
        %v1675 = vpack.c.bf16 %v1674, %v1673
        %v1676 = vld [vmem:[#allocation7] sm:$0xf]
        %v1677 = vld [vmem:[#allocation7 + $0x4] sm:$0xf]
        %v1678 = vld [vmem:[#allocation7 + $0x8] sm:$0xf]
        %v1679 = vld [vmem:[#allocation7 + $0xc] sm:$0xf]
        %v1680 = vld [vmem:[#allocation7 + $0x10] sm:$0xf]
        %v1681 = vld [vmem:[#allocation7 + $0x14] sm:$0xf]
        %v1682 = vld [vmem:[#allocation7 + $0x18] sm:$0xf]
        %v1683 = vld [vmem:[#allocation7 + $0x1c] sm:$0xf]
        %v1684 = vld [vmem:[%s13] sm:$0x1]
        %v1686 = vlaneseq
        %v1687 = vshrl.u32 %v1686, 7
        %v1688 = vsub.s32 0, %v1687
        %v1689 = vrot.slane %v1684, %v1688
        %v1699 = vunpack.c.l.b16 %v1676
        %v1700 = vunpack.c.l.b16 %v1677
        %v1701 = vunpack.c.l.b16 %v1678
        %v1702 = vunpack.c.l.b16 %v1679
        %v1703 = vunpack.c.l.b16 %v1680
        %v1704 = vunpack.c.l.b16 %v1681
        %v1705 = vunpack.c.l.b16 %v1682
        %v1706 = vunpack.c.l.b16 %v1683
        %v1707 = vpack.c.b16 %v1700, %v1699
        %v1708 = vpack.c.b16 %v1702, %v1701
        %v1709 = vpack.c.b16 %v1704, %v1703
        %v1710 = vpack.c.b16 %v1706, %v1705
        %v1716 = vsel %vm781, %v1675, 0
        %1718 = vmatprep.subr.bf16.mxu0 0
        %1719 = vmatpush1.bf16.msra.mxu0 %v1707
        %1720 = vmatprep.subr.bf16.mxu0 0
        %1721 = vmatpush1.bf16.msra.mxu0 %v1708
        %1722 = vmatprep.subr.bf16.mxu0 0
        %1723 = vmatpush1.bf16.msra.mxu0 %v1709
        %1724 = vmatprep.subr.bf16.mxu0 0
        %1725 = vmatpush1.bf16.msra.mxu0 %v1710
        %1726 = vmatprep.subr.bf16.mxu0 0
        %1727 = vmatpush1.bf16.msra.mxu0 0
        %1728 = vmatprep.subr.bf16.mxu0 0
        %1729 = vmatpush1.bf16.msra.mxu0 0
        %1730 = vmatprep.subr.bf16.mxu0 0
        %1731 = vmatpush1.bf16.msra.mxu0 0
        %1732 = vmatprep.subr.bf16.mxu0 0
        %1733 = vmatpush1.bf16.msra.mxu0 0
        %1734 = vmatprep.subr.bf16.mxu0 0
        %1735 = vmatpush1.bf16.msra.mxu0 0
        %1736 = vmatprep.subr.bf16.mxu0 0
        %1737 = vmatpush1.bf16.msra.mxu0 0
        %1738 = vmatprep.subr.bf16.mxu0 0
        %1739 = vmatpush1.bf16.msra.mxu0 0
        %1740 = vmatprep.subr.bf16.mxu0 0
        %1741 = vmatpush1.bf16.msra.mxu0 0
        %1742 = vmatprep.subr.bf16.mxu0 0
        %1743 = vmatpush1.bf16.msra.mxu0 0
        %1744 = vmatprep.subr.bf16.mxu0 0
        %1745 = vmatpush1.bf16.msra.mxu0 0
        %1746 = vmatprep.subr.bf16.mxu0 0
        %1747 = vmatpush1.bf16.msra.mxu0 0
        %1748 = vmatprep.subr.bf16.mxu0 0
        %1749 = vmatpush1.bf16.msra.mxu0 0
        %1750 = vmatprep.mubr.bf16.mxu0 0
        %1751 = vmatmul.mubr.bf16.gmra.mrb[0].mxu0 %v1716
        %v1752 = vpop.f32.mrb[0].mxu0
        %v1753 = vadd.f32 %v1689, %v1752
        %v1754 = vpop.f32.mrb[0].mxu0
        %v1755 = vpop.f32.mrb[0].mxu0
        %v1756 = vadd.f32 %v1689, %v1755
        %v1757 = vpop.f32.mrb[0].mxu0
        %1758 = vdwg.mxu0
        %v1759 = vmul.f32 %v1753, 0.5
        %v1760 = vmul.f32 %v1756, 0.5
        %v1761 = vmul.f32 %v1753, 0.044715
        %v1762 = vmul.f32 %v1756, 0.044715
        %v1763 = vmul.f32 %v1761, %v1753
        %v1764 = vmul.f32 %v1762, %v1756
        %v1765 = vmul.f32 %v1763, %v1753
        %v1766 = vmul.f32 %v1764, %v1756
        %v1767 = vadd.f32 %v1753, %v1765
        %v1768 = vadd.f32 %v1756, %v1766
        %v1769 = vmul.f32 %v1767, 0.7978846
        %v1770 = vmul.f32 %v1768, 0.7978846
        %v1771 = vtanh.pop %v1769
        %v1772 = vtanh.pop %v1770
        %v1773 = vadd.f32 %v1771, 1.0
        %v1774 = vadd.f32 %v1772, 1.0
        %v1775 = vmul.f32 %v1759, %v1773
        %v1776 = vmul.f32 %v1760, %v1774
        %v1777 = vpack.c.bf16 %v1776, %v1775
        %v1778 = vld [vmem:[%s14] sm:$0xf]
        %v1779 = vld [vmem:[%s14 + $0x4] sm:$0xf]
        %v1780 = vld [vmem:[%s14 + $0x8] sm:$0xf]
        %v1781 = vld [vmem:[%s14 + $0xc] sm:$0xf]
        %v1782 = vld [vmem:[%s14 + $0x10] sm:$0xf]
        %v1783 = vld [vmem:[%s14 + $0x14] sm:$0xf]
        %v1784 = vld [vmem:[%s14 + $0x18] sm:$0xf]
        %v1785 = vld [vmem:[%s14 + $0x1c] sm:$0xf]
        %v1786 = vld [vmem:[%s14 + $0x20] sm:$0xf]
        %v1787 = vld [vmem:[%s14 + $0x24] sm:$0xf]
        %v1788 = vld [vmem:[%s14 + $0x28] sm:$0xf]
        %v1789 = vld [vmem:[%s14 + $0x2c] sm:$0xf]
        %v1790 = vld [vmem:[%s14 + $0x30] sm:$0xf]
        %v1791 = vld [vmem:[%s14 + $0x34] sm:$0xf]
        %v1792 = vld [vmem:[%s14 + $0x38] sm:$0xf]
        %v1793 = vld [vmem:[%s14 + $0x3c] sm:$0xf]
        %v1794 = vld [vmem:[%s15] sm:$0x1]
        %v1796 = vlaneseq
        %v1797 = vshrl.u32 %v1796, 7
        %v1798 = vsub.s32 0, %v1797
        %v1799 = vrot.slane %v1794, %v1798
        %v1817 = vunpack.c.l.b16 %v1778
        %v1818 = vunpack.c.l.b16 %v1779
        %v1819 = vunpack.c.l.b16 %v1780
        %v1820 = vunpack.c.l.b16 %v1781
        %v1821 = vunpack.c.l.b16 %v1782
        %v1822 = vunpack.c.l.b16 %v1783
        %v1823 = vunpack.c.l.b16 %v1784
        %v1824 = vunpack.c.l.b16 %v1785
        %v1825 = vunpack.c.l.b16 %v1786
        %v1826 = vunpack.c.l.b16 %v1787
        %v1827 = vunpack.c.l.b16 %v1788
        %v1828 = vunpack.c.l.b16 %v1789
        %v1829 = vunpack.c.l.b16 %v1790
        %v1830 = vunpack.c.l.b16 %v1791
        %v1831 = vunpack.c.l.b16 %v1792
        %v1832 = vunpack.c.l.b16 %v1793
        %v1833 = vpack.c.b16 %v1818, %v1817
        %v1834 = vpack.c.b16 %v1820, %v1819
        %v1835 = vpack.c.b16 %v1822, %v1821
        %v1836 = vpack.c.b16 %v1824, %v1823
        %v1837 = vpack.c.b16 %v1826, %v1825
        %v1838 = vpack.c.b16 %v1828, %v1827
        %v1839 = vpack.c.b16 %v1830, %v1829
        %v1840 = vpack.c.b16 %v1832, %v1831
        %1849 = vmatprep.subr.bf16.mxu0 0
        %1850 = vmatpush1.bf16.msra.mxu0 %v1833
        %1851 = vmatprep.subr.bf16.mxu0 0
        %1852 = vmatpush1.bf16.msra.mxu0 %v1834
        %1853 = vmatprep.subr.bf16.mxu0 0
        %1854 = vmatpush1.bf16.msra.mxu0 %v1835
        %1855 = vmatprep.subr.bf16.mxu0 0
        %1856 = vmatpush1.bf16.msra.mxu0 %v1836
        %1857 = vmatprep.subr.bf16.mxu0 0
        %1858 = vmatpush1.bf16.msra.mxu0 %v1837
        %1859 = vmatprep.subr.bf16.mxu0 0
        %1860 = vmatpush1.bf16.msra.mxu0 %v1838
        %1861 = vmatprep.subr.bf16.mxu0 0
        %1862 = vmatpush1.bf16.msra.mxu0 %v1839
        %1863 = vmatprep.subr.bf16.mxu0 0
        %1864 = vmatpush1.bf16.msra.mxu0 %v1840
        %1865 = vmatprep.subr.bf16.mxu0 0
        %1866 = vmatpush1.bf16.msra.mxu0 0
        %1867 = vmatprep.subr.bf16.mxu0 0
        %1868 = vmatpush1.bf16.msra.mxu0 0
        %1869 = vmatprep.subr.bf16.mxu0 0
        %1870 = vmatpush1.bf16.msra.mxu0 0
        %1871 = vmatprep.subr.bf16.mxu0 0
        %1872 = vmatpush1.bf16.msra.mxu0 0
        %1873 = vmatprep.subr.bf16.mxu0 0
        %1874 = vmatpush1.bf16.msra.mxu0 0
        %1875 = vmatprep.subr.bf16.mxu0 0
        %1876 = vmatpush1.bf16.msra.mxu0 0
        %1877 = vmatprep.subr.bf16.mxu0 0
        %1878 = vmatpush1.bf16.msra.mxu0 0
        %1879 = vmatprep.subr.bf16.mxu0 0
        %1880 = vmatpush1.bf16.msra.mxu0 0
        %1881 = vmatprep.mubr.bf16.mxu0 0
        %1882 = vmatmul.mubr.bf16.gmra.mrb[0].mxu0 %v1777
        %v1883 = vpop.f32.mrb[0].mxu0
        %v1884 = vadd.f32 %v1799, %v1883
        %v1885 = vpop.f32.mrb[0].mxu0
        %v1886 = vpop.f32.mrb[0].mxu0
        %v1887 = vadd.f32 %v1799, %v1886
        %v1888 = vpop.f32.mrb[0].mxu0
        %1889 = vdwg.mxu0
        %v1890 = vadd.f32 %v1673, %v1884
        %v1891 = vadd.f32 %v1674, %v1887
        %v1892 = vld [vmem:[%s16] sm:$0x1]
        %v1893 = vld [vmem:[%s17] sm:$0x1]
        %v1894 = vsel %vm781, %v1890, 0.0
        %1895 = vadd.xlane.f32.xlu0 %v1894
        %v1896 = vpop.xlane.xlu0 %1895
        %v1897 = vsel %vm781, %v1891, 0.0
        %1898 = vadd.xlane.f32.xlu0 %v1897
        %v1899 = vpop.xlane.xlu0 %1898
        %v1900 = vmul.f32 %v1896, %v788
        %v1901 = vmul.f32 %v1899, %v788
        %v1902 = vsub.f32 %v1890, %v1900
        %v1903 = vsub.f32 %v1891, %v1901
        %v1904 = vmul.f32 %v1902, %v1902
        %v1905 = vmul.f32 %v1903, %v1903
        %v1906 = vsel %vm781, %v1904, 0.0
        %1907 = vadd.xlane.f32.xlu0 %v1906
        %v1908 = vpop.xlane.xlu0 %1907
        %v1909 = vsel %vm781, %v1905, 0.0
        %1910 = vadd.xlane.f32.xlu0 %v1909
        %v1911 = vpop.xlane.xlu0 %1910
        %v1912 = vmul.f32 %v1908, %v788
        %v1913 = vmul.f32 %v1911, %v788
        %v1914 = vadd.f32 %v1912, 1e-05
        %v1915 = vadd.f32 %v1913, 1e-05
        %v1916 = vrsqrt.pop %v1914
        %v1917 = vrsqrt.pop %v1915
        %v1918 = vmul.f32 %v1902, %v1916
        %v1919 = vmul.f32 %v1903, %v1917
        %v1921 = vlaneseq
        %v1922 = vshrl.u32 %v1921, 7
        %v1923 = vsub.s32 0, %v1922
        %v1924 = vrot.slane %v1892, %v1923
        %v1926 = vmul.f32 %v1918, %v1924
        %v1927 = vmul.f32 %v1919, %v1924
        %v1929 = vlaneseq
        %v1930 = vshrl.u32 %v1929, 7
        %v1931 = vsub.s32 0, %v1930
        %v1932 = vrot.slane %v1893, %v1931
        %v1934 = vadd.f32 %v1926, %v1932
        %v1935 = vadd.f32 %v1927, %v1932
        %1936 = vst.msk [vmem:[%s623] sm:$0xff] %vm781, %v1934
        %1937 = vst.msk [vmem:[%s623 + $0x8] sm:$0xff] %vm781, %v1935
        %s1938 = sand.u32 %s444, 1
        %s1939 = scalar_lea.sflag [#allocation6], %s1938
        %s1940 = sand.u32 %s444, 1
        %s1941 = smul.addr %s1940, 16
        %s1942 = scalar_lea.vmem [#allocation9], %s1941
        // Predicated region
        $region105: #{tpu_custom_call.1} parent=91 // pred_check
          %p1943 = pneg %p454
        $region106: #{tpu_custom_call.1} parent=91 // pred_check_branch
          %1945 = sbr.rel (%p1943) target = $region108
        $region107: #{tpu_custom_call.1} parent=91 // pred_region
          %s1946 = smul.u32 2, %s39
          %s1948 = ssub.s32 256, 256
          %1949 = vsyncadd %s1939, %s1948
          %s1950 = smul.addr %s38, 2
          %s1951 = sadd.s32 %s1946, %s1950
          %s1952 = smul.addr %s1951, 128
          %s1953 = scalar_lea.hbm %s18, %s1952
          %s1954 = sshll.u32 %s1942, 4
          %s1955 = int_to_ptr.vmem [resolvable:$true] %s1954
          %1960 = dma.vmem_to_hbm [thread:$0]  %s1955, 256, %s1953, %s1939, 128, 128, 8
        $region108: #{tpu_custom_call.1} parent=91 // pred_fallthru
          _
      $region92: #{tpu_custom_call.1} parent=5 // pred_fallthru
        _
      %p1961 = scmp.le.s32.totalorder 2, %s29
      // Predicated region
      $region109: #{tpu_custom_call.1} parent=5 // pred_check
        %p1962 = pneg %p1961
      $region110: #{tpu_custom_call.1} parent=5 // pred_check_branch
        %1964 = sbr.rel (%p1962) target = $region112
      $region111: #{tpu_custom_call.1} parent=5 // pred_region
        %s1965 = ssub.s32 %s29, 2
        // Predicated region
        $region113: #{tpu_custom_call.1} parent=111 // pred_check
          %p1966 = pneg %p460
        $region114: #{tpu_custom_call.1} parent=111 // pred_check_branch
          %1968 = sbr.rel (%p1966) target = $region116
        $region115: #{tpu_custom_call.1} parent=111 // pred_region
          %s1969 = sand.u32 %s445, 1
          %s1970 = scalar_lea.sflag [#allocation6], %s1969
          %s1971 = sand.u32 %s445, 1
          %s1972 = smul.addr %s1971, 16
          %s1973 = scalar_lea.vmem [#allocation9], %s1972
          %1974 = dma.done %s1970, 256
        $region116: #{tpu_custom_call.1} parent=111 // pred_fallthru
          _
      $region112: #{tpu_custom_call.1} parent=5 // pred_fallthru
        _
    $region6: #{tpu_custom_call.1} parent=1 // loop_footer
      %s33 = sadd.s32 1, %s29
    $region7: #{tpu_custom_call.1} parent=1 // loop_footer_branch
      %28 = sbr.rel target = $region3
    $region8: #{tpu_custom_call.1} parent=1 // loop_exit
      _
    %1975 = vsyncpa [#allocation5], 1
    %s1976 = scalar_lea.sflag [#allocation5], 1
    %1977 = vsyncpa %s1976, 1
    %1978 = vsyncpa [#allocation8], 1
    %1979 = vsyncpa [#allocation6], 1
    %s1980 = scalar_lea.sflag [#allocation6], 1
    %1981 = vsyncpa %s1980, 1

</llo_original>
